<compile_context>
chip_gen: v5e
topology: v5e:2x2
jax: 0.10.0
libtpu: 0.0.40
codegen_flags: <defaults>
</compile_context>

<pallas_src>
import functools

import jax
import jax.numpy as jnp
from jax import lax
from jax.experimental import pallas as pl
from jax.experimental.pallas import tpu as pltpu

GLOVE_DIM = 100
D = 100                       # hidden size of the PyTorch module
INPUT_DIM = GLOVE_DIM + D     # 200

H_PAD = 128                   # hidden padded to one full lane group
G_PAD = 4 * H_PAD             # 512: per-direction gates (i, f, o, g), each a 128-lane slab
I_PAD = 256                   # input padded to a lane multiple (col 200 = folded-bias ones)


def _bilstm_kernel(x_ref, wih_ref, whh_ref, o_ref, pre_scr, *, seq_len, batch_pad):
    """Fused bidirectional LSTM over the whole sequence.

    x_ref    : (T*Bp, I_PAD)   bf16   time-major, batch/lane padded input (col 200 == 1.0)
    wih_ref  : (I_PAD, 2*G_PAD) bf16  [fwd gates | bwd gates] input projection, bias folded in
    whh_ref  : (2*H_PAD, 2*G_PAD) bf16 block-diagonal recurrent weights [fwd | bwd]
    o_ref    : (T*Bp, 2*H_PAD) f32    [fwd h | bwd h] per time row
    pre_scr  : (T*Bp, 2*G_PAD) bf16 VMEM  hoisted input projection (pre-gates)
    """
    T, Bp, Hp, Gp = seq_len, batch_pad, H_PAD, G_PAD

    # ---- (1) hoisted input projection: one lane-dense bf16 MXU matmul for both directions ----
    pre_scr[...] = jnp.dot(
        x_ref[...], wih_ref[...], preferred_element_type=jnp.float32
    ).astype(pre_scr.dtype)

    whh = whh_ref[...]                                    # (2*Hp, 2*Gp) bf16, block-diagonal

    def gates(g, c):
        # gate slabs per direction: [i | f | o] (sigmoid, contiguous 3*Hp) then [g] (tanh).
        s = jax.nn.sigmoid(g[:, 0:3 * Hp])
        gg = jnp.tanh(g[:, 3 * Hp:4 * Hp])
        c_new = s[:, Hp:2 * Hp] * c + s[:, 0:Hp] * gg     # f*c + i*g
        h_new = s[:, 2 * Hp:3 * Hp] * jnp.tanh(c_new)     # o*tanh(c)
        return h_new, c_new

    # ---- (2) time recurrence: fwd + bwd chains share one block-diagonal recurrent dot ----
    def body(t, carry):
        h_f, c_f, h_b, c_b = carry
        rf = pl.multiple_of(t * Bp, Bp)                   # fwd consumes time t
        rb = pl.multiple_of((T - 1 - t) * Bp, Bp)         # bwd consumes time T-1-t

        h_both = jnp.concatenate([h_f, h_b], axis=-1).astype(jnp.bfloat16)   # (Bp, 2*Hp)
        rec = jnp.dot(h_both, whh, preferred_element_type=jnp.float32)       # (Bp, 2*Gp) f32

        pre_f = pre_scr[pl.ds(rf, Bp), 0:Gp].astype(jnp.float32)
        pre_b = pre_scr[pl.ds(rb, Bp), Gp:2 * Gp].astype(jnp.float32)

        h_f, c_f = gates(rec[:, 0:Gp] + pre_f, c_f)
        h_b, c_b = gates(rec[:, Gp:2 * Gp] + pre_b, c_b)

        # 128-lane-aligned, unmasked stores into the fused (T*Bp, 2*H_PAD) output.
        o_ref[pl.ds(rf, Bp), 0:Hp] = h_f.astype(o_ref.dtype)
        o_ref[pl.ds(rb, Bp), Hp:2 * Hp] = h_b.astype(o_ref.dtype)
        return h_f, c_f, h_b, c_b

    zero = jnp.zeros((Bp, Hp), jnp.float32)
    lax.fori_loop(0, T, body, (zero, zero, zero, zero),
                  unroll=True if T <= 32 else 8)


def _bilstm_pallas(x_2d, wih_both, whh_bd, *, seq_len, batch_pad):
    kernel = functools.partial(_bilstm_kernel, seq_len=seq_len, batch_pad=batch_pad)
    rows = seq_len * batch_pad
    # explicit VMEM budget: x(bf16) + pre_scr(bf16) + out(f32) + weights(bf16) + headroom.
    footprint = (rows * I_PAD * 2
                 + rows * 2 * G_PAD * 2
                 + rows * 2 * H_PAD * 4
                 + I_PAD * 2 * G_PAD * 2
                 + 2 * H_PAD * 2 * G_PAD * 2)
    vmem_limit = int(min(footprint * 2 + (4 << 20), 100 << 20))
    # Whole arrays VMEM-resident; no grid -> no per-step pipeline bookkeeping, single buffering.
    return pl.pallas_call(
        kernel,
        out_shape=jax.ShapeDtypeStruct((rows, 2 * H_PAD), jnp.float32),
        in_specs=[pl.BlockSpec(memory_space=pltpu.MemorySpace.VMEM) for _ in range(3)],
        out_specs=pl.BlockSpec(memory_space=pltpu.MemorySpace.VMEM),
        scratch_shapes=[pltpu.VMEM((rows, 2 * G_PAD), jnp.bfloat16)],
        compiler_params=pltpu.CompilerParams(vmem_limit_bytes=vmem_limit),
    )(x_2d, wih_both, whh_bd)


def _pack_direction(w_ih, w_hh, b_ih, b_hh):
    """Pad / transpose one direction's PyTorch LSTM params into the kernel's MXU layout.

    PyTorch gate order is (i, f, g, o); we repack to (i, f, o, g) so the three sigmoid gates
    form one contiguous 384-lane slab. Bias is folded into wih row INPUT_DIM (x col 200 == 1).
    """
    perm = jnp.array([0, 1, 3, 2])

    def pad_gates(w, in_dim, in_dim_pad):
        # (4*D, in_dim) -> (in_dim_pad, 4*H_PAD); each gate a 128-lane slab, zero-padded.
        w4 = w.reshape(4, D, in_dim)[perm]
        w4 = jnp.pad(w4, ((0, 0), (0, H_PAD - D), (0, in_dim_pad - in_dim)))
        return jnp.transpose(w4, (2, 0, 1)).reshape(in_dim_pad, 4 * H_PAD)

    wih_t = pad_gates(w_ih, INPUT_DIM, I_PAD)            # (I_PAD, G_PAD)
    whh_t = pad_gates(w_hh, D, H_PAD)                    # (H_PAD, G_PAD)
    b = (b_ih + b_hh).reshape(4, D)[perm]
    b = jnp.pad(b, ((0, 0), (0, H_PAD - D))).reshape(4 * H_PAD)
    wih_t = wih_t.at[INPUT_DIM].set(b)                   # bias rides the constant-1 x column
    return wih_t, whh_t


def contextual_embedding(x_bti, params):
    """Bidirectional LSTM forward. x_bti: (B, T, 200) batch_first. Returns (B, T, 200)."""
    B, T, I = x_bti.shape
    assert I == INPUT_DIM, (I, INPUT_DIM)
    Bp = max(8, -(-B // 8) * 8)                          # pad batch to >= 8 sublanes

    wih_f, whh_f = _pack_direction(params["w_ih_f"], params["w_hh_f"],
                                   params["b_ih_f"], params["b_hh_f"])
    wih_r, whh_r = _pack_direction(params["w_ih_r"], params["w_hh_r"],
                                   params["b_ih_r"], params["b_hh_r"])
    wih_both = jnp.concatenate([wih_f, wih_r], axis=1).astype(jnp.bfloat16)   # (I_PAD, 2*G_PAD)
    whh_bd = jnp.zeros((2 * H_PAD, 2 * G_PAD), jnp.float32)
    whh_bd = whh_bd.at[0:H_PAD, 0:G_PAD].set(whh_f)
    whh_bd = whh_bd.at[H_PAD:, G_PAD:].set(whh_r)
    whh_bd = whh_bd.astype(jnp.bfloat16)                                      # block-diagonal

    # batch_first -> time-major, append constant-1 column (folded bias), zero-pad, cast bf16.
    x_tbi = jnp.transpose(x_bti, (1, 0, 2)).astype(jnp.float32)               # (T, B, I)
    ones = jnp.ones((T, B, 1), jnp.float32)
    x_aug = jnp.concatenate([x_tbi, ones], axis=-1)                           # (T, B, 201)
    x_pad = jnp.pad(x_aug, ((0, 0), (0, Bp - B), (0, I_PAD - INPUT_DIM - 1)))
    x_2d = x_pad.reshape(T * Bp, I_PAD).astype(jnp.bfloat16)

    out_2d = _bilstm_pallas(x_2d, wih_both, whh_bd, seq_len=T, batch_pad=Bp)
    out = out_2d.reshape(T, Bp, 2 * H_PAD)
    fwd = out[:, :B, :D]
    bwd = out[:, :B, H_PAD:H_PAD + D]
    return jnp.transpose(jnp.concatenate([fwd, bwd], axis=-1), (1, 0, 2))     # (B, T, 2*D)


# -------------------- pure-JAX reference (lax.scan, f32) for verification --------------------
def _lstm_ref_dir(x_tbi, w_ih, w_hh, b_ih, b_hh, reverse):
    T, B, _ = x_tbi.shape
    H = w_hh.shape[1]

    def step(carry, x_t):
        h, c = carry
        gates = x_t @ w_ih.T + b_ih + h @ w_hh.T + b_hh
        i, f, g, o = jnp.split(gates, 4, axis=-1)
        i = jax.nn.sigmoid(i)
        f = jax.nn.sigmoid(f)
        g = jnp.tanh(g)
        o = jax.nn.sigmoid(o)
        c = f * c + i * g
        h = o * jnp.tanh(c)
        return (h, c), h

    h0 = jnp.zeros((B, H), jnp.float32)
    c0 = jnp.zeros((B, H), jnp.float32)
    xs = x_tbi[::-1] if reverse else x_tbi
    _, hs = jax.lax.scan(step, (h0, c0), xs)
    return hs[::-1] if reverse else hs


def contextual_embedding_ref(x_bti, p):
    x_tbi = jnp.transpose(x_bti, (1, 0, 2))
    fwd = _lstm_ref_dir(x_tbi, p["w_ih_f"], p["w_hh_f"], p["b_ih_f"], p["b_hh_f"], False)
    bwd = _lstm_ref_dir(x_tbi, p["w_ih_r"], p["w_hh_r"], p["b_ih_r"], p["b_hh_r"], True)
    return jnp.transpose(jnp.concatenate([fwd, bwd], axis=-1), (1, 0, 2))


def init_params(key):
    """Deterministic init matching PyTorch LSTM param shapes: U(-1/sqrt(H), 1/sqrt(H))."""
    k = 1.0 / jnp.sqrt(jnp.float32(D))
    keys = jax.random.split(key, 8)
    u = lambda kk, shape: jax.random.uniform(kk, shape, jnp.float32, -k, k)
    return {
        "w_ih_f": u(keys[0], (4 * D, INPUT_DIM)),
        "w_hh_f": u(keys[1], (4 * D, D)),
        "b_ih_f": u(keys[2], (4 * D,)),
        "b_hh_f": u(keys[3], (4 * D,)),
        "w_ih_r": u(keys[4], (4 * D, INPUT_DIM)),
        "w_hh_r": u(keys[5], (4 * D, D)),
        "b_ih_r": u(keys[6], (4 * D,)),
        "b_hh_r": u(keys[7], (4 * D,)),
    }


if __name__ == "__main__":
    B, T = 2, 8
    root = jax.random.PRNGKey(0)
    kx, kp = jax.random.split(root)

    x = jax.random.normal(kx, (B, T, INPUT_DIM), jnp.float32) * 0.1
    params = init_params(kp)

    fn = jax.jit(contextual_embedding)
    out = jax.block_until_ready(fn(x, params))
    assert out.shape == (B, T, 2 * D), out.shape

    ref = jax.block_until_ready(contextual_embedding_ref(x, params))
    # bf16 MXU operands + bf16 pre-gates vs. the pure-f32 reference: allow ~1e-2 abs error.
    max_err = float(jnp.max(jnp.abs(out - ref)))
    assert max_err < 1.5e-2, f"max abs error {max_err}"

    print("KERNEL_OK")
</pallas_src>

<mosaic_0001>
module attributes {stable_mosaic.version = 11 : i64} {
  func.func @_bilstm_kernel(%arg0: memref<64x256xbf16, #tpu.memory_space<vmem>>, %arg1: memref<256x1024xbf16, #tpu.memory_space<vmem>>, %arg2: memref<256x1024xbf16, #tpu.memory_space<vmem>>, %arg3: memref<64x256xf32, #tpu.memory_space<vmem>>, %arg4: memref<64x1024xbf16, #tpu.memory_space<vmem>>) attributes {dimension_semantics = [], scalar_prefetch = 0 : i64, scratch_operands = 1 : i64, tpu.core_type = #tpu.core_type<tc>} {
    %c0 = arith.constant 0 : index
    %c0_0 = arith.constant 0 : index
    %0 = vector.load %arg0[%c0, %c0_0] : memref<64x256xbf16, #tpu.memory_space<vmem>>, vector<64x256xbf16>
    %c0_1 = arith.constant 0 : index
    %c0_2 = arith.constant 0 : index
    %1 = vector.load %arg1[%c0_1, %c0_2] : memref<256x1024xbf16, #tpu.memory_space<vmem>>, vector<256x1024xbf16>
    %cst = arith.constant dense<0.000000e+00> : vector<64x1024xf32>
    %2 = tpu.matmul %0, %1, %cst {dimension_numbers = #tpu.dot_dimension_numbers<[1], [0], [0], [1], [0, 0, 1, 1], [], []>} : vector<64x256xbf16>, vector<256x1024xbf16>, vector<64x1024xf32> -> vector<64x1024xf32>
    %3 = arith.truncf %2 : vector<64x1024xf32> to vector<64x1024xbf16>
    %c0_3 = arith.constant 0 : index
    %c0_4 = arith.constant 0 : index
    %4 = vector.load %arg4[%c0_3, %c0_4] : memref<64x1024xbf16, #tpu.memory_space<vmem>>, vector<64x1024xbf16>
    tpu.vector_store %arg4[%c0_3, %c0_4], %3 {strides = array<i32>} : memref<64x1024xbf16, #tpu.memory_space<vmem>>, vector<64x1024xbf16>,
    %c0_5 = arith.constant 0 : index
    %c0_6 = arith.constant 0 : index
    %5 = vector.load %arg2[%c0_5, %c0_6] : memref<256x1024xbf16, #tpu.memory_space<vmem>>, vector<256x1024xbf16>
    %cst_7 = arith.constant 0.000000e+00 : f32
    %6 = vector.broadcast %cst_7 : f32 to vector<8x128xf32>
    %c0_i32 = arith.constant 0 : i32
    %c8_i32 = arith.constant 8 : i32
    %7 = arith.muli %c0_i32, %c8_i32 : i32
    %8 = tpu.assume_multiple %7, 8 : i32
    %c7_i32 = arith.constant 7 : i32
    %9 = arith.subi %c7_i32, %c0_i32 : i32
    %c8_i32_8 = arith.constant 8 : i32
    %10 = arith.muli %9, %c8_i32_8 : i32
    %11 = tpu.assume_multiple %10, 8 : i32
    %12 = tpu.concatenate %6, %6 in 1 : vector<8x128xf32>, vector<8x128xf32> -> vector<8x256xf32>
    %13 = arith.truncf %12 : vector<8x256xf32> to vector<8x256xbf16>
    %cst_9 = arith.constant dense<0.000000e+00> : vector<8x1024xf32>
    %14 = tpu.matmul %13, %5, %cst_9 {dimension_numbers = #tpu.dot_dimension_numbers<[1], [0], [0], [1], [0, 0, 1, 1], [], []>} : vector<8x256xbf16>, vector<256x1024xbf16>, vector<8x1024xf32> -> vector<8x1024xf32>
    %15 = arith.index_cast %8 : i32 to index
    %c0_10 = arith.constant 0 : index
    %16 = vector.load %arg4[%15, %c0_10] : memref<64x1024xbf16, #tpu.memory_space<vmem>>, vector<8x512xbf16>
    %17 = arith.extf %16 : vector<8x512xbf16> to vector<8x512xf32>
    %18 = arith.index_cast %11 : i32 to index
    %c512 = arith.constant 512 : index
    %19 = vector.load %arg4[%18, %c512] : memref<64x1024xbf16, #tpu.memory_space<vmem>>, vector<8x512xbf16>
    %20 = arith.extf %19 : vector<8x512xbf16> to vector<8x512xf32>
    %21 = vector.extract_strided_slice %14 {offsets = [0, 0], sizes = [8, 512], strides = [1, 1]} : vector<8x1024xf32> to vector<8x512xf32>
    %22 = arith.addf %21, %17 : vector<8x512xf32>
    %23 = vector.extract_strided_slice %22 {offsets = [0, 0], sizes = [8, 384], strides = [1, 1]} : vector<8x512xf32> to vector<8x384xf32>
    %24 = arith.negf %23 : vector<8x384xf32>
    %25 = math.exp %24 : vector<8x384xf32>
    %cst_11 = arith.constant 1.000000e+00 : f32
    %26 = vector.broadcast %cst_11 : f32 to vector<8x384xf32>
    %27 = arith.addf %26, %25 : vector<8x384xf32>
    %28 = arith.divf %26, %27 : vector<8x384xf32>
    %29 = vector.extract_strided_slice %22 {offsets = [0, 384], sizes = [8, 128], strides = [1, 1]} : vector<8x512xf32> to vector<8x128xf32>
    %30 = math.tanh %29 : vector<8x128xf32>
    %31 = vector.extract_strided_slice %28 {offsets = [0, 128], sizes = [8, 128], strides = [1, 1]} : vector<8x384xf32> to vector<8x128xf32>
    %32 = arith.mulf %31, %6 : vector<8x128xf32>
    %33 = vector.extract_strided_slice %28 {offsets = [0, 0], sizes = [8, 128], strides = [1, 1]} : vector<8x384xf32> to vector<8x128xf32>
    %34 = arith.mulf %33, %30 : vector<8x128xf32>
    %35 = arith.addf %32, %34 : vector<8x128xf32>
    %36 = vector.extract_strided_slice %28 {offsets = [0, 256], sizes = [8, 128], strides = [1, 1]} : vector<8x384xf32> to vector<8x128xf32>
    %37 = math.tanh %35 : vector<8x128xf32>
    %38 = arith.mulf %36, %37 : vector<8x128xf32>
    %39 = vector.extract_strided_slice %14 {offsets = [0, 512], sizes = [8, 512], strides = [1, 1]} : vector<8x1024xf32> to vector<8x512xf32>
    %40 = arith.addf %39, %20 : vector<8x512xf32>
    %41 = vector.extract_strided_slice %40 {offsets = [0, 0], sizes = [8, 384], strides = [1, 1]} : vector<8x512xf32> to vector<8x384xf32>
    %42 = arith.negf %41 : vector<8x384xf32>
    %43 = math.exp %42 : vector<8x384xf32>
    %cst_12 = arith.constant 1.000000e+00 : f32
    %44 = vector.broadcast %cst_12 : f32 to vector<8x384xf32>
    %45 = arith.addf %44, %43 : vector<8x384xf32>
    %46 = arith.divf %44, %45 : vector<8x384xf32>
    %47 = vector.extract_strided_slice %40 {offsets = [0, 384], sizes = [8, 128], strides = [1, 1]} : vector<8x512xf32> to vector<8x128xf32>
    %48 = math.tanh %47 : vector<8x128xf32>
    %49 = vector.extract_strided_slice %46 {offsets = [0, 128], sizes = [8, 128], strides = [1, 1]} : vector<8x384xf32> to vector<8x128xf32>
    %50 = arith.mulf %49, %6 : vector<8x128xf32>
    %51 = vector.extract_strided_slice %46 {offsets = [0, 0], sizes = [8, 128], strides = [1, 1]} : vector<8x384xf32> to vector<8x128xf32>
    %52 = arith.mulf %51, %48 : vector<8x128xf32>
    %53 = arith.addf %50, %52 : vector<8x128xf32>
    %54 = vector.extract_strided_slice %46 {offsets = [0, 256], sizes = [8, 128], strides = [1, 1]} : vector<8x384xf32> to vector<8x128xf32>
    %55 = math.tanh %53 : vector<8x128xf32>
    %56 = arith.mulf %54, %55 : vector<8x128xf32>
    %57 = arith.index_cast %8 : i32 to index
    %c0_13 = arith.constant 0 : index
    %58 = vector.load %arg3[%57, %c0_13] : memref<64x256xf32, #tpu.memory_space<vmem>>, vector<8x128xf32>
    tpu.vector_store %arg3[%57, %c0_13], %38 {strides = array<i32>} : memref<64x256xf32, #tpu.memory_space<vmem>>, vector<8x128xf32>,
    %59 = arith.index_cast %11 : i32 to index
    %c128 = arith.constant 128 : index
    %60 = vector.load %arg3[%59, %c128] : memref<64x256xf32, #tpu.memory_space<vmem>>, vector<8x128xf32>
    tpu.vector_store %arg3[%59, %c128], %56 {strides = array<i32>} : memref<64x256xf32, #tpu.memory_space<vmem>>, vector<8x128xf32>,
    %c1_i32 = arith.constant 1 : i32
    %c8_i32_14 = arith.constant 8 : i32
    %61 = arith.muli %c1_i32, %c8_i32_14 : i32
    %62 = tpu.assume_multiple %61, 8 : i32
    %c7_i32_15 = arith.constant 7 : i32
    %63 = arith.subi %c7_i32_15, %c1_i32 : i32
    %c8_i32_16 = arith.constant 8 : i32
    %64 = arith.muli %63, %c8_i32_16 : i32
    %65 = tpu.assume_multiple %64, 8 : i32
    %66 = tpu.concatenate %38, %56 in 1 : vector<8x128xf32>, vector<8x128xf32> -> vector<8x256xf32>
    %67 = arith.truncf %66 : vector<8x256xf32> to vector<8x256xbf16>
    %cst_17 = arith.constant dense<0.000000e+00> : vector<8x1024xf32>
    %68 = tpu.matmul %67, %5, %cst_17 {dimension_numbers = #tpu.dot_dimension_numbers<[1], [0], [0], [1], [0, 0, 1, 1], [], []>} : vector<8x256xbf16>, vector<256x1024xbf16>, vector<8x1024xf32> -> vector<8x1024xf32>
    %69 = arith.index_cast %62 : i32 to index
    %c0_18 = arith.constant 0 : index
    %70 = vector.load %arg4[%69, %c0_18] : memref<64x1024xbf16, #tpu.memory_space<vmem>>, vector<8x512xbf16>
    %71 = arith.extf %70 : vector<8x512xbf16> to vector<8x512xf32>
    %72 = arith.index_cast %65 : i32 to index
    %c512_19 = arith.constant 512 : index
    %73 = vector.load %arg4[%72, %c512_19] : memref<64x1024xbf16, #tpu.memory_space<vmem>>, vector<8x512xbf16>
    %74 = arith.extf %73 : vector<8x512xbf16> to vector<8x512xf32>
    %75 = vector.extract_strided_slice %68 {offsets = [0, 0], sizes = [8, 512], strides = [1, 1]} : vector<8x1024xf32> to vector<8x512xf32>
    %76 = arith.addf %75, %71 : vector<8x512xf32>
    %77 = vector.extract_strided_slice %76 {offsets = [0, 0], sizes = [8, 384], strides = [1, 1]} : vector<8x512xf32> to vector<8x384xf32>
    %78 = arith.negf %77 : vector<8x384xf32>
    %79 = math.exp %78 : vector<8x384xf32>
    %cst_20 = arith.constant 1.000000e+00 : f32
    %80 = vector.broadcast %cst_20 : f32 to vector<8x384xf32>
    %81 = arith.addf %80, %79 : vector<8x384xf32>
    %82 = arith.divf %80, %81 : vector<8x384xf32>
    %83 = vector.extract_strided_slice %76 {offsets = [0, 384], sizes = [8, 128], strides = [1, 1]} : vector<8x512xf32> to vector<8x128xf32>
    %84 = math.tanh %83 : vector<8x128xf32>
    %85 = vector.extract_strided_slice %82 {offsets = [0, 128], sizes = [8, 128], strides = [1, 1]} : vector<8x384xf32> to vector<8x128xf32>
    %86 = arith.mulf %85, %35 : vector<8x128xf32>
    %87 = vector.extract_strided_slice %82 {offsets = [0, 0], sizes = [8, 128], strides = [1, 1]} : vector<8x384xf32> to vector<8x128xf32>
    %88 = arith.mulf %87, %84 : vector<8x128xf32>
    %89 = arith.addf %86, %88 : vector<8x128xf32>
    %90 = vector.extract_strided_slice %82 {offsets = [0, 256], sizes = [8, 128], strides = [1, 1]} : vector<8x384xf32> to vector<8x128xf32>
    %91 = math.tanh %89 : vector<8x128xf32>
    %92 = arith.mulf %90, %91 : vector<8x128xf32>
    %93 = vector.extract_strided_slice %68 {offsets = [0, 512], sizes = [8, 512], strides = [1, 1]} : vector<8x1024xf32> to vector<8x512xf32>
    %94 = arith.addf %93, %74 : vector<8x512xf32>
    %95 = vector.extract_strided_slice %94 {offsets = [0, 0], sizes = [8, 384], strides = [1, 1]} : vector<8x512xf32> to vector<8x384xf32>
    %96 = arith.negf %95 : vector<8x384xf32>
    %97 = math.exp %96 : vector<8x384xf32>
    %cst_21 = arith.constant 1.000000e+00 : f32
    %98 = vector.broadcast %cst_21 : f32 to vector<8x384xf32>
    %99 = arith.addf %98, %97 : vector<8x384xf32>
    %100 = arith.divf %98, %99 : vector<8x384xf32>
    %101 = vector.extract_strided_slice %94 {offsets = [0, 384], sizes = [8, 128], strides = [1, 1]} : vector<8x512xf32> to vector<8x128xf32>
    %102 = math.tanh %101 : vector<8x128xf32>
    %103 = vector.extract_strided_slice %100 {offsets = [0, 128], sizes = [8, 128], strides = [1, 1]} : vector<8x384xf32> to vector<8x128xf32>
    %104 = arith.mulf %103, %53 : vector<8x128xf32>
    %105 = vector.extract_strided_slice %100 {offsets = [0, 0], sizes = [8, 128], strides = [1, 1]} : vector<8x384xf32> to vector<8x128xf32>
    %106 = arith.mulf %105, %102 : vector<8x128xf32>
    %107 = arith.addf %104, %106 : vector<8x128xf32>
    %108 = vector.extract_strided_slice %100 {offsets = [0, 256], sizes = [8, 128], strides = [1, 1]} : vector<8x384xf32> to vector<8x128xf32>
    %109 = math.tanh %107 : vector<8x128xf32>
    %110 = arith.mulf %108, %109 : vector<8x128xf32>
    %111 = arith.index_cast %62 : i32 to index
    %c0_22 = arith.constant 0 : index
    %112 = vector.load %arg3[%111, %c0_22] : memref<64x256xf32, #tpu.memory_space<vmem>>, vector<8x128xf32>
    tpu.vector_store %arg3[%111, %c0_22], %92 {strides = array<i32>} : memref<64x256xf32, #tpu.memory_space<vmem>>, vector<8x128xf32>,
    %113 = arith.index_cast %65 : i32 to index
    %c128_23 = arith.constant 128 : index
    %114 = vector.load %arg3[%113, %c128_23] : memref<64x256xf32, #tpu.memory_space<vmem>>, vector<8x128xf32>
    tpu.vector_store %arg3[%113, %c128_23], %110 {strides = array<i32>} : memref<64x256xf32, #tpu.memory_space<vmem>>, vector<8x128xf32>,
    %c2_i32 = arith.constant 2 : i32
    %c8_i32_24 = arith.constant 8 : i32
    %115 = arith.muli %c2_i32, %c8_i32_24 : i32
    %116 = tpu.assume_multiple %115, 8 : i32
    %c7_i32_25 = arith.constant 7 : i32
    %117 = arith.subi %c7_i32_25, %c2_i32 : i32
    %c8_i32_26 = arith.constant 8 : i32
    %118 = arith.muli %117, %c8_i32_26 : i32
    %119 = tpu.assume_multiple %118, 8 : i32
    %120 = tpu.concatenate %92, %110 in 1 : vector<8x128xf32>, vector<8x128xf32> -> vector<8x256xf32>
    %121 = arith.truncf %120 : vector<8x256xf32> to vector<8x256xbf16>
    %cst_27 = arith.constant dense<0.000000e+00> : vector<8x1024xf32>
    %122 = tpu.matmul %121, %5, %cst_27 {dimension_numbers = #tpu.dot_dimension_numbers<[1], [0], [0], [1], [0, 0, 1, 1], [], []>} : vector<8x256xbf16>, vector<256x1024xbf16>, vector<8x1024xf32> -> vector<8x1024xf32>
    %123 = arith.index_cast %116 : i32 to index
    %c0_28 = arith.constant 0 : index
    %124 = vector.load %arg4[%123, %c0_28] : memref<64x1024xbf16, #tpu.memory_space<vmem>>, vector<8x512xbf16>
    %125 = arith.extf %124 : vector<8x512xbf16> to vector<8x512xf32>
    %126 = arith.index_cast %119 : i32 to index
    %c512_29 = arith.constant 512 : index
    %127 = vector.load %arg4[%126, %c512_29] : memref<64x1024xbf16, #tpu.memory_space<vmem>>, vector<8x512xbf16>
    %128 = arith.extf %127 : vector<8x512xbf16> to vector<8x512xf32>
    %129 = vector.extract_strided_slice %122 {offsets = [0, 0], sizes = [8, 512], strides = [1, 1]} : vector<8x1024xf32> to vector<8x512xf32>
    %130 = arith.addf %129, %125 : vector<8x512xf32>
    %131 = vector.extract_strided_slice %130 {offsets = [0, 0], sizes = [8, 384], strides = [1, 1]} : vector<8x512xf32> to vector<8x384xf32>
    %132 = arith.negf %131 : vector<8x384xf32>
    %133 = math.exp %132 : vector<8x384xf32>
    %cst_30 = arith.constant 1.000000e+00 : f32
    %134 = vector.broadcast %cst_30 : f32 to vector<8x384xf32>
    %135 = arith.addf %134, %133 : vector<8x384xf32>
    %136 = arith.divf %134, %135 : vector<8x384xf32>
    %137 = vector.extract_strided_slice %130 {offsets = [0, 384], sizes = [8, 128], strides = [1, 1]} : vector<8x512xf32> to vector<8x128xf32>
    %138 = math.tanh %137 : vector<8x128xf32>
    %139 = vector.extract_strided_slice %136 {offsets = [0, 128], sizes = [8, 128], strides = [1, 1]} : vector<8x384xf32> to vector<8x128xf32>
    %140 = arith.mulf %139, %89 : vector<8x128xf32>
    %141 = vector.extract_strided_slice %136 {offsets = [0, 0], sizes = [8, 128], strides = [1, 1]} : vector<8x384xf32> to vector<8x128xf32>
    %142 = arith.mulf %141, %138 : vector<8x128xf32>
    %143 = arith.addf %140, %142 : vector<8x128xf32>
    %144 = vector.extract_strided_slice %136 {offsets = [0, 256], sizes = [8, 128], strides = [1, 1]} : vector<8x384xf32> to vector<8x128xf32>
    %145 = math.tanh %143 : vector<8x128xf32>
    %146 = arith.mulf %144, %145 : vector<8x128xf32>
    %147 = vector.extract_strided_slice %122 {offsets = [0, 512], sizes = [8, 512], strides = [1, 1]} : vector<8x1024xf32> to vector<8x512xf32>
    %148 = arith.addf %147, %128 : vector<8x512xf32>
    %149 = vector.extract_strided_slice %148 {offsets = [0, 0], sizes = [8, 384], strides = [1, 1]} : vector<8x512xf32> to vector<8x384xf32>
    %150 = arith.negf %149 : vector<8x384xf32>
    %151 = math.exp %150 : vector<8x384xf32>
    %cst_31 = arith.constant 1.000000e+00 : f32
    %152 = vector.broadcast %cst_31 : f32 to vector<8x384xf32>
    %153 = arith.addf %152, %151 : vector<8x384xf32>
    %154 = arith.divf %152, %153 : vector<8x384xf32>
    %155 = vector.extract_strided_slice %148 {offsets = [0, 384], sizes = [8, 128], strides = [1, 1]} : vector<8x512xf32> to vector<8x128xf32>
    %156 = math.tanh %155 : vector<8x128xf32>
    %157 = vector.extract_strided_slice %154 {offsets = [0, 128], sizes = [8, 128], strides = [1, 1]} : vector<8x384xf32> to vector<8x128xf32>
    %158 = arith.mulf %157, %107 : vector<8x128xf32>
    %159 = vector.extract_strided_slice %154 {offsets = [0, 0], sizes = [8, 128], strides = [1, 1]} : vector<8x384xf32> to vector<8x128xf32>
    %160 = arith.mulf %159, %156 : vector<8x128xf32>
    %161 = arith.addf %158, %160 : vector<8x128xf32>
    %162 = vector.extract_strided_slice %154 {offsets = [0, 256], sizes = [8, 128], strides = [1, 1]} : vector<8x384xf32> to vector<8x128xf32>
    %163 = math.tanh %161 : vector<8x128xf32>
    %164 = arith.mulf %162, %163 : vector<8x128xf32>
    %165 = arith.index_cast %116 : i32 to index
    %c0_32 = arith.constant 0 : index
    %166 = vector.load %arg3[%165, %c0_32] : memref<64x256xf32, #tpu.memory_space<vmem>>, vector<8x128xf32>
    tpu.vector_store %arg3[%165, %c0_32], %146 {strides = array<i32>} : memref<64x256xf32, #tpu.memory_space<vmem>>, vector<8x128xf32>,
    %167 = arith.index_cast %119 : i32 to index
    %c128_33 = arith.constant 128 : index
    %168 = vector.load %arg3[%167, %c128_33] : memref<64x256xf32, #tpu.memory_space<vmem>>, vector<8x128xf32>
    tpu.vector_store %arg3[%167, %c128_33], %164 {strides = array<i32>} : memref<64x256xf32, #tpu.memory_space<vmem>>, vector<8x128xf32>,
    %c3_i32 = arith.constant 3 : i32
    %c8_i32_34 = arith.constant 8 : i32
    %169 = arith.muli %c3_i32, %c8_i32_34 : i32
    %170 = tpu.assume_multiple %169, 8 : i32
    %c7_i32_35 = arith.constant 7 : i32
    %171 = arith.subi %c7_i32_35, %c3_i32 : i32
    %c8_i32_36 = arith.constant 8 : i32
    %172 = arith.muli %171, %c8_i32_36 : i32
    %173 = tpu.assume_multiple %172, 8 : i32
    %174 = tpu.concatenate %146, %164 in 1 : vector<8x128xf32>, vector<8x128xf32> -> vector<8x256xf32>
    %175 = arith.truncf %174 : vector<8x256xf32> to vector<8x256xbf16>
    %cst_37 = arith.constant dense<0.000000e+00> : vector<8x1024xf32>
    %176 = tpu.matmul %175, %5, %cst_37 {dimension_numbers = #tpu.dot_dimension_numbers<[1], [0], [0], [1], [0, 0, 1, 1], [], []>} : vector<8x256xbf16>, vector<256x1024xbf16>, vector<8x1024xf32> -> vector<8x1024xf32>
    %177 = arith.index_cast %170 : i32 to index
    %c0_38 = arith.constant 0 : index
    %178 = vector.load %arg4[%177, %c0_38] : memref<64x1024xbf16, #tpu.memory_space<vmem>>, vector<8x512xbf16>
    %179 = arith.extf %178 : vector<8x512xbf16> to vector<8x512xf32>
    %180 = arith.index_cast %173 : i32 to index
    %c512_39 = arith.constant 512 : index
    %181 = vector.load %arg4[%180, %c512_39] : memref<64x1024xbf16, #tpu.memory_space<vmem>>, vector<8x512xbf16>
    %182 = arith.extf %181 : vector<8x512xbf16> to vector<8x512xf32>
    %183 = vector.extract_strided_slice %176 {offsets = [0, 0], sizes = [8, 512], strides = [1, 1]} : vector<8x1024xf32> to vector<8x512xf32>
    %184 = arith.addf %183, %179 : vector<8x512xf32>
    %185 = vector.extract_strided_slice %184 {offsets = [0, 0], sizes = [8, 384], strides = [1, 1]} : vector<8x512xf32> to vector<8x384xf32>
    %186 = arith.negf %185 : vector<8x384xf32>
    %187 = math.exp %186 : vector<8x384xf32>
    %cst_40 = arith.constant 1.000000e+00 : f32
    %188 = vector.broadcast %cst_40 : f32 to vector<8x384xf32>
    %189 = arith.addf %188, %187 : vector<8x384xf32>
    %190 = arith.divf %188, %189 : vector<8x384xf32>
    %191 = vector.extract_strided_slice %184 {offsets = [0, 384], sizes = [8, 128], strides = [1, 1]} : vector<8x512xf32> to vector<8x128xf32>
    %192 = math.tanh %191 : vector<8x128xf32>
    %193 = vector.extract_strided_slice %190 {offsets = [0, 128], sizes = [8, 128], strides = [1, 1]} : vector<8x384xf32> to vector<8x128xf32>
    %194 = arith.mulf %193, %143 : vector<8x128xf32>
    %195 = vector.extract_strided_slice %190 {offsets = [0, 0], sizes = [8, 128], strides = [1, 1]} : vector<8x384xf32> to vector<8x128xf32>
    %196 = arith.mulf %195, %192 : vector<8x128xf32>
    %197 = arith.addf %194, %196 : vector<8x128xf32>
    %198 = vector.extract_strided_slice %190 {offsets = [0, 256], sizes = [8, 128], strides = [1, 1]} : vector<8x384xf32> to vector<8x128xf32>
    %199 = math.tanh %197 : vector<8x128xf32>
    %200 = arith.mulf %198, %199 : vector<8x128xf32>
    %201 = vector.extract_strided_slice %176 {offsets = [0, 512], sizes = [8, 512], strides = [1, 1]} : vector<8x1024xf32> to vector<8x512xf32>
    %202 = arith.addf %201, %182 : vector<8x512xf32>
    %203 = vector.extract_strided_slice %202 {offsets = [0, 0], sizes = [8, 384], strides = [1, 1]} : vector<8x512xf32> to vector<8x384xf32>
    %204 = arith.negf %203 : vector<8x384xf32>
    %205 = math.exp %204 : vector<8x384xf32>
    %cst_41 = arith.constant 1.000000e+00 : f32
    %206 = vector.broadcast %cst_41 : f32 to vector<8x384xf32>
    %207 = arith.addf %206, %205 : vector<8x384xf32>
    %208 = arith.divf %206, %207 : vector<8x384xf32>
    %209 = vector.extract_strided_slice %202 {offsets = [0, 384], sizes = [8, 128], strides = [1, 1]} : vector<8x512xf32> to vector<8x128xf32>
    %210 = math.tanh %209 : vector<8x128xf32>
    %211 = vector.extract_strided_slice %208 {offsets = [0, 128], sizes = [8, 128], strides = [1, 1]} : vector<8x384xf32> to vector<8x128xf32>
    %212 = arith.mulf %211, %161 : vector<8x128xf32>
    %213 = vector.extract_strided_slice %208 {offsets = [0, 0], sizes = [8, 128], strides = [1, 1]} : vector<8x384xf32> to vector<8x128xf32>
    %214 = arith.mulf %213, %210 : vector<8x128xf32>
    %215 = arith.addf %212, %214 : vector<8x128xf32>
    %216 = vector.extract_strided_slice %208 {offsets = [0, 256], sizes = [8, 128], strides = [1, 1]} : vector<8x384xf32> to vector<8x128xf32>
    %217 = math.tanh %215 : vector<8x128xf32>
    %218 = arith.mulf %216, %217 : vector<8x128xf32>
    %219 = arith.index_cast %170 : i32 to index
    %c0_42 = arith.constant 0 : index
    %220 = vector.load %arg3[%219, %c0_42] : memref<64x256xf32, #tpu.memory_space<vmem>>, vector<8x128xf32>
    tpu.vector_store %arg3[%219, %c0_42], %200 {strides = array<i32>} : memref<64x256xf32, #tpu.memory_space<vmem>>, vector<8x128xf32>,
    %221 = arith.index_cast %173 : i32 to index
    %c128_43 = arith.constant 128 : index
    %222 = vector.load %arg3[%221, %c128_43] : memref<64x256xf32, #tpu.memory_space<vmem>>, vector<8x128xf32>
    tpu.vector_store %arg3[%221, %c128_43], %218 {strides = array<i32>} : memref<64x256xf32, #tpu.memory_space<vmem>>, vector<8x128xf32>,
    %c4_i32 = arith.constant 4 : i32
    %c8_i32_44 = arith.constant 8 : i32
    %223 = arith.muli %c4_i32, %c8_i32_44 : i32
    %224 = tpu.assume_multiple %223, 8 : i32
    %c7_i32_45 = arith.constant 7 : i32
    %225 = arith.subi %c7_i32_45, %c4_i32 : i32
    %c8_i32_46 = arith.constant 8 : i32
    %226 = arith.muli %225, %c8_i32_46 : i32
    %227 = tpu.assume_multiple %226, 8 : i32
    %228 = tpu.concatenate %200, %218 in 1 : vector<8x128xf32>, vector<8x128xf32> -> vector<8x256xf32>
    %229 = arith.truncf %228 : vector<8x256xf32> to vector<8x256xbf16>
    %cst_47 = arith.constant dense<0.000000e+00> : vector<8x1024xf32>
    %230 = tpu.matmul %229, %5, %cst_47 {dimension_numbers = #tpu.dot_dimension_numbers<[1], [0], [0], [1], [0, 0, 1, 1], [], []>} : vector<8x256xbf16>, vector<256x1024xbf16>, vector<8x1024xf32> -> vector<8x1024xf32>
    %231 = arith.index_cast %224 : i32 to index
    %c0_48 = arith.constant 0 : index
    %232 = vector.load %arg4[%231, %c0_48] : memref<64x1024xbf16, #tpu.memory_space<vmem>>, vector<8x512xbf16>
    %233 = arith.extf %232 : vector<8x512xbf16> to vector<8x512xf32>
    %234 = arith.index_cast %227 : i32 to index
    %c512_49 = arith.constant 512 : index
    %235 = vector.load %arg4[%234, %c512_49] : memref<64x1024xbf16, #tpu.memory_space<vmem>>, vector<8x512xbf16>
    %236 = arith.extf %235 : vector<8x512xbf16> to vector<8x512xf32>
    %237 = vector.extract_strided_slice %230 {offsets = [0, 0], sizes = [8, 512], strides = [1, 1]} : vector<8x1024xf32> to vector<8x512xf32>
    %238 = arith.addf %237, %233 : vector<8x512xf32>
    %239 = vector.extract_strided_slice %238 {offsets = [0, 0], sizes = [8, 384], strides = [1, 1]} : vector<8x512xf32> to vector<8x384xf32>
    %240 = arith.negf %239 : vector<8x384xf32>
    %241 = math.exp %240 : vector<8x384xf32>
    %cst_50 = arith.constant 1.000000e+00 : f32
    %242 = vector.broadcast %cst_50 : f32 to vector<8x384xf32>
    %243 = arith.addf %242, %241 : vector<8x384xf32>
    %244 = arith.divf %242, %243 : vector<8x384xf32>
    %245 = vector.extract_strided_slice %238 {offsets = [0, 384], sizes = [8, 128], strides = [1, 1]} : vector<8x512xf32> to vector<8x128xf32>
    %246 = math.tanh %245 : vector<8x128xf32>
    %247 = vector.extract_strided_slice %244 {offsets = [0, 128], sizes = [8, 128], strides = [1, 1]} : vector<8x384xf32> to vector<8x128xf32>
    %248 = arith.mulf %247, %197 : vector<8x128xf32>
    %249 = vector.extract_strided_slice %244 {offsets = [0, 0], sizes = [8, 128], strides = [1, 1]} : vector<8x384xf32> to vector<8x128xf32>
    %250 = arith.mulf %249, %246 : vector<8x128xf32>
    %251 = arith.addf %248, %250 : vector<8x128xf32>
    %252 = vector.extract_strided_slice %244 {offsets = [0, 256], sizes = [8, 128], strides = [1, 1]} : vector<8x384xf32> to vector<8x128xf32>
    %253 = math.tanh %251 : vector<8x128xf32>
    %254 = arith.mulf %252, %253 : vector<8x128xf32>
    %255 = vector.extract_strided_slice %230 {offsets = [0, 512], sizes = [8, 512], strides = [1, 1]} : vector<8x1024xf32> to vector<8x512xf32>
    %256 = arith.addf %255, %236 : vector<8x512xf32>
    %257 = vector.extract_strided_slice %256 {offsets = [0, 0], sizes = [8, 384], strides = [1, 1]} : vector<8x512xf32> to vector<8x384xf32>
    %258 = arith.negf %257 : vector<8x384xf32>
    %259 = math.exp %258 : vector<8x384xf32>
    %cst_51 = arith.constant 1.000000e+00 : f32
    %260 = vector.broadcast %cst_51 : f32 to vector<8x384xf32>
    %261 = arith.addf %260, %259 : vector<8x384xf32>
    %262 = arith.divf %260, %261 : vector<8x384xf32>
    %263 = vector.extract_strided_slice %256 {offsets = [0, 384], sizes = [8, 128], strides = [1, 1]} : vector<8x512xf32> to vector<8x128xf32>
    %264 = math.tanh %263 : vector<8x128xf32>
    %265 = vector.extract_strided_slice %262 {offsets = [0, 128], sizes = [8, 128], strides = [1, 1]} : vector<8x384xf32> to vector<8x128xf32>
    %266 = arith.mulf %265, %215 : vector<8x128xf32>
    %267 = vector.extract_strided_slice %262 {offsets = [0, 0], sizes = [8, 128], strides = [1, 1]} : vector<8x384xf32> to vector<8x128xf32>
    %268 = arith.mulf %267, %264 : vector<8x128xf32>
    %269 = arith.addf %266, %268 : vector<8x128xf32>
    %270 = vector.extract_strided_slice %262 {offsets = [0, 256], sizes = [8, 128], strides = [1, 1]} : vector<8x384xf32> to vector<8x128xf32>
    %271 = math.tanh %269 : vector<8x128xf32>
    %272 = arith.mulf %270, %271 : vector<8x128xf32>
    %273 = arith.index_cast %224 : i32 to index
    %c0_52 = arith.constant 0 : index
    %274 = vector.load %arg3[%273, %c0_52] : memref<64x256xf32, #tpu.memory_space<vmem>>, vector<8x128xf32>
    tpu.vector_store %arg3[%273, %c0_52], %254 {strides = array<i32>} : memref<64x256xf32, #tpu.memory_space<vmem>>, vector<8x128xf32>,
    %275 = arith.index_cast %227 : i32 to index
    %c128_53 = arith.constant 128 : index
    %276 = vector.load %arg3[%275, %c128_53] : memref<64x256xf32, #tpu.memory_space<vmem>>, vector<8x128xf32>
    tpu.vector_store %arg3[%275, %c128_53], %272 {strides = array<i32>} : memref<64x256xf32, #tpu.memory_space<vmem>>, vector<8x128xf32>,
    %c5_i32 = arith.constant 5 : i32
    %c8_i32_54 = arith.constant 8 : i32
    %277 = arith.muli %c5_i32, %c8_i32_54 : i32
    %278 = tpu.assume_multiple %277, 8 : i32
    %c7_i32_55 = arith.constant 7 : i32
    %279 = arith.subi %c7_i32_55, %c5_i32 : i32
    %c8_i32_56 = arith.constant 8 : i32
    %280 = arith.muli %279, %c8_i32_56 : i32
    %281 = tpu.assume_multiple %280, 8 : i32
    %282 = tpu.concatenate %254, %272 in 1 : vector<8x128xf32>, vector<8x128xf32> -> vector<8x256xf32>
    %283 = arith.truncf %282 : vector<8x256xf32> to vector<8x256xbf16>
    %cst_57 = arith.constant dense<0.000000e+00> : vector<8x1024xf32>
    %284 = tpu.matmul %283, %5, %cst_57 {dimension_numbers = #tpu.dot_dimension_numbers<[1], [0], [0], [1], [0, 0, 1, 1], [], []>} : vector<8x256xbf16>, vector<256x1024xbf16>, vector<8x1024xf32> -> vector<8x1024xf32>
    %285 = arith.index_cast %278 : i32 to index
    %c0_58 = arith.constant 0 : index
    %286 = vector.load %arg4[%285, %c0_58] : memref<64x1024xbf16, #tpu.memory_space<vmem>>, vector<8x512xbf16>
    %287 = arith.extf %286 : vector<8x512xbf16> to vector<8x512xf32>
    %288 = arith.index_cast %281 : i32 to index
    %c512_59 = arith.constant 512 : index
    %289 = vector.load %arg4[%288, %c512_59] : memref<64x1024xbf16, #tpu.memory_space<vmem>>, vector<8x512xbf16>
    %290 = arith.extf %289 : vector<8x512xbf16> to vector<8x512xf32>
    %291 = vector.extract_strided_slice %284 {offsets = [0, 0], sizes = [8, 512], strides = [1, 1]} : vector<8x1024xf32> to vector<8x512xf32>
    %292 = arith.addf %291, %287 : vector<8x512xf32>
    %293 = vector.extract_strided_slice %292 {offsets = [0, 0], sizes = [8, 384], strides = [1, 1]} : vector<8x512xf32> to vector<8x384xf32>
    %294 = arith.negf %293 : vector<8x384xf32>
    %295 = math.exp %294 : vector<8x384xf32>
    %cst_60 = arith.constant 1.000000e+00 : f32
    %296 = vector.broadcast %cst_60 : f32 to vector<8x384xf32>
    %297 = arith.addf %296, %295 : vector<8x384xf32>
    %298 = arith.divf %296, %297 : vector<8x384xf32>
    %299 = vector.extract_strided_slice %292 {offsets = [0, 384], sizes = [8, 128], strides = [1, 1]} : vector<8x512xf32> to vector<8x128xf32>
    %300 = math.tanh %299 : vector<8x128xf32>
    %301 = vector.extract_strided_slice %298 {offsets = [0, 128], sizes = [8, 128], strides = [1, 1]} : vector<8x384xf32> to vector<8x128xf32>
    %302 = arith.mulf %301, %251 : vector<8x128xf32>
    %303 = vector.extract_strided_slice %298 {offsets = [0, 0], sizes = [8, 128], strides = [1, 1]} : vector<8x384xf32> to vector<8x128xf32>
    %304 = arith.mulf %303, %300 : vector<8x128xf32>
    %305 = arith.addf %302, %304 : vector<8x128xf32>
    %306 = vector.extract_strided_slice %298 {offsets = [0, 256], sizes = [8, 128], strides = [1, 1]} : vector<8x384xf32> to vector<8x128xf32>
    %307 = math.tanh %305 : vector<8x128xf32>
    %308 = arith.mulf %306, %307 : vector<8x128xf32>
    %309 = vector.extract_strided_slice %284 {offsets = [0, 512], sizes = [8, 512], strides = [1, 1]} : vector<8x1024xf32> to vector<8x512xf32>
    %310 = arith.addf %309, %290 : vector<8x512xf32>
    %311 = vector.extract_strided_slice %310 {offsets = [0, 0], sizes = [8, 384], strides = [1, 1]} : vector<8x512xf32> to vector<8x384xf32>
    %312 = arith.negf %311 : vector<8x384xf32>
    %313 = math.exp %312 : vector<8x384xf32>
    %cst_61 = arith.constant 1.000000e+00 : f32
    %314 = vector.broadcast %cst_61 : f32 to vector<8x384xf32>
    %315 = arith.addf %314, %313 : vector<8x384xf32>
    %316 = arith.divf %314, %315 : vector<8x384xf32>
    %317 = vector.extract_strided_slice %310 {offsets = [0, 384], sizes = [8, 128], strides = [1, 1]} : vector<8x512xf32> to vector<8x128xf32>
    %318 = math.tanh %317 : vector<8x128xf32>
    %319 = vector.extract_strided_slice %316 {offsets = [0, 128], sizes = [8, 128], strides = [1, 1]} : vector<8x384xf32> to vector<8x128xf32>
    %320 = arith.mulf %319, %269 : vector<8x128xf32>
    %321 = vector.extract_strided_slice %316 {offsets = [0, 0], sizes = [8, 128], strides = [1, 1]} : vector<8x384xf32> to vector<8x128xf32>
    %322 = arith.mulf %321, %318 : vector<8x128xf32>
    %323 = arith.addf %320, %322 : vector<8x128xf32>
    %324 = vector.extract_strided_slice %316 {offsets = [0, 256], sizes = [8, 128], strides = [1, 1]} : vector<8x384xf32> to vector<8x128xf32>
    %325 = math.tanh %323 : vector<8x128xf32>
    %326 = arith.mulf %324, %325 : vector<8x128xf32>
    %327 = arith.index_cast %278 : i32 to index
    %c0_62 = arith.constant 0 : index
    %328 = vector.load %arg3[%327, %c0_62] : memref<64x256xf32, #tpu.memory_space<vmem>>, vector<8x128xf32>
    tpu.vector_store %arg3[%327, %c0_62], %308 {strides = array<i32>} : memref<64x256xf32, #tpu.memory_space<vmem>>, vector<8x128xf32>,
    %329 = arith.index_cast %281 : i32 to index
    %c128_63 = arith.constant 128 : index
    %330 = vector.load %arg3[%329, %c128_63] : memref<64x256xf32, #tpu.memory_space<vmem>>, vector<8x128xf32>
    tpu.vector_store %arg3[%329, %c128_63], %326 {strides = array<i32>} : memref<64x256xf32, #tpu.memory_space<vmem>>, vector<8x128xf32>,
    %c6_i32 = arith.constant 6 : i32
    %c8_i32_64 = arith.constant 8 : i32
    %331 = arith.muli %c6_i32, %c8_i32_64 : i32
    %332 = tpu.assume_multiple %331, 8 : i32
    %c7_i32_65 = arith.constant 7 : i32
    %333 = arith.subi %c7_i32_65, %c6_i32 : i32
    %c8_i32_66 = arith.constant 8 : i32
    %334 = arith.muli %333, %c8_i32_66 : i32
    %335 = tpu.assume_multiple %334, 8 : i32
    %336 = tpu.concatenate %308, %326 in 1 : vector<8x128xf32>, vector<8x128xf32> -> vector<8x256xf32>
    %337 = arith.truncf %336 : vector<8x256xf32> to vector<8x256xbf16>
    %cst_67 = arith.constant dense<0.000000e+00> : vector<8x1024xf32>
    %338 = tpu.matmul %337, %5, %cst_67 {dimension_numbers = #tpu.dot_dimension_numbers<[1], [0], [0], [1], [0, 0, 1, 1], [], []>} : vector<8x256xbf16>, vector<256x1024xbf16>, vector<8x1024xf32> -> vector<8x1024xf32>
    %339 = arith.index_cast %332 : i32 to index
    %c0_68 = arith.constant 0 : index
    %340 = vector.load %arg4[%339, %c0_68] : memref<64x1024xbf16, #tpu.memory_space<vmem>>, vector<8x512xbf16>
    %341 = arith.extf %340 : vector<8x512xbf16> to vector<8x512xf32>
    %342 = arith.index_cast %335 : i32 to index
    %c512_69 = arith.constant 512 : index
    %343 = vector.load %arg4[%342, %c512_69] : memref<64x1024xbf16, #tpu.memory_space<vmem>>, vector<8x512xbf16>
    %344 = arith.extf %343 : vector<8x512xbf16> to vector<8x512xf32>
    %345 = vector.extract_strided_slice %338 {offsets = [0, 0], sizes = [8, 512], strides = [1, 1]} : vector<8x1024xf32> to vector<8x512xf32>
    %346 = arith.addf %345, %341 : vector<8x512xf32>
    %347 = vector.extract_strided_slice %346 {offsets = [0, 0], sizes = [8, 384], strides = [1, 1]} : vector<8x512xf32> to vector<8x384xf32>
    %348 = arith.negf %347 : vector<8x384xf32>
    %349 = math.exp %348 : vector<8x384xf32>
    %cst_70 = arith.constant 1.000000e+00 : f32
    %350 = vector.broadcast %cst_70 : f32 to vector<8x384xf32>
    %351 = arith.addf %350, %349 : vector<8x384xf32>
    %352 = arith.divf %350, %351 : vector<8x384xf32>
    %353 = vector.extract_strided_slice %346 {offsets = [0, 384], sizes = [8, 128], strides = [1, 1]} : vector<8x512xf32> to vector<8x128xf32>
    %354 = math.tanh %353 : vector<8x128xf32>
    %355 = vector.extract_strided_slice %352 {offsets = [0, 128], sizes = [8, 128], strides = [1, 1]} : vector<8x384xf32> to vector<8x128xf32>
    %356 = arith.mulf %355, %305 : vector<8x128xf32>
    %357 = vector.extract_strided_slice %352 {offsets = [0, 0], sizes = [8, 128], strides = [1, 1]} : vector<8x384xf32> to vector<8x128xf32>
    %358 = arith.mulf %357, %354 : vector<8x128xf32>
    %359 = arith.addf %356, %358 : vector<8x128xf32>
    %360 = vector.extract_strided_slice %352 {offsets = [0, 256], sizes = [8, 128], strides = [1, 1]} : vector<8x384xf32> to vector<8x128xf32>
    %361 = math.tanh %359 : vector<8x128xf32>
    %362 = arith.mulf %360, %361 : vector<8x128xf32>
    %363 = vector.extract_strided_slice %338 {offsets = [0, 512], sizes = [8, 512], strides = [1, 1]} : vector<8x1024xf32> to vector<8x512xf32>
    %364 = arith.addf %363, %344 : vector<8x512xf32>
    %365 = vector.extract_strided_slice %364 {offsets = [0, 0], sizes = [8, 384], strides = [1, 1]} : vector<8x512xf32> to vector<8x384xf32>
    %366 = arith.negf %365 : vector<8x384xf32>
    %367 = math.exp %366 : vector<8x384xf32>
    %cst_71 = arith.constant 1.000000e+00 : f32
    %368 = vector.broadcast %cst_71 : f32 to vector<8x384xf32>
    %369 = arith.addf %368, %367 : vector<8x384xf32>
    %370 = arith.divf %368, %369 : vector<8x384xf32>
    %371 = vector.extract_strided_slice %364 {offsets = [0, 384], sizes = [8, 128], strides = [1, 1]} : vector<8x512xf32> to vector<8x128xf32>
    %372 = math.tanh %371 : vector<8x128xf32>
    %373 = vector.extract_strided_slice %370 {offsets = [0, 128], sizes = [8, 128], strides = [1, 1]} : vector<8x384xf32> to vector<8x128xf32>
    %374 = arith.mulf %373, %323 : vector<8x128xf32>
    %375 = vector.extract_strided_slice %370 {offsets = [0, 0], sizes = [8, 128], strides = [1, 1]} : vector<8x384xf32> to vector<8x128xf32>
    %376 = arith.mulf %375, %372 : vector<8x128xf32>
    %377 = arith.addf %374, %376 : vector<8x128xf32>
    %378 = vector.extract_strided_slice %370 {offsets = [0, 256], sizes = [8, 128], strides = [1, 1]} : vector<8x384xf32> to vector<8x128xf32>
    %379 = math.tanh %377 : vector<8x128xf32>
    %380 = arith.mulf %378, %379 : vector<8x128xf32>
    %381 = arith.index_cast %332 : i32 to index
    %c0_72 = arith.constant 0 : index
    %382 = vector.load %arg3[%381, %c0_72] : memref<64x256xf32, #tpu.memory_space<vmem>>, vector<8x128xf32>
    tpu.vector_store %arg3[%381, %c0_72], %362 {strides = array<i32>} : memref<64x256xf32, #tpu.memory_space<vmem>>, vector<8x128xf32>,
    %383 = arith.index_cast %335 : i32 to index
    %c128_73 = arith.constant 128 : index
    %384 = vector.load %arg3[%383, %c128_73] : memref<64x256xf32, #tpu.memory_space<vmem>>, vector<8x128xf32>
    tpu.vector_store %arg3[%383, %c128_73], %380 {strides = array<i32>} : memref<64x256xf32, #tpu.memory_space<vmem>>, vector<8x128xf32>,
    %c7_i32_74 = arith.constant 7 : i32
    %c8_i32_75 = arith.constant 8 : i32
    %385 = arith.muli %c7_i32_74, %c8_i32_75 : i32
    %386 = tpu.assume_multiple %385, 8 : i32
    %c7_i32_76 = arith.constant 7 : i32
    %387 = arith.subi %c7_i32_76, %c7_i32_74 : i32
    %c8_i32_77 = arith.constant 8 : i32
    %388 = arith.muli %387, %c8_i32_77 : i32
    %389 = tpu.assume_multiple %388, 8 : i32
    %390 = tpu.concatenate %362, %380 in 1 : vector<8x128xf32>, vector<8x128xf32> -> vector<8x256xf32>
    %391 = arith.truncf %390 : vector<8x256xf32> to vector<8x256xbf16>
    %cst_78 = arith.constant dense<0.000000e+00> : vector<8x1024xf32>
    %392 = tpu.matmul %391, %5, %cst_78 {dimension_numbers = #tpu.dot_dimension_numbers<[1], [0], [0], [1], [0, 0, 1, 1], [], []>} : vector<8x256xbf16>, vector<256x1024xbf16>, vector<8x1024xf32> -> vector<8x1024xf32>
    %393 = arith.index_cast %386 : i32 to index
    %c0_79 = arith.constant 0 : index
    %394 = vector.load %arg4[%393, %c0_79] : memref<64x1024xbf16, #tpu.memory_space<vmem>>, vector<8x512xbf16>
    %395 = arith.extf %394 : vector<8x512xbf16> to vector<8x512xf32>
    %396 = arith.index_cast %389 : i32 to index
    %c512_80 = arith.constant 512 : index
    %397 = vector.load %arg4[%396, %c512_80] : memref<64x1024xbf16, #tpu.memory_space<vmem>>, vector<8x512xbf16>
    %398 = arith.extf %397 : vector<8x512xbf16> to vector<8x512xf32>
    %399 = vector.extract_strided_slice %392 {offsets = [0, 0], sizes = [8, 512], strides = [1, 1]} : vector<8x1024xf32> to vector<8x512xf32>
    %400 = arith.addf %399, %395 : vector<8x512xf32>
    %401 = vector.extract_strided_slice %400 {offsets = [0, 0], sizes = [8, 384], strides = [1, 1]} : vector<8x512xf32> to vector<8x384xf32>
    %402 = arith.negf %401 : vector<8x384xf32>
    %403 = math.exp %402 : vector<8x384xf32>
    %cst_81 = arith.constant 1.000000e+00 : f32
    %404 = vector.broadcast %cst_81 : f32 to vector<8x384xf32>
    %405 = arith.addf %404, %403 : vector<8x384xf32>
    %406 = arith.divf %404, %405 : vector<8x384xf32>
    %407 = vector.extract_strided_slice %400 {offsets = [0, 384], sizes = [8, 128], strides = [1, 1]} : vector<8x512xf32> to vector<8x128xf32>
    %408 = math.tanh %407 : vector<8x128xf32>
    %409 = vector.extract_strided_slice %406 {offsets = [0, 128], sizes = [8, 128], strides = [1, 1]} : vector<8x384xf32> to vector<8x128xf32>
    %410 = arith.mulf %409, %359 : vector<8x128xf32>
    %411 = vector.extract_strided_slice %406 {offsets = [0, 0], sizes = [8, 128], strides = [1, 1]} : vector<8x384xf32> to vector<8x128xf32>
    %412 = arith.mulf %411, %408 : vector<8x128xf32>
    %413 = arith.addf %410, %412 : vector<8x128xf32>
    %414 = vector.extract_strided_slice %406 {offsets = [0, 256], sizes = [8, 128], strides = [1, 1]} : vector<8x384xf32> to vector<8x128xf32>
    %415 = math.tanh %413 : vector<8x128xf32>
    %416 = arith.mulf %414, %415 : vector<8x128xf32>
    %417 = vector.extract_strided_slice %392 {offsets = [0, 512], sizes = [8, 512], strides = [1, 1]} : vector<8x1024xf32> to vector<8x512xf32>
    %418 = arith.addf %417, %398 : vector<8x512xf32>
    %419 = vector.extract_strided_slice %418 {offsets = [0, 0], sizes = [8, 384], strides = [1, 1]} : vector<8x512xf32> to vector<8x384xf32>
    %420 = arith.negf %419 : vector<8x384xf32>
    %421 = math.exp %420 : vector<8x384xf32>
    %cst_82 = arith.constant 1.000000e+00 : f32
    %422 = vector.broadcast %cst_82 : f32 to vector<8x384xf32>
    %423 = arith.addf %422, %421 : vector<8x384xf32>
    %424 = arith.divf %422, %423 : vector<8x384xf32>
    %425 = vector.extract_strided_slice %418 {offsets = [0, 384], sizes = [8, 128], strides = [1, 1]} : vector<8x512xf32> to vector<8x128xf32>
    %426 = math.tanh %425 : vector<8x128xf32>
    %427 = vector.extract_strided_slice %424 {offsets = [0, 128], sizes = [8, 128], strides = [1, 1]} : vector<8x384xf32> to vector<8x128xf32>
    %428 = arith.mulf %427, %377 : vector<8x128xf32>
    %429 = vector.extract_strided_slice %424 {offsets = [0, 0], sizes = [8, 128], strides = [1, 1]} : vector<8x384xf32> to vector<8x128xf32>
    %430 = arith.mulf %429, %426 : vector<8x128xf32>
    %431 = arith.addf %428, %430 : vector<8x128xf32>
    %432 = vector.extract_strided_slice %424 {offsets = [0, 256], sizes = [8, 128], strides = [1, 1]} : vector<8x384xf32> to vector<8x128xf32>
    %433 = math.tanh %431 : vector<8x128xf32>
    %434 = arith.mulf %432, %433 : vector<8x128xf32>
    %435 = arith.index_cast %386 : i32 to index
    %c0_83 = arith.constant 0 : index
    %436 = vector.load %arg3[%435, %c0_83] : memref<64x256xf32, #tpu.memory_space<vmem>>, vector<8x128xf32>
    tpu.vector_store %arg3[%435, %c0_83], %416 {strides = array<i32>} : memref<64x256xf32, #tpu.memory_space<vmem>>, vector<8x128xf32>,
    %437 = arith.index_cast %389 : i32 to index
    %c128_84 = arith.constant 128 : index
    %438 = vector.load %arg3[%437, %c128_84] : memref<64x256xf32, #tpu.memory_space<vmem>>, vector<8x128xf32>
    tpu.vector_store %arg3[%437, %c128_84], %434 {strides = array<i32>} : memref<64x256xf32, #tpu.memory_space<vmem>>, vector<8x128xf32>,
    %c8_i32_85 = arith.constant 8 : i32
    return
  }
}

</mosaic_0001>

<llo_original>
// kernel: contextual_embedding.1
$region0: #{contextual_embedding.1}
  #allocation0 [shape = 'u32[]', space=smem, size = 0x4, offset = 0x4, fixed_abs, tag = 'smem constant byte address 0x4 - core index']
  #allocation1 [shape = 'u32[72,128]{1,0:T(1,128)}', space=vmem, size = 0x9000, scoped, tag = 'internal scratch']
  #allocation2 [shape = 'bf16[64,1024]{1,0:T(8,128)(2,1)}', space=vmem, size = 0x20000, scoped, tag = 'scratch operand']
  %s0 = inlined_call_operand.vmem [shape: bf16[64,256], index: 0, kind: input, shape index: {}]
  %s1 = inlined_call_operand.vmem [shape: bf16[256,1024], index: 1, kind: input, shape index: {}]
  %s2 = inlined_call_operand.vmem [shape: bf16[256,1024], index: 2, kind: input, shape index: {}]
  %s3 = inlined_call_operand.vmem [shape: f32[64,256], index: 3, kind: output, shape index: {}]
  %s4 = sld [smem:[#allocation0]]
  $region22: #{contextual_embedding.1} parent=0
    _
  %s6 = ssub.s32 1, %s4
  %s7 = scalar_select 0, %s6, %s4
  // Predicated region
  $region2: #{contextual_embedding.1} parent=0 // pred_check
    _
  $region3: #{contextual_embedding.1} parent=0 // pred_check_branch
    %9 = sbr.rel (0) target = $region5
  $region4: #{contextual_embedding.1} parent=0 // pred_region
    _
  $region5: #{contextual_embedding.1} parent=0 // pred_fallthru
    _
  // Predicated region
  $region6: #{contextual_embedding.1} parent=0 // pred_check
    _
  $region7: #{contextual_embedding.1} parent=0 // pred_check_branch
    %11 = sbr.rel (0) target = $region9
  $region8: #{contextual_embedding.1} parent=0 // pred_region
    _
  $region9: #{contextual_embedding.1} parent=0 // pred_fallthru
    _
  // Predicated region
  $region10: #{contextual_embedding.1} parent=0 // pred_check
    _
  $region11: #{contextual_embedding.1} parent=0 // pred_check_branch
    %13 = sbr.rel (0) target = $region13
  $region12: #{contextual_embedding.1} parent=0 // pred_region
    _
  $region13: #{contextual_embedding.1} parent=0 // pred_fallthru
    _
  %v14 = vld [vmem:[%s0] sm:$0xff]
  %v15 = vld [vmem:[%s0 + $0x8] sm:$0xff]
  %v16 = vld [vmem:[%s0 + $0x10] sm:$0xff]
  %v17 = vld [vmem:[%s0 + $0x18] sm:$0xff]
  %v18 = vld [vmem:[%s0 + $0x20] sm:$0xff]
  %v19 = vld [vmem:[%s0 + $0x28] sm:$0xff]
  %v20 = vld [vmem:[%s0 + $0x30] sm:$0xff]
  %v21 = vld [vmem:[%s0 + $0x38] sm:$0xff]
  %v22 = vld [vmem:[%s1] sm:$0xff]
  %v23 = vld [vmem:[%s1 + $0x8] sm:$0xff]
  %v24 = vld [vmem:[%s1 + $0x10] sm:$0xff]
  %v25 = vld [vmem:[%s1 + $0x18] sm:$0xff]
  %v26 = vld [vmem:[%s1 + $0x20] sm:$0xff]
  %v27 = vld [vmem:[%s1 + $0x28] sm:$0xff]
  %v28 = vld [vmem:[%s1 + $0x30] sm:$0xff]
  %v29 = vld [vmem:[%s1 + $0x38] sm:$0xff]
  %v30 = vld [vmem:[%s1 + $0x40] sm:$0xff]
  %v31 = vld [vmem:[%s1 + $0x48] sm:$0xff]
  %v32 = vld [vmem:[%s1 + $0x50] sm:$0xff]
  %v33 = vld [vmem:[%s1 + $0x58] sm:$0xff]
  %v34 = vld [vmem:[%s1 + $0x60] sm:$0xff]
  %v35 = vld [vmem:[%s1 + $0x68] sm:$0xff]
  %v36 = vld [vmem:[%s1 + $0x70] sm:$0xff]
  %v37 = vld [vmem:[%s1 + $0x78] sm:$0xff]
  %v38 = vld [vmem:[%s1 + $0x80] sm:$0xff]
  %v39 = vld [vmem:[%s1 + $0x88] sm:$0xff]
  %v40 = vld [vmem:[%s1 + $0x90] sm:$0xff]
  %v41 = vld [vmem:[%s1 + $0x98] sm:$0xff]
  %v42 = vld [vmem:[%s1 + $0xa0] sm:$0xff]
  %v43 = vld [vmem:[%s1 + $0xa8] sm:$0xff]
  %v44 = vld [vmem:[%s1 + $0xb0] sm:$0xff]
  %v45 = vld [vmem:[%s1 + $0xb8] sm:$0xff]
  %v46 = vld [vmem:[%s1 + $0xc0] sm:$0xff]
  %v47 = vld [vmem:[%s1 + $0xc8] sm:$0xff]
  %v48 = vld [vmem:[%s1 + $0xd0] sm:$0xff]
  %v49 = vld [vmem:[%s1 + $0xd8] sm:$0xff]
  %v50 = vld [vmem:[%s1 + $0xe0] sm:$0xff]
  %v51 = vld [vmem:[%s1 + $0xe8] sm:$0xff]
  %v52 = vld [vmem:[%s1 + $0xf0] sm:$0xff]
  %v53 = vld [vmem:[%s1 + $0xf8] sm:$0xff]
  %v54 = vld [vmem:[%s1 + $0x100] sm:$0xff]
  %v55 = vld [vmem:[%s1 + $0x108] sm:$0xff]
  %v56 = vld [vmem:[%s1 + $0x110] sm:$0xff]
  %v57 = vld [vmem:[%s1 + $0x118] sm:$0xff]
  %v58 = vld [vmem:[%s1 + $0x120] sm:$0xff]
  %v59 = vld [vmem:[%s1 + $0x128] sm:$0xff]
  %v60 = vld [vmem:[%s1 + $0x130] sm:$0xff]
  %v61 = vld [vmem:[%s1 + $0x138] sm:$0xff]
  %v62 = vld [vmem:[%s1 + $0x140] sm:$0xff]
  %v63 = vld [vmem:[%s1 + $0x148] sm:$0xff]
  %v64 = vld [vmem:[%s1 + $0x150] sm:$0xff]
  %v65 = vld [vmem:[%s1 + $0x158] sm:$0xff]
  %v66 = vld [vmem:[%s1 + $0x160] sm:$0xff]
  %v67 = vld [vmem:[%s1 + $0x168] sm:$0xff]
  %v68 = vld [vmem:[%s1 + $0x170] sm:$0xff]
  %v69 = vld [vmem:[%s1 + $0x178] sm:$0xff]
  %v70 = vld [vmem:[%s1 + $0x180] sm:$0xff]
  %v71 = vld [vmem:[%s1 + $0x188] sm:$0xff]
  %v72 = vld [vmem:[%s1 + $0x190] sm:$0xff]
  %v73 = vld [vmem:[%s1 + $0x198] sm:$0xff]
  %v74 = vld [vmem:[%s1 + $0x1a0] sm:$0xff]
  %v75 = vld [vmem:[%s1 + $0x1a8] sm:$0xff]
  %v76 = vld [vmem:[%s1 + $0x1b0] sm:$0xff]
  %v77 = vld [vmem:[%s1 + $0x1b8] sm:$0xff]
  %v78 = vld [vmem:[%s1 + $0x1c0] sm:$0xff]
  %v79 = vld [vmem:[%s1 + $0x1c8] sm:$0xff]
  %v80 = vld [vmem:[%s1 + $0x1d0] sm:$0xff]
  %v81 = vld [vmem:[%s1 + $0x1d8] sm:$0xff]
  %v82 = vld [vmem:[%s1 + $0x1e0] sm:$0xff]
  %v83 = vld [vmem:[%s1 + $0x1e8] sm:$0xff]
  %v84 = vld [vmem:[%s1 + $0x1f0] sm:$0xff]
  %v85 = vld [vmem:[%s1 + $0x1f8] sm:$0xff]
  %v86 = vld [vmem:[%s1 + $0x200] sm:$0xff]
  %v87 = vld [vmem:[%s1 + $0x208] sm:$0xff]
  %v88 = vld [vmem:[%s1 + $0x210] sm:$0xff]
  %v89 = vld [vmem:[%s1 + $0x218] sm:$0xff]
  %v90 = vld [vmem:[%s1 + $0x220] sm:$0xff]
  %v91 = vld [vmem:[%s1 + $0x228] sm:$0xff]
  %v92 = vld [vmem:[%s1 + $0x230] sm:$0xff]
  %v93 = vld [vmem:[%s1 + $0x238] sm:$0xff]
  %v94 = vld [vmem:[%s1 + $0x240] sm:$0xff]
  %v95 = vld [vmem:[%s1 + $0x248] sm:$0xff]
  %v96 = vld [vmem:[%s1 + $0x250] sm:$0xff]
  %v97 = vld [vmem:[%s1 + $0x258] sm:$0xff]
  %v98 = vld [vmem:[%s1 + $0x260] sm:$0xff]
  %v99 = vld [vmem:[%s1 + $0x268] sm:$0xff]
  %v100 = vld [vmem:[%s1 + $0x270] sm:$0xff]
  %v101 = vld [vmem:[%s1 + $0x278] sm:$0xff]
  %v102 = vld [vmem:[%s1 + $0x280] sm:$0xff]
  %v103 = vld [vmem:[%s1 + $0x288] sm:$0xff]
  %v104 = vld [vmem:[%s1 + $0x290] sm:$0xff]
  %v105 = vld [vmem:[%s1 + $0x298] sm:$0xff]
  %v106 = vld [vmem:[%s1 + $0x2a0] sm:$0xff]
  %v107 = vld [vmem:[%s1 + $0x2a8] sm:$0xff]
  %v108 = vld [vmem:[%s1 + $0x2b0] sm:$0xff]
  %v109 = vld [vmem:[%s1 + $0x2b8] sm:$0xff]
  %v110 = vld [vmem:[%s1 + $0x2c0] sm:$0xff]
  %v111 = vld [vmem:[%s1 + $0x2c8] sm:$0xff]
  %v112 = vld [vmem:[%s1 + $0x2d0] sm:$0xff]
  %v113 = vld [vmem:[%s1 + $0x2d8] sm:$0xff]
  %v114 = vld [vmem:[%s1 + $0x2e0] sm:$0xff]
  %v115 = vld [vmem:[%s1 + $0x2e8] sm:$0xff]
  %v116 = vld [vmem:[%s1 + $0x2f0] sm:$0xff]
  %v117 = vld [vmem:[%s1 + $0x2f8] sm:$0xff]
  %v118 = vld [vmem:[%s1 + $0x300] sm:$0xff]
  %v119 = vld [vmem:[%s1 + $0x308] sm:$0xff]
  %v120 = vld [vmem:[%s1 + $0x310] sm:$0xff]
  %v121 = vld [vmem:[%s1 + $0x318] sm:$0xff]
  %v122 = vld [vmem:[%s1 + $0x320] sm:$0xff]
  %v123 = vld [vmem:[%s1 + $0x328] sm:$0xff]
  %v124 = vld [vmem:[%s1 + $0x330] sm:$0xff]
  %v125 = vld [vmem:[%s1 + $0x338] sm:$0xff]
  %v126 = vld [vmem:[%s1 + $0x340] sm:$0xff]
  %v127 = vld [vmem:[%s1 + $0x348] sm:$0xff]
  %v128 = vld [vmem:[%s1 + $0x350] sm:$0xff]
  %v129 = vld [vmem:[%s1 + $0x358] sm:$0xff]
  %v130 = vld [vmem:[%s1 + $0x360] sm:$0xff]
  %v131 = vld [vmem:[%s1 + $0x368] sm:$0xff]
  %v132 = vld [vmem:[%s1 + $0x370] sm:$0xff]
  %v133 = vld [vmem:[%s1 + $0x378] sm:$0xff]
  %v134 = vld [vmem:[%s1 + $0x380] sm:$0xff]
  %v135 = vld [vmem:[%s1 + $0x388] sm:$0xff]
  %v136 = vld [vmem:[%s1 + $0x390] sm:$0xff]
  %v137 = vld [vmem:[%s1 + $0x398] sm:$0xff]
  %v138 = vld [vmem:[%s1 + $0x3a0] sm:$0xff]
  %v139 = vld [vmem:[%s1 + $0x3a8] sm:$0xff]
  %v140 = vld [vmem:[%s1 + $0x3b0] sm:$0xff]
  %v141 = vld [vmem:[%s1 + $0x3b8] sm:$0xff]
  %v142 = vld [vmem:[%s1 + $0x3c0] sm:$0xff]
  %v143 = vld [vmem:[%s1 + $0x3c8] sm:$0xff]
  %v144 = vld [vmem:[%s1 + $0x3d0] sm:$0xff]
  %v145 = vld [vmem:[%s1 + $0x3d8] sm:$0xff]
  %v146 = vld [vmem:[%s1 + $0x3e0] sm:$0xff]
  %v147 = vld [vmem:[%s1 + $0x3e8] sm:$0xff]
  %v148 = vld [vmem:[%s1 + $0x3f0] sm:$0xff]
  %v149 = vld [vmem:[%s1 + $0x3f8] sm:$0xff]
  %v158 = vunpack.c.l.b16 %v14
  %v159 = vunpack.c.h.b16 %v14
  %v160 = vunpack.c.l.b16 %v15
  %v161 = vunpack.c.h.b16 %v15
  %v162 = vunpack.c.l.b16 %v16
  %v163 = vunpack.c.h.b16 %v16
  %v164 = vunpack.c.l.b16 %v17
  %v165 = vunpack.c.h.b16 %v17
  %v166 = vunpack.c.l.b16 %v18
  %v167 = vunpack.c.h.b16 %v18
  %v168 = vunpack.c.l.b16 %v19
  %v169 = vunpack.c.h.b16 %v19
  %v170 = vunpack.c.l.b16 %v20
  %v171 = vunpack.c.h.b16 %v20
  %v172 = vunpack.c.l.b16 %v21
  %v173 = vunpack.c.h.b16 %v21
  %v174 = vpack.c.b16 %v160, %v158
  %v175 = vpack.c.b16 %v161, %v159
  %v176 = vpack.c.b16 %v164, %v162
  %v177 = vpack.c.b16 %v165, %v163
  %v178 = vpack.c.b16 %v168, %v166
  %v179 = vpack.c.b16 %v169, %v167
  %v180 = vpack.c.b16 %v172, %v170
  %v181 = vpack.c.b16 %v173, %v171
  %v318 = vunpack.c.l.b16 %v22
  %v319 = vunpack.c.h.b16 %v22
  %v320 = vunpack.c.l.b16 %v23
  %v321 = vunpack.c.h.b16 %v23
  %v322 = vunpack.c.l.b16 %v24
  %v323 = vunpack.c.h.b16 %v24
  %v324 = vunpack.c.l.b16 %v25
  %v325 = vunpack.c.h.b16 %v25
  %v326 = vunpack.c.l.b16 %v26
  %v327 = vunpack.c.h.b16 %v26
  %v328 = vunpack.c.l.b16 %v27
  %v329 = vunpack.c.h.b16 %v27
  %v330 = vunpack.c.l.b16 %v28
  %v331 = vunpack.c.h.b16 %v28
  %v332 = vunpack.c.l.b16 %v29
  %v333 = vunpack.c.h.b16 %v29
  %v334 = vunpack.c.l.b16 %v30
  %v335 = vunpack.c.h.b16 %v30
  %v336 = vunpack.c.l.b16 %v31
  %v337 = vunpack.c.h.b16 %v31
  %v338 = vunpack.c.l.b16 %v32
  %v339 = vunpack.c.h.b16 %v32
  %v340 = vunpack.c.l.b16 %v33
  %v341 = vunpack.c.h.b16 %v33
  %v342 = vunpack.c.l.b16 %v34
  %v343 = vunpack.c.h.b16 %v34
  %v344 = vunpack.c.l.b16 %v35
  %v345 = vunpack.c.h.b16 %v35
  %v346 = vunpack.c.l.b16 %v36
  %v347 = vunpack.c.h.b16 %v36
  %v348 = vunpack.c.l.b16 %v37
  %v349 = vunpack.c.h.b16 %v37
  %v350 = vunpack.c.l.b16 %v38
  %v351 = vunpack.c.h.b16 %v38
  %v352 = vunpack.c.l.b16 %v39
  %v353 = vunpack.c.h.b16 %v39
  %v354 = vunpack.c.l.b16 %v40
  %v355 = vunpack.c.h.b16 %v40
  %v356 = vunpack.c.l.b16 %v41
  %v357 = vunpack.c.h.b16 %v41
  %v358 = vunpack.c.l.b16 %v42
  %v359 = vunpack.c.h.b16 %v42
  %v360 = vunpack.c.l.b16 %v43
  %v361 = vunpack.c.h.b16 %v43
  %v362 = vunpack.c.l.b16 %v44
  %v363 = vunpack.c.h.b16 %v44
  %v364 = vunpack.c.l.b16 %v45
  %v365 = vunpack.c.h.b16 %v45
  %v366 = vunpack.c.l.b16 %v46
  %v367 = vunpack.c.h.b16 %v46
  %v368 = vunpack.c.l.b16 %v47
  %v369 = vunpack.c.h.b16 %v47
  %v370 = vunpack.c.l.b16 %v48
  %v371 = vunpack.c.h.b16 %v48
  %v372 = vunpack.c.l.b16 %v49
  %v373 = vunpack.c.h.b16 %v49
  %v374 = vunpack.c.l.b16 %v50
  %v375 = vunpack.c.h.b16 %v50
  %v376 = vunpack.c.l.b16 %v51
  %v377 = vunpack.c.h.b16 %v51
  %v378 = vunpack.c.l.b16 %v52
  %v379 = vunpack.c.h.b16 %v52
  %v380 = vunpack.c.l.b16 %v53
  %v381 = vunpack.c.h.b16 %v53
  %v382 = vunpack.c.l.b16 %v54
  %v383 = vunpack.c.h.b16 %v54
  %v384 = vunpack.c.l.b16 %v55
  %v385 = vunpack.c.h.b16 %v55
  %v386 = vunpack.c.l.b16 %v56
  %v387 = vunpack.c.h.b16 %v56
  %v388 = vunpack.c.l.b16 %v57
  %v389 = vunpack.c.h.b16 %v57
  %v390 = vunpack.c.l.b16 %v58
  %v391 = vunpack.c.h.b16 %v58
  %v392 = vunpack.c.l.b16 %v59
  %v393 = vunpack.c.h.b16 %v59
  %v394 = vunpack.c.l.b16 %v60
  %v395 = vunpack.c.h.b16 %v60
  %v396 = vunpack.c.l.b16 %v61
  %v397 = vunpack.c.h.b16 %v61
  %v398 = vunpack.c.l.b16 %v62
  %v399 = vunpack.c.h.b16 %v62
  %v400 = vunpack.c.l.b16 %v63
  %v401 = vunpack.c.h.b16 %v63
  %v402 = vunpack.c.l.b16 %v64
  %v403 = vunpack.c.h.b16 %v64
  %v404 = vunpack.c.l.b16 %v65
  %v405 = vunpack.c.h.b16 %v65
  %v406 = vunpack.c.l.b16 %v66
  %v407 = vunpack.c.h.b16 %v66
  %v408 = vunpack.c.l.b16 %v67
  %v409 = vunpack.c.h.b16 %v67
  %v410 = vunpack.c.l.b16 %v68
  %v411 = vunpack.c.h.b16 %v68
  %v412 = vunpack.c.l.b16 %v69
  %v413 = vunpack.c.h.b16 %v69
  %v414 = vunpack.c.l.b16 %v70
  %v415 = vunpack.c.h.b16 %v70
  %v416 = vunpack.c.l.b16 %v71
  %v417 = vunpack.c.h.b16 %v71
  %v418 = vunpack.c.l.b16 %v72
  %v419 = vunpack.c.h.b16 %v72
  %v420 = vunpack.c.l.b16 %v73
  %v421 = vunpack.c.h.b16 %v73
  %v422 = vunpack.c.l.b16 %v74
  %v423 = vunpack.c.h.b16 %v74
  %v424 = vunpack.c.l.b16 %v75
  %v425 = vunpack.c.h.b16 %v75
  %v426 = vunpack.c.l.b16 %v76
  %v427 = vunpack.c.h.b16 %v76
  %v428 = vunpack.c.l.b16 %v77
  %v429 = vunpack.c.h.b16 %v77
  %v430 = vunpack.c.l.b16 %v78
  %v431 = vunpack.c.h.b16 %v78
  %v432 = vunpack.c.l.b16 %v79
  %v433 = vunpack.c.h.b16 %v79
  %v434 = vunpack.c.l.b16 %v80
  %v435 = vunpack.c.h.b16 %v80
  %v436 = vunpack.c.l.b16 %v81
  %v437 = vunpack.c.h.b16 %v81
  %v438 = vunpack.c.l.b16 %v82
  %v439 = vunpack.c.h.b16 %v82
  %v440 = vunpack.c.l.b16 %v83
  %v441 = vunpack.c.h.b16 %v83
  %v442 = vunpack.c.l.b16 %v84
  %v443 = vunpack.c.h.b16 %v84
  %v444 = vunpack.c.l.b16 %v85
  %v445 = vunpack.c.h.b16 %v85
  %v446 = vunpack.c.l.b16 %v86
  %v447 = vunpack.c.h.b16 %v86
  %v448 = vunpack.c.l.b16 %v87
  %v449 = vunpack.c.h.b16 %v87
  %v450 = vunpack.c.l.b16 %v88
  %v451 = vunpack.c.h.b16 %v88
  %v452 = vunpack.c.l.b16 %v89
  %v453 = vunpack.c.h.b16 %v89
  %v454 = vunpack.c.l.b16 %v90
  %v455 = vunpack.c.h.b16 %v90
  %v456 = vunpack.c.l.b16 %v91
  %v457 = vunpack.c.h.b16 %v91
  %v458 = vunpack.c.l.b16 %v92
  %v459 = vunpack.c.h.b16 %v92
  %v460 = vunpack.c.l.b16 %v93
  %v461 = vunpack.c.h.b16 %v93
  %v462 = vunpack.c.l.b16 %v94
  %v463 = vunpack.c.h.b16 %v94
  %v464 = vunpack.c.l.b16 %v95
  %v465 = vunpack.c.h.b16 %v95
  %v466 = vunpack.c.l.b16 %v96
  %v467 = vunpack.c.h.b16 %v96
  %v468 = vunpack.c.l.b16 %v97
  %v469 = vunpack.c.h.b16 %v97
  %v470 = vunpack.c.l.b16 %v98
  %v471 = vunpack.c.h.b16 %v98
  %v472 = vunpack.c.l.b16 %v99
  %v473 = vunpack.c.h.b16 %v99
  %v474 = vunpack.c.l.b16 %v100
  %v475 = vunpack.c.h.b16 %v100
  %v476 = vunpack.c.l.b16 %v101
  %v477 = vunpack.c.h.b16 %v101
  %v478 = vunpack.c.l.b16 %v102
  %v479 = vunpack.c.h.b16 %v102
  %v480 = vunpack.c.l.b16 %v103
  %v481 = vunpack.c.h.b16 %v103
  %v482 = vunpack.c.l.b16 %v104
  %v483 = vunpack.c.h.b16 %v104
  %v484 = vunpack.c.l.b16 %v105
  %v485 = vunpack.c.h.b16 %v105
  %v486 = vunpack.c.l.b16 %v106
  %v487 = vunpack.c.h.b16 %v106
  %v488 = vunpack.c.l.b16 %v107
  %v489 = vunpack.c.h.b16 %v107
  %v490 = vunpack.c.l.b16 %v108
  %v491 = vunpack.c.h.b16 %v108
  %v492 = vunpack.c.l.b16 %v109
  %v493 = vunpack.c.h.b16 %v109
  %v494 = vunpack.c.l.b16 %v110
  %v495 = vunpack.c.h.b16 %v110
  %v496 = vunpack.c.l.b16 %v111
  %v497 = vunpack.c.h.b16 %v111
  %v498 = vunpack.c.l.b16 %v112
  %v499 = vunpack.c.h.b16 %v112
  %v500 = vunpack.c.l.b16 %v113
  %v501 = vunpack.c.h.b16 %v113
  %v502 = vunpack.c.l.b16 %v114
  %v503 = vunpack.c.h.b16 %v114
  %v504 = vunpack.c.l.b16 %v115
  %v505 = vunpack.c.h.b16 %v115
  %v506 = vunpack.c.l.b16 %v116
  %v507 = vunpack.c.h.b16 %v116
  %v508 = vunpack.c.l.b16 %v117
  %v509 = vunpack.c.h.b16 %v117
  %v510 = vunpack.c.l.b16 %v118
  %v511 = vunpack.c.h.b16 %v118
  %v512 = vunpack.c.l.b16 %v119
  %v513 = vunpack.c.h.b16 %v119
  %v514 = vunpack.c.l.b16 %v120
  %v515 = vunpack.c.h.b16 %v120
  %v516 = vunpack.c.l.b16 %v121
  %v517 = vunpack.c.h.b16 %v121
  %v518 = vunpack.c.l.b16 %v122
  %v519 = vunpack.c.h.b16 %v122
  %v520 = vunpack.c.l.b16 %v123
  %v521 = vunpack.c.h.b16 %v123
  %v522 = vunpack.c.l.b16 %v124
  %v523 = vunpack.c.h.b16 %v124
  %v524 = vunpack.c.l.b16 %v125
  %v525 = vunpack.c.h.b16 %v125
  %v526 = vunpack.c.l.b16 %v126
  %v527 = vunpack.c.h.b16 %v126
  %v528 = vunpack.c.l.b16 %v127
  %v529 = vunpack.c.h.b16 %v127
  %v530 = vunpack.c.l.b16 %v128
  %v531 = vunpack.c.h.b16 %v128
  %v532 = vunpack.c.l.b16 %v129
  %v533 = vunpack.c.h.b16 %v129
  %v534 = vunpack.c.l.b16 %v130
  %v535 = vunpack.c.h.b16 %v130
  %v536 = vunpack.c.l.b16 %v131
  %v537 = vunpack.c.h.b16 %v131
  %v538 = vunpack.c.l.b16 %v132
  %v539 = vunpack.c.h.b16 %v132
  %v540 = vunpack.c.l.b16 %v133
  %v541 = vunpack.c.h.b16 %v133
  %v542 = vunpack.c.l.b16 %v134
  %v543 = vunpack.c.h.b16 %v134
  %v544 = vunpack.c.l.b16 %v135
  %v545 = vunpack.c.h.b16 %v135
  %v546 = vunpack.c.l.b16 %v136
  %v547 = vunpack.c.h.b16 %v136
  %v548 = vunpack.c.l.b16 %v137
  %v549 = vunpack.c.h.b16 %v137
  %v550 = vunpack.c.l.b16 %v138
  %v551 = vunpack.c.h.b16 %v138
  %v552 = vunpack.c.l.b16 %v139
  %v553 = vunpack.c.h.b16 %v139
  %v554 = vunpack.c.l.b16 %v140
  %v555 = vunpack.c.h.b16 %v140
  %v556 = vunpack.c.l.b16 %v141
  %v557 = vunpack.c.h.b16 %v141
  %v558 = vunpack.c.l.b16 %v142
  %v559 = vunpack.c.h.b16 %v142
  %v560 = vunpack.c.l.b16 %v143
  %v561 = vunpack.c.h.b16 %v143
  %v562 = vunpack.c.l.b16 %v144
  %v563 = vunpack.c.h.b16 %v144
  %v564 = vunpack.c.l.b16 %v145
  %v565 = vunpack.c.h.b16 %v145
  %v566 = vunpack.c.l.b16 %v146
  %v567 = vunpack.c.h.b16 %v146
  %v568 = vunpack.c.l.b16 %v147
  %v569 = vunpack.c.h.b16 %v147
  %v570 = vunpack.c.l.b16 %v148
  %v571 = vunpack.c.h.b16 %v148
  %v572 = vunpack.c.l.b16 %v149
  %v573 = vunpack.c.h.b16 %v149
  %v574 = vpack.c.b16 %v326, %v318
  %v575 = vpack.c.b16 %v327, %v319
  %v576 = vpack.c.b16 %v328, %v320
  %v577 = vpack.c.b16 %v329, %v321
  %v578 = vpack.c.b16 %v330, %v322
  %v579 = vpack.c.b16 %v331, %v323
  %v580 = vpack.c.b16 %v332, %v324
  %v581 = vpack.c.b16 %v333, %v325
  %v582 = vpack.c.b16 %v342, %v334
  %v583 = vpack.c.b16 %v343, %v335
  %v584 = vpack.c.b16 %v344, %v336
  %v585 = vpack.c.b16 %v345, %v337
  %v586 = vpack.c.b16 %v346, %v338
  %v587 = vpack.c.b16 %v347, %v339
  %v588 = vpack.c.b16 %v348, %v340
  %v589 = vpack.c.b16 %v349, %v341
  %v590 = vpack.c.b16 %v358, %v350
  %v591 = vpack.c.b16 %v359, %v351
  %v592 = vpack.c.b16 %v360, %v352
  %v593 = vpack.c.b16 %v361, %v353
  %v594 = vpack.c.b16 %v362, %v354
  %v595 = vpack.c.b16 %v363, %v355
  %v596 = vpack.c.b16 %v364, %v356
  %v597 = vpack.c.b16 %v365, %v357
  %v598 = vpack.c.b16 %v374, %v366
  %v599 = vpack.c.b16 %v375, %v367
  %v600 = vpack.c.b16 %v376, %v368
  %v601 = vpack.c.b16 %v377, %v369
  %v602 = vpack.c.b16 %v378, %v370
  %v603 = vpack.c.b16 %v379, %v371
  %v604 = vpack.c.b16 %v380, %v372
  %v605 = vpack.c.b16 %v381, %v373
  %v606 = vpack.c.b16 %v390, %v382
  %v607 = vpack.c.b16 %v391, %v383
  %v608 = vpack.c.b16 %v392, %v384
  %v609 = vpack.c.b16 %v393, %v385
  %v610 = vpack.c.b16 %v394, %v386
  %v611 = vpack.c.b16 %v395, %v387
  %v612 = vpack.c.b16 %v396, %v388
  %v613 = vpack.c.b16 %v397, %v389
  %v614 = vpack.c.b16 %v406, %v398
  %v615 = vpack.c.b16 %v407, %v399
  %v616 = vpack.c.b16 %v408, %v400
  %v617 = vpack.c.b16 %v409, %v401
  %v618 = vpack.c.b16 %v410, %v402
  %v619 = vpack.c.b16 %v411, %v403
  %v620 = vpack.c.b16 %v412, %v404
  %v621 = vpack.c.b16 %v413, %v405
  %v622 = vpack.c.b16 %v422, %v414
  %v623 = vpack.c.b16 %v423, %v415
  %v624 = vpack.c.b16 %v424, %v416
  %v625 = vpack.c.b16 %v425, %v417
  %v626 = vpack.c.b16 %v426, %v418
  %v627 = vpack.c.b16 %v427, %v419
  %v628 = vpack.c.b16 %v428, %v420
  %v629 = vpack.c.b16 %v429, %v421
  %v630 = vpack.c.b16 %v438, %v430
  %v631 = vpack.c.b16 %v439, %v431
  %v632 = vpack.c.b16 %v440, %v432
  %v633 = vpack.c.b16 %v441, %v433
  %v634 = vpack.c.b16 %v442, %v434
  %v635 = vpack.c.b16 %v443, %v435
  %v636 = vpack.c.b16 %v444, %v436
  %v637 = vpack.c.b16 %v445, %v437
  %v638 = vpack.c.b16 %v454, %v446
  %v639 = vpack.c.b16 %v455, %v447
  %v640 = vpack.c.b16 %v456, %v448
  %v641 = vpack.c.b16 %v457, %v449
  %v642 = vpack.c.b16 %v458, %v450
  %v643 = vpack.c.b16 %v459, %v451
  %v644 = vpack.c.b16 %v460, %v452
  %v645 = vpack.c.b16 %v461, %v453
  %v646 = vpack.c.b16 %v470, %v462
  %v647 = vpack.c.b16 %v471, %v463
  %v648 = vpack.c.b16 %v472, %v464
  %v649 = vpack.c.b16 %v473, %v465
  %v650 = vpack.c.b16 %v474, %v466
  %v651 = vpack.c.b16 %v475, %v467
  %v652 = vpack.c.b16 %v476, %v468
  %v653 = vpack.c.b16 %v477, %v469
  %v654 = vpack.c.b16 %v486, %v478
  %v655 = vpack.c.b16 %v487, %v479
  %v656 = vpack.c.b16 %v488, %v480
  %v657 = vpack.c.b16 %v489, %v481
  %v658 = vpack.c.b16 %v490, %v482
  %v659 = vpack.c.b16 %v491, %v483
  %v660 = vpack.c.b16 %v492, %v484
  %v661 = vpack.c.b16 %v493, %v485
  %v662 = vpack.c.b16 %v502, %v494
  %v663 = vpack.c.b16 %v503, %v495
  %v664 = vpack.c.b16 %v504, %v496
  %v665 = vpack.c.b16 %v505, %v497
  %v666 = vpack.c.b16 %v506, %v498
  %v667 = vpack.c.b16 %v507, %v499
  %v668 = vpack.c.b16 %v508, %v500
  %v669 = vpack.c.b16 %v509, %v501
  %v670 = vpack.c.b16 %v518, %v510
  %v671 = vpack.c.b16 %v519, %v511
  %v672 = vpack.c.b16 %v520, %v512
  %v673 = vpack.c.b16 %v521, %v513
  %v674 = vpack.c.b16 %v522, %v514
  %v675 = vpack.c.b16 %v523, %v515
  %v676 = vpack.c.b16 %v524, %v516
  %v677 = vpack.c.b16 %v525, %v517
  %v678 = vpack.c.b16 %v534, %v526
  %v679 = vpack.c.b16 %v535, %v527
  %v680 = vpack.c.b16 %v536, %v528
  %v681 = vpack.c.b16 %v537, %v529
  %v682 = vpack.c.b16 %v538, %v530
  %v683 = vpack.c.b16 %v539, %v531
  %v684 = vpack.c.b16 %v540, %v532
  %v685 = vpack.c.b16 %v541, %v533
  %v686 = vpack.c.b16 %v550, %v542
  %v687 = vpack.c.b16 %v551, %v543
  %v688 = vpack.c.b16 %v552, %v544
  %v689 = vpack.c.b16 %v553, %v545
  %v690 = vpack.c.b16 %v554, %v546
  %v691 = vpack.c.b16 %v555, %v547
  %v692 = vpack.c.b16 %v556, %v548
  %v693 = vpack.c.b16 %v557, %v549
  %v694 = vpack.c.b16 %v566, %v558
  %v695 = vpack.c.b16 %v567, %v559
  %v696 = vpack.c.b16 %v568, %v560
  %v697 = vpack.c.b16 %v569, %v561
  %v698 = vpack.c.b16 %v570, %v562
  %v699 = vpack.c.b16 %v571, %v563
  %v700 = vpack.c.b16 %v572, %v564
  %v701 = vpack.c.b16 %v573, %v565
  %830 = vmatpush.bf16.msra.mxu0 %v630
  %831 = vmatpush.bf16.msra.mxu0 %v622
  %832 = vmatpush.bf16.msra.mxu0 %v614
  %833 = vmatpush.bf16.msra.mxu0 %v606
  %834 = vmatpush.bf16.msra.mxu0 %v598
  %835 = vmatpush.bf16.msra.mxu0 %v590
  %836 = vmatpush.bf16.msra.mxu0 %v582
  %837 = vmatpush.bf16.msra.mxu0 %v574
  %838 = vmatmul.bf16.gmra.mxu0 %v174
  %v839 = vpop.f32.mrf.mxu0
  %v840 = vadd.f32 0.0, %v839
  %v841 = vpop.f32.mrf.mxu0
  %v842 = vadd.f32 0.0, %v841
  %843 = vmatmul.bf16.gmra.mxu0 %v176
  %v844 = vpop.f32.mrf.mxu0
  %v845 = vadd.f32 0.0, %v844
  %v846 = vpop.f32.mrf.mxu0
  %v847 = vadd.f32 0.0, %v846
  %848 = vmatmul.bf16.gmra.mxu0 %v178
  %v849 = vpop.f32.mrf.mxu0
  %v850 = vadd.f32 0.0, %v849
  %v851 = vpop.f32.mrf.mxu0
  %v852 = vadd.f32 0.0, %v851
  %853 = vmatmul.bf16.gmra.mxu0 %v180
  %v854 = vpop.f32.mrf.mxu0
  %v855 = vadd.f32 0.0, %v854
  %v856 = vpop.f32.mrf.mxu0
  %v857 = vadd.f32 0.0, %v856
  %858 = vdwg.mxu0
  %859 = vmatpush.bf16.msra.mxu0 %v694
  %860 = vmatpush.bf16.msra.mxu0 %v686
  %861 = vmatpush.bf16.msra.mxu0 %v678
  %862 = vmatpush.bf16.msra.mxu0 %v670
  %863 = vmatpush.bf16.msra.mxu0 %v662
  %864 = vmatpush.bf16.msra.mxu0 %v654
  %865 = vmatpush.bf16.msra.mxu0 %v646
  %866 = vmatpush.bf16.msra.mxu0 %v638
  %867 = vmatmul.bf16.gmra.mxu0 %v175
  %v868 = vpop.f32.mrf.mxu0
  %v869 = vadd.f32 %v840, %v868
  %v870 = vpop.f32.mrf.mxu0
  %v871 = vadd.f32 %v842, %v870
  %872 = vmatmul.bf16.gmra.mxu0 %v177
  %v873 = vpop.f32.mrf.mxu0
  %v874 = vadd.f32 %v845, %v873
  %v875 = vpop.f32.mrf.mxu0
  %v876 = vadd.f32 %v847, %v875
  %877 = vmatmul.bf16.gmra.mxu0 %v179
  %v878 = vpop.f32.mrf.mxu0
  %v879 = vadd.f32 %v850, %v878
  %v880 = vpop.f32.mrf.mxu0
  %v881 = vadd.f32 %v852, %v880
  %882 = vmatmul.bf16.gmra.mxu0 %v181
  %v883 = vpop.f32.mrf.mxu0
  %v884 = vadd.f32 %v855, %v883
  %v885 = vpop.f32.mrf.mxu0
  %v886 = vadd.f32 %v857, %v885
  %887 = vdwg.mxu0
  %888 = vmatpush.bf16.msra.mxu0 %v631
  %889 = vmatpush.bf16.msra.mxu0 %v623
  %890 = vmatpush.bf16.msra.mxu0 %v615
  %891 = vmatpush.bf16.msra.mxu0 %v607
  %892 = vmatpush.bf16.msra.mxu0 %v599
  %893 = vmatpush.bf16.msra.mxu0 %v591
  %894 = vmatpush.bf16.msra.mxu0 %v583
  %895 = vmatpush.bf16.msra.mxu0 %v575
  %896 = vmatmul.bf16.gmra.mxu0 %v174
  %v897 = vpop.f32.mrf.mxu0
  %v898 = vadd.f32 0.0, %v897
  %v899 = vpop.f32.mrf.mxu0
  %v900 = vadd.f32 0.0, %v899
  %901 = vmatmul.bf16.gmra.mxu0 %v176
  %v902 = vpop.f32.mrf.mxu0
  %v903 = vadd.f32 0.0, %v902
  %v904 = vpop.f32.mrf.mxu0
  %v905 = vadd.f32 0.0, %v904
  %906 = vmatmul.bf16.gmra.mxu0 %v178
  %v907 = vpop.f32.mrf.mxu0
  %v908 = vadd.f32 0.0, %v907
  %v909 = vpop.f32.mrf.mxu0
  %v910 = vadd.f32 0.0, %v909
  %911 = vmatmul.bf16.gmra.mxu0 %v180
  %v912 = vpop.f32.mrf.mxu0
  %v913 = vadd.f32 0.0, %v912
  %v914 = vpop.f32.mrf.mxu0
  %v915 = vadd.f32 0.0, %v914
  %916 = vdwg.mxu0
  %917 = vmatpush.bf16.msra.mxu0 %v695
  %918 = vmatpush.bf16.msra.mxu0 %v687
  %919 = vmatpush.bf16.msra.mxu0 %v679
  %920 = vmatpush.bf16.msra.mxu0 %v671
  %921 = vmatpush.bf16.msra.mxu0 %v663
  %922 = vmatpush.bf16.msra.mxu0 %v655
  %923 = vmatpush.bf16.msra.mxu0 %v647
  %924 = vmatpush.bf16.msra.mxu0 %v639
  %925 = vmatmul.bf16.gmra.mxu0 %v175
  %v926 = vpop.f32.mrf.mxu0
  %v927 = vadd.f32 %v898, %v926
  %v928 = vpop.f32.mrf.mxu0
  %v929 = vadd.f32 %v900, %v928
  %930 = vmatmul.bf16.gmra.mxu0 %v177
  %v931 = vpop.f32.mrf.mxu0
  %v932 = vadd.f32 %v903, %v931
  %v933 = vpop.f32.mrf.mxu0
  %v934 = vadd.f32 %v905, %v933
  %935 = vmatmul.bf16.gmra.mxu0 %v179
  %v936 = vpop.f32.mrf.mxu0
  %v937 = vadd.f32 %v908, %v936
  %v938 = vpop.f32.mrf.mxu0
  %v939 = vadd.f32 %v910, %v938
  %940 = vmatmul.bf16.gmra.mxu0 %v181
  %v941 = vpop.f32.mrf.mxu0
  %v942 = vadd.f32 %v913, %v941
  %v943 = vpop.f32.mrf.mxu0
  %v944 = vadd.f32 %v915, %v943
  %945 = vdwg.mxu0
  %946 = vmatpush.bf16.msra.mxu0 %v632
  %947 = vmatpush.bf16.msra.mxu0 %v624
  %948 = vmatpush.bf16.msra.mxu0 %v616
  %949 = vmatpush.bf16.msra.mxu0 %v608
  %950 = vmatpush.bf16.msra.mxu0 %v600
  %951 = vmatpush.bf16.msra.mxu0 %v592
  %952 = vmatpush.bf16.msra.mxu0 %v584
  %953 = vmatpush.bf16.msra.mxu0 %v576
  %954 = vmatmul.bf16.gmra.mxu0 %v174
  %v955 = vpop.f32.mrf.mxu0
  %v956 = vadd.f32 0.0, %v955
  %v957 = vpop.f32.mrf.mxu0
  %v958 = vadd.f32 0.0, %v957
  %959 = vmatmul.bf16.gmra.mxu0 %v176
  %v960 = vpop.f32.mrf.mxu0
  %v961 = vadd.f32 0.0, %v960
  %v962 = vpop.f32.mrf.mxu0
  %v963 = vadd.f32 0.0, %v962
  %964 = vmatmul.bf16.gmra.mxu0 %v178
  %v965 = vpop.f32.mrf.mxu0
  %v966 = vadd.f32 0.0, %v965
  %v967 = vpop.f32.mrf.mxu0
  %v968 = vadd.f32 0.0, %v967
  %969 = vmatmul.bf16.gmra.mxu0 %v180
  %v970 = vpop.f32.mrf.mxu0
  %v971 = vadd.f32 0.0, %v970
  %v972 = vpop.f32.mrf.mxu0
  %v973 = vadd.f32 0.0, %v972
  %974 = vdwg.mxu0
  %975 = vmatpush.bf16.msra.mxu0 %v696
  %976 = vmatpush.bf16.msra.mxu0 %v688
  %977 = vmatpush.bf16.msra.mxu0 %v680
  %978 = vmatpush.bf16.msra.mxu0 %v672
  %979 = vmatpush.bf16.msra.mxu0 %v664
  %980 = vmatpush.bf16.msra.mxu0 %v656
  %981 = vmatpush.bf16.msra.mxu0 %v648
  %982 = vmatpush.bf16.msra.mxu0 %v640
  %983 = vmatmul.bf16.gmra.mxu0 %v175
  %v984 = vpop.f32.mrf.mxu0
  %v985 = vadd.f32 %v956, %v984
  %v986 = vpop.f32.mrf.mxu0
  %v987 = vadd.f32 %v958, %v986
  %988 = vmatmul.bf16.gmra.mxu0 %v177
  %v989 = vpop.f32.mrf.mxu0
  %v990 = vadd.f32 %v961, %v989
  %v991 = vpop.f32.mrf.mxu0
  %v992 = vadd.f32 %v963, %v991
  %993 = vmatmul.bf16.gmra.mxu0 %v179
  %v994 = vpop.f32.mrf.mxu0
  %v995 = vadd.f32 %v966, %v994
  %v996 = vpop.f32.mrf.mxu0
  %v997 = vadd.f32 %v968, %v996
  %998 = vmatmul.bf16.gmra.mxu0 %v181
  %v999 = vpop.f32.mrf.mxu0
  %v1000 = vadd.f32 %v971, %v999
  %v1001 = vpop.f32.mrf.mxu0
  %v1002 = vadd.f32 %v973, %v1001
  %1003 = vdwg.mxu0
  %1004 = vmatpush.bf16.msra.mxu0 %v633
  %1005 = vmatpush.bf16.msra.mxu0 %v625
  %1006 = vmatpush.bf16.msra.mxu0 %v617
  %1007 = vmatpush.bf16.msra.mxu0 %v609
  %1008 = vmatpush.bf16.msra.mxu0 %v601
  %1009 = vmatpush.bf16.msra.mxu0 %v593
  %1010 = vmatpush.bf16.msra.mxu0 %v585
  %1011 = vmatpush.bf16.msra.mxu0 %v577
  %1012 = vmatmul.bf16.gmra.mxu0 %v174
  %v1013 = vpop.f32.mrf.mxu0
  %v1014 = vadd.f32 0.0, %v1013
  %v1015 = vpop.f32.mrf.mxu0
  %v1016 = vadd.f32 0.0, %v1015
  %1017 = vmatmul.bf16.gmra.mxu0 %v176
  %v1018 = vpop.f32.mrf.mxu0
  %v1019 = vadd.f32 0.0, %v1018
  %v1020 = vpop.f32.mrf.mxu0
  %v1021 = vadd.f32 0.0, %v1020
  %1022 = vmatmul.bf16.gmra.mxu0 %v178
  %v1023 = vpop.f32.mrf.mxu0
  %v1024 = vadd.f32 0.0, %v1023
  %v1025 = vpop.f32.mrf.mxu0
  %v1026 = vadd.f32 0.0, %v1025
  %1027 = vmatmul.bf16.gmra.mxu0 %v180
  %v1028 = vpop.f32.mrf.mxu0
  %v1029 = vadd.f32 0.0, %v1028
  %v1030 = vpop.f32.mrf.mxu0
  %v1031 = vadd.f32 0.0, %v1030
  %1032 = vdwg.mxu0
  %1033 = vmatpush.bf16.msra.mxu0 %v697
  %1034 = vmatpush.bf16.msra.mxu0 %v689
  %1035 = vmatpush.bf16.msra.mxu0 %v681
  %1036 = vmatpush.bf16.msra.mxu0 %v673
  %1037 = vmatpush.bf16.msra.mxu0 %v665
  %1038 = vmatpush.bf16.msra.mxu0 %v657
  %1039 = vmatpush.bf16.msra.mxu0 %v649
  %1040 = vmatpush.bf16.msra.mxu0 %v641
  %1041 = vmatmul.bf16.gmra.mxu0 %v175
  %v1042 = vpop.f32.mrf.mxu0
  %v1043 = vadd.f32 %v1014, %v1042
  %v1044 = vpop.f32.mrf.mxu0
  %v1045 = vadd.f32 %v1016, %v1044
  %1046 = vmatmul.bf16.gmra.mxu0 %v177
  %v1047 = vpop.f32.mrf.mxu0
  %v1048 = vadd.f32 %v1019, %v1047
  %v1049 = vpop.f32.mrf.mxu0
  %v1050 = vadd.f32 %v1021, %v1049
  %1051 = vmatmul.bf16.gmra.mxu0 %v179
  %v1052 = vpop.f32.mrf.mxu0
  %v1053 = vadd.f32 %v1024, %v1052
  %v1054 = vpop.f32.mrf.mxu0
  %v1055 = vadd.f32 %v1026, %v1054
  %1056 = vmatmul.bf16.gmra.mxu0 %v181
  %v1057 = vpop.f32.mrf.mxu0
  %v1058 = vadd.f32 %v1029, %v1057
  %v1059 = vpop.f32.mrf.mxu0
  %v1060 = vadd.f32 %v1031, %v1059
  %1061 = vdwg.mxu0
  %1062 = vmatpush.bf16.msra.mxu0 %v634
  %1063 = vmatpush.bf16.msra.mxu0 %v626
  %1064 = vmatpush.bf16.msra.mxu0 %v618
  %1065 = vmatpush.bf16.msra.mxu0 %v610
  %1066 = vmatpush.bf16.msra.mxu0 %v602
  %1067 = vmatpush.bf16.msra.mxu0 %v594
  %1068 = vmatpush.bf16.msra.mxu0 %v586
  %1069 = vmatpush.bf16.msra.mxu0 %v578
  %1070 = vmatmul.bf16.gmra.mxu0 %v174
  %v1071 = vpop.f32.mrf.mxu0
  %v1072 = vadd.f32 0.0, %v1071
  %v1073 = vpop.f32.mrf.mxu0
  %v1074 = vadd.f32 0.0, %v1073
  %1075 = vmatmul.bf16.gmra.mxu0 %v176
  %v1076 = vpop.f32.mrf.mxu0
  %v1077 = vadd.f32 0.0, %v1076
  %v1078 = vpop.f32.mrf.mxu0
  %v1079 = vadd.f32 0.0, %v1078
  %1080 = vmatmul.bf16.gmra.mxu0 %v178
  %v1081 = vpop.f32.mrf.mxu0
  %v1082 = vadd.f32 0.0, %v1081
  %v1083 = vpop.f32.mrf.mxu0
  %v1084 = vadd.f32 0.0, %v1083
  %1085 = vmatmul.bf16.gmra.mxu0 %v180
  %v1086 = vpop.f32.mrf.mxu0
  %v1087 = vadd.f32 0.0, %v1086
  %v1088 = vpop.f32.mrf.mxu0
  %v1089 = vadd.f32 0.0, %v1088
  %1090 = vdwg.mxu0
  %1091 = vmatpush.bf16.msra.mxu0 %v698
  %1092 = vmatpush.bf16.msra.mxu0 %v690
  %1093 = vmatpush.bf16.msra.mxu0 %v682
  %1094 = vmatpush.bf16.msra.mxu0 %v674
  %1095 = vmatpush.bf16.msra.mxu0 %v666
  %1096 = vmatpush.bf16.msra.mxu0 %v658
  %1097 = vmatpush.bf16.msra.mxu0 %v650
  %1098 = vmatpush.bf16.msra.mxu0 %v642
  %1099 = vmatmul.bf16.gmra.mxu0 %v175
  %v1100 = vpop.f32.mrf.mxu0
  %v1101 = vadd.f32 %v1072, %v1100
  %v1102 = vpop.f32.mrf.mxu0
  %v1103 = vadd.f32 %v1074, %v1102
  %1104 = vmatmul.bf16.gmra.mxu0 %v177
  %v1105 = vpop.f32.mrf.mxu0
  %v1106 = vadd.f32 %v1077, %v1105
  %v1107 = vpop.f32.mrf.mxu0
  %v1108 = vadd.f32 %v1079, %v1107
  %1109 = vmatmul.bf16.gmra.mxu0 %v179
  %v1110 = vpop.f32.mrf.mxu0
  %v1111 = vadd.f32 %v1082, %v1110
  %v1112 = vpop.f32.mrf.mxu0
  %v1113 = vadd.f32 %v1084, %v1112
  %1114 = vmatmul.bf16.gmra.mxu0 %v181
  %v1115 = vpop.f32.mrf.mxu0
  %v1116 = vadd.f32 %v1087, %v1115
  %v1117 = vpop.f32.mrf.mxu0
  %v1118 = vadd.f32 %v1089, %v1117
  %1119 = vdwg.mxu0
  %1120 = vmatpush.bf16.msra.mxu0 %v635
  %1121 = vmatpush.bf16.msra.mxu0 %v627
  %1122 = vmatpush.bf16.msra.mxu0 %v619
  %1123 = vmatpush.bf16.msra.mxu0 %v611
  %1124 = vmatpush.bf16.msra.mxu0 %v603
  %1125 = vmatpush.bf16.msra.mxu0 %v595
  %1126 = vmatpush.bf16.msra.mxu0 %v587
  %1127 = vmatpush.bf16.msra.mxu0 %v579
  %1128 = vmatmul.bf16.gmra.mxu0 %v174
  %v1129 = vpop.f32.mrf.mxu0
  %v1130 = vadd.f32 0.0, %v1129
  %v1131 = vpop.f32.mrf.mxu0
  %v1132 = vadd.f32 0.0, %v1131
  %1133 = vmatmul.bf16.gmra.mxu0 %v176
  %v1134 = vpop.f32.mrf.mxu0
  %v1135 = vadd.f32 0.0, %v1134
  %v1136 = vpop.f32.mrf.mxu0
  %v1137 = vadd.f32 0.0, %v1136
  %1138 = vmatmul.bf16.gmra.mxu0 %v178
  %v1139 = vpop.f32.mrf.mxu0
  %v1140 = vadd.f32 0.0, %v1139
  %v1141 = vpop.f32.mrf.mxu0
  %v1142 = vadd.f32 0.0, %v1141
  %1143 = vmatmul.bf16.gmra.mxu0 %v180
  %v1144 = vpop.f32.mrf.mxu0
  %v1145 = vadd.f32 0.0, %v1144
  %v1146 = vpop.f32.mrf.mxu0
  %v1147 = vadd.f32 0.0, %v1146
  %1148 = vdwg.mxu0
  %1149 = vmatpush.bf16.msra.mxu0 %v699
  %1150 = vmatpush.bf16.msra.mxu0 %v691
  %1151 = vmatpush.bf16.msra.mxu0 %v683
  %1152 = vmatpush.bf16.msra.mxu0 %v675
  %1153 = vmatpush.bf16.msra.mxu0 %v667
  %1154 = vmatpush.bf16.msra.mxu0 %v659
  %1155 = vmatpush.bf16.msra.mxu0 %v651
  %1156 = vmatpush.bf16.msra.mxu0 %v643
  %1157 = vmatmul.bf16.gmra.mxu0 %v175
  %v1158 = vpop.f32.mrf.mxu0
  %v1159 = vadd.f32 %v1130, %v1158
  %v1160 = vpop.f32.mrf.mxu0
  %v1161 = vadd.f32 %v1132, %v1160
  %1162 = vmatmul.bf16.gmra.mxu0 %v177
  %v1163 = vpop.f32.mrf.mxu0
  %v1164 = vadd.f32 %v1135, %v1163
  %v1165 = vpop.f32.mrf.mxu0
  %v1166 = vadd.f32 %v1137, %v1165
  %1167 = vmatmul.bf16.gmra.mxu0 %v179
  %v1168 = vpop.f32.mrf.mxu0
  %v1169 = vadd.f32 %v1140, %v1168
  %v1170 = vpop.f32.mrf.mxu0
  %v1171 = vadd.f32 %v1142, %v1170
  %1172 = vmatmul.bf16.gmra.mxu0 %v181
  %v1173 = vpop.f32.mrf.mxu0
  %v1174 = vadd.f32 %v1145, %v1173
  %v1175 = vpop.f32.mrf.mxu0
  %v1176 = vadd.f32 %v1147, %v1175
  %1177 = vdwg.mxu0
  %1178 = vmatpush.bf16.msra.mxu0 %v636
  %1179 = vmatpush.bf16.msra.mxu0 %v628
  %1180 = vmatpush.bf16.msra.mxu0 %v620
  %1181 = vmatpush.bf16.msra.mxu0 %v612
  %1182 = vmatpush.bf16.msra.mxu0 %v604
  %1183 = vmatpush.bf16.msra.mxu0 %v596
  %1184 = vmatpush.bf16.msra.mxu0 %v588
  %1185 = vmatpush.bf16.msra.mxu0 %v580
  %1186 = vmatmul.bf16.gmra.mxu0 %v174
  %v1187 = vpop.f32.mrf.mxu0
  %v1188 = vadd.f32 0.0, %v1187
  %v1189 = vpop.f32.mrf.mxu0
  %v1190 = vadd.f32 0.0, %v1189
  %1191 = vmatmul.bf16.gmra.mxu0 %v176
  %v1192 = vpop.f32.mrf.mxu0
  %v1193 = vadd.f32 0.0, %v1192
  %v1194 = vpop.f32.mrf.mxu0
  %v1195 = vadd.f32 0.0, %v1194
  %1196 = vmatmul.bf16.gmra.mxu0 %v178
  %v1197 = vpop.f32.mrf.mxu0
  %v1198 = vadd.f32 0.0, %v1197
  %v1199 = vpop.f32.mrf.mxu0
  %v1200 = vadd.f32 0.0, %v1199
  %1201 = vmatmul.bf16.gmra.mxu0 %v180
  %v1202 = vpop.f32.mrf.mxu0
  %v1203 = vadd.f32 0.0, %v1202
  %v1204 = vpop.f32.mrf.mxu0
  %v1205 = vadd.f32 0.0, %v1204
  %1206 = vdwg.mxu0
  %1207 = vmatpush.bf16.msra.mxu0 %v700
  %1208 = vmatpush.bf16.msra.mxu0 %v692
  %1209 = vmatpush.bf16.msra.mxu0 %v684
  %1210 = vmatpush.bf16.msra.mxu0 %v676
  %1211 = vmatpush.bf16.msra.mxu0 %v668
  %1212 = vmatpush.bf16.msra.mxu0 %v660
  %1213 = vmatpush.bf16.msra.mxu0 %v652
  %1214 = vmatpush.bf16.msra.mxu0 %v644
  %1215 = vmatmul.bf16.gmra.mxu0 %v175
  %v1216 = vpop.f32.mrf.mxu0
  %v1217 = vadd.f32 %v1188, %v1216
  %v1218 = vpop.f32.mrf.mxu0
  %v1219 = vadd.f32 %v1190, %v1218
  %1220 = vmatmul.bf16.gmra.mxu0 %v177
  %v1221 = vpop.f32.mrf.mxu0
  %v1222 = vadd.f32 %v1193, %v1221
  %v1223 = vpop.f32.mrf.mxu0
  %v1224 = vadd.f32 %v1195, %v1223
  %1225 = vmatmul.bf16.gmra.mxu0 %v179
  %v1226 = vpop.f32.mrf.mxu0
  %v1227 = vadd.f32 %v1198, %v1226
  %v1228 = vpop.f32.mrf.mxu0
  %v1229 = vadd.f32 %v1200, %v1228
  %1230 = vmatmul.bf16.gmra.mxu0 %v181
  %v1231 = vpop.f32.mrf.mxu0
  %v1232 = vadd.f32 %v1203, %v1231
  %v1233 = vpop.f32.mrf.mxu0
  %v1234 = vadd.f32 %v1205, %v1233
  %1235 = vdwg.mxu0
  %1236 = vmatpush.bf16.msra.mxu0 %v637
  %1237 = vmatpush.bf16.msra.mxu0 %v629
  %1238 = vmatpush.bf16.msra.mxu0 %v621
  %1239 = vmatpush.bf16.msra.mxu0 %v613
  %1240 = vmatpush.bf16.msra.mxu0 %v605
  %1241 = vmatpush.bf16.msra.mxu0 %v597
  %1242 = vmatpush.bf16.msra.mxu0 %v589
  %1243 = vmatpush.bf16.msra.mxu0 %v581
  %1244 = vmatmul.bf16.gmra.mxu0 %v174
  %v1245 = vpop.f32.mrf.mxu0
  %v1246 = vadd.f32 0.0, %v1245
  %v1247 = vpop.f32.mrf.mxu0
  %v1248 = vadd.f32 0.0, %v1247
  %1249 = vmatmul.bf16.gmra.mxu0 %v176
  %v1250 = vpop.f32.mrf.mxu0
  %v1251 = vadd.f32 0.0, %v1250
  %v1252 = vpop.f32.mrf.mxu0
  %v1253 = vadd.f32 0.0, %v1252
  %1254 = vmatmul.bf16.gmra.mxu0 %v178
  %v1255 = vpop.f32.mrf.mxu0
  %v1256 = vadd.f32 0.0, %v1255
  %v1257 = vpop.f32.mrf.mxu0
  %v1258 = vadd.f32 0.0, %v1257
  %1259 = vmatmul.bf16.gmra.mxu0 %v180
  %v1260 = vpop.f32.mrf.mxu0
  %v1261 = vadd.f32 0.0, %v1260
  %v1262 = vpop.f32.mrf.mxu0
  %v1263 = vadd.f32 0.0, %v1262
  %1264 = vdwg.mxu0
  %1265 = vmatpush.bf16.msra.mxu0 %v701
  %1266 = vmatpush.bf16.msra.mxu0 %v693
  %1267 = vmatpush.bf16.msra.mxu0 %v685
  %1268 = vmatpush.bf16.msra.mxu0 %v677
  %1269 = vmatpush.bf16.msra.mxu0 %v669
  %1270 = vmatpush.bf16.msra.mxu0 %v661
  %1271 = vmatpush.bf16.msra.mxu0 %v653
  %1272 = vmatpush.bf16.msra.mxu0 %v645
  %1273 = vmatmul.bf16.gmra.mxu0 %v175
  %v1274 = vpop.f32.mrf.mxu0
  %v1275 = vadd.f32 %v1246, %v1274
  %v1276 = vpop.f32.mrf.mxu0
  %v1277 = vadd.f32 %v1248, %v1276
  %1278 = vmatmul.bf16.gmra.mxu0 %v177
  %v1279 = vpop.f32.mrf.mxu0
  %v1280 = vadd.f32 %v1251, %v1279
  %v1281 = vpop.f32.mrf.mxu0
  %v1282 = vadd.f32 %v1253, %v1281
  %1283 = vmatmul.bf16.gmra.mxu0 %v179
  %v1284 = vpop.f32.mrf.mxu0
  %v1285 = vadd.f32 %v1256, %v1284
  %v1286 = vpop.f32.mrf.mxu0
  %v1287 = vadd.f32 %v1258, %v1286
  %1288 = vmatmul.bf16.gmra.mxu0 %v181
  %v1289 = vpop.f32.mrf.mxu0
  %v1290 = vadd.f32 %v1261, %v1289
  %v1291 = vpop.f32.mrf.mxu0
  %v1292 = vadd.f32 %v1263, %v1291
  %1293 = vdwg.mxu0
  %v1294 = vpack.c.bf16 %v927, %v869
  %v1295 = vpack.c.bf16 %v1043, %v985
  %v1296 = vpack.c.bf16 %v1159, %v1101
  %v1297 = vpack.c.bf16 %v1275, %v1217
  %v1298 = vpack.c.bf16 %v929, %v871
  %v1299 = vpack.c.bf16 %v1045, %v987
  %v1300 = vpack.c.bf16 %v1161, %v1103
  %v1301 = vpack.c.bf16 %v1277, %v1219
  %v1302 = vpack.c.bf16 %v932, %v874
  %v1303 = vpack.c.bf16 %v1048, %v990
  %v1304 = vpack.c.bf16 %v1164, %v1106
  %v1305 = vpack.c.bf16 %v1280, %v1222
  %v1306 = vpack.c.bf16 %v934, %v876
  %v1307 = vpack.c.bf16 %v1050, %v992
  %v1308 = vpack.c.bf16 %v1166, %v1108
  %v1309 = vpack.c.bf16 %v1282, %v1224
  %v1310 = vpack.c.bf16 %v937, %v879
  %v1311 = vpack.c.bf16 %v1053, %v995
  %v1312 = vpack.c.bf16 %v1169, %v1111
  %v1313 = vpack.c.bf16 %v1285, %v1227
  %v1314 = vpack.c.bf16 %v939, %v881
  %v1315 = vpack.c.bf16 %v1055, %v997
  %v1316 = vpack.c.bf16 %v1171, %v1113
  %v1317 = vpack.c.bf16 %v1287, %v1229
  %v1318 = vpack.c.bf16 %v942, %v884
  %v1319 = vpack.c.bf16 %v1058, %v1000
  %v1320 = vpack.c.bf16 %v1174, %v1116
  %v1321 = vpack.c.bf16 %v1290, %v1232
  %v1322 = vpack.c.bf16 %v944, %v886
  %v1323 = vpack.c.bf16 %v1060, %v1002
  %v1324 = vpack.c.bf16 %v1176, %v1118
  %v1325 = vpack.c.bf16 %v1292, %v1234
  %1326 = vst [vmem:[#allocation2] sm:$0xff] %v1294
  %1327 = vst [vmem:[#allocation2 + $0x8] sm:$0xff] %v1295
  %1328 = vst [vmem:[#allocation2 + $0x10] sm:$0xff] %v1296
  %1329 = vst [vmem:[#allocation2 + $0x18] sm:$0xff] %v1297
  %1330 = vst [vmem:[#allocation2 + $0x20] sm:$0xff] %v1298
  %1331 = vst [vmem:[#allocation2 + $0x28] sm:$0xff] %v1299
  %1332 = vst [vmem:[#allocation2 + $0x30] sm:$0xff] %v1300
  %1333 = vst [vmem:[#allocation2 + $0x38] sm:$0xff] %v1301
  %1334 = vst [vmem:[#allocation2 + $0x40] sm:$0xff] %v1302
  %1335 = vst [vmem:[#allocation2 + $0x48] sm:$0xff] %v1303
  %1336 = vst [vmem:[#allocation2 + $0x50] sm:$0xff] %v1304
  %1337 = vst [vmem:[#allocation2 + $0x58] sm:$0xff] %v1305
  %1338 = vst [vmem:[#allocation2 + $0x60] sm:$0xff] %v1306
  %1339 = vst [vmem:[#allocation2 + $0x68] sm:$0xff] %v1307
  %1340 = vst [vmem:[#allocation2 + $0x70] sm:$0xff] %v1308
  %1341 = vst [vmem:[#allocation2 + $0x78] sm:$0xff] %v1309
  %1342 = vst [vmem:[#allocation2 + $0x80] sm:$0xff] %v1310
  %1343 = vst [vmem:[#allocation2 + $0x88] sm:$0xff] %v1311
  %1344 = vst [vmem:[#allocation2 + $0x90] sm:$0xff] %v1312
  %1345 = vst [vmem:[#allocation2 + $0x98] sm:$0xff] %v1313
  %1346 = vst [vmem:[#allocation2 + $0xa0] sm:$0xff] %v1314
  %1347 = vst [vmem:[#allocation2 + $0xa8] sm:$0xff] %v1315
  %1348 = vst [vmem:[#allocation2 + $0xb0] sm:$0xff] %v1316
  %1349 = vst [vmem:[#allocation2 + $0xb8] sm:$0xff] %v1317
  %1350 = vst [vmem:[#allocation2 + $0xc0] sm:$0xff] %v1318
  %1351 = vst [vmem:[#allocation2 + $0xc8] sm:$0xff] %v1319
  %1352 = vst [vmem:[#allocation2 + $0xd0] sm:$0xff] %v1320
  %1353 = vst [vmem:[#allocation2 + $0xd8] sm:$0xff] %v1321
  %1354 = vst [vmem:[#allocation2 + $0xe0] sm:$0xff] %v1322
  %1355 = vst [vmem:[#allocation2 + $0xe8] sm:$0xff] %v1323
  %1356 = vst [vmem:[#allocation2 + $0xf0] sm:$0xff] %v1324
  %1357 = vst [vmem:[#allocation2 + $0xf8] sm:$0xff] %v1325
  %v1358 = vld [vmem:[%s2] sm:$0xff]
  %v1359 = vld [vmem:[%s2 + $0x8] sm:$0xff]
  %v1360 = vld [vmem:[%s2 + $0x10] sm:$0xff]
  %v1361 = vld [vmem:[%s2 + $0x18] sm:$0xff]
  %v1362 = vld [vmem:[%s2 + $0x20] sm:$0xff]
  %v1363 = vld [vmem:[%s2 + $0x28] sm:$0xff]
  %v1364 = vld [vmem:[%s2 + $0x30] sm:$0xff]
  %v1365 = vld [vmem:[%s2 + $0x38] sm:$0xff]
  %v1366 = vld [vmem:[%s2 + $0x40] sm:$0xff]
  %v1367 = vld [vmem:[%s2 + $0x48] sm:$0xff]
  %v1368 = vld [vmem:[%s2 + $0x50] sm:$0xff]
  %v1369 = vld [vmem:[%s2 + $0x58] sm:$0xff]
  %v1370 = vld [vmem:[%s2 + $0x60] sm:$0xff]
  %v1371 = vld [vmem:[%s2 + $0x68] sm:$0xff]
  %v1372 = vld [vmem:[%s2 + $0x70] sm:$0xff]
  %v1373 = vld [vmem:[%s2 + $0x78] sm:$0xff]
  %v1374 = vld [vmem:[%s2 + $0x80] sm:$0xff]
  %v1375 = vld [vmem:[%s2 + $0x88] sm:$0xff]
  %v1376 = vld [vmem:[%s2 + $0x90] sm:$0xff]
  %v1377 = vld [vmem:[%s2 + $0x98] sm:$0xff]
  %v1378 = vld [vmem:[%s2 + $0xa0] sm:$0xff]
  %v1379 = vld [vmem:[%s2 + $0xa8] sm:$0xff]
  %v1380 = vld [vmem:[%s2 + $0xb0] sm:$0xff]
  %v1381 = vld [vmem:[%s2 + $0xb8] sm:$0xff]
  %v1382 = vld [vmem:[%s2 + $0xc0] sm:$0xff]
  %v1383 = vld [vmem:[%s2 + $0xc8] sm:$0xff]
  %v1384 = vld [vmem:[%s2 + $0xd0] sm:$0xff]
  %v1385 = vld [vmem:[%s2 + $0xd8] sm:$0xff]
  %v1386 = vld [vmem:[%s2 + $0xe0] sm:$0xff]
  %v1387 = vld [vmem:[%s2 + $0xe8] sm:$0xff]
  %v1388 = vld [vmem:[%s2 + $0xf0] sm:$0xff]
  %v1389 = vld [vmem:[%s2 + $0xf8] sm:$0xff]
  %v1390 = vld [vmem:[%s2 + $0x100] sm:$0xff]
  %v1391 = vld [vmem:[%s2 + $0x108] sm:$0xff]
  %v1392 = vld [vmem:[%s2 + $0x110] sm:$0xff]
  %v1393 = vld [vmem:[%s2 + $0x118] sm:$0xff]
  %v1394 = vld [vmem:[%s2 + $0x120] sm:$0xff]
  %v1395 = vld [vmem:[%s2 + $0x128] sm:$0xff]
  %v1396 = vld [vmem:[%s2 + $0x130] sm:$0xff]
  %v1397 = vld [vmem:[%s2 + $0x138] sm:$0xff]
  %v1398 = vld [vmem:[%s2 + $0x140] sm:$0xff]
  %v1399 = vld [vmem:[%s2 + $0x148] sm:$0xff]
  %v1400 = vld [vmem:[%s2 + $0x150] sm:$0xff]
  %v1401 = vld [vmem:[%s2 + $0x158] sm:$0xff]
  %v1402 = vld [vmem:[%s2 + $0x160] sm:$0xff]
  %v1403 = vld [vmem:[%s2 + $0x168] sm:$0xff]
  %v1404 = vld [vmem:[%s2 + $0x170] sm:$0xff]
  %v1405 = vld [vmem:[%s2 + $0x178] sm:$0xff]
  %v1406 = vld [vmem:[%s2 + $0x180] sm:$0xff]
  %v1407 = vld [vmem:[%s2 + $0x188] sm:$0xff]
  %v1408 = vld [vmem:[%s2 + $0x190] sm:$0xff]
  %v1409 = vld [vmem:[%s2 + $0x198] sm:$0xff]
  %v1410 = vld [vmem:[%s2 + $0x1a0] sm:$0xff]
  %v1411 = vld [vmem:[%s2 + $0x1a8] sm:$0xff]
  %v1412 = vld [vmem:[%s2 + $0x1b0] sm:$0xff]
  %v1413 = vld [vmem:[%s2 + $0x1b8] sm:$0xff]
  %v1414 = vld [vmem:[%s2 + $0x1c0] sm:$0xff]
  %v1415 = vld [vmem:[%s2 + $0x1c8] sm:$0xff]
  %v1416 = vld [vmem:[%s2 + $0x1d0] sm:$0xff]
  %v1417 = vld [vmem:[%s2 + $0x1d8] sm:$0xff]
  %v1418 = vld [vmem:[%s2 + $0x1e0] sm:$0xff]
  %v1419 = vld [vmem:[%s2 + $0x1e8] sm:$0xff]
  %v1420 = vld [vmem:[%s2 + $0x1f0] sm:$0xff]
  %v1421 = vld [vmem:[%s2 + $0x1f8] sm:$0xff]
  %v1422 = vld [vmem:[%s2 + $0x200] sm:$0xff]
  %v1423 = vld [vmem:[%s2 + $0x208] sm:$0xff]
  %v1424 = vld [vmem:[%s2 + $0x210] sm:$0xff]
  %v1425 = vld [vmem:[%s2 + $0x218] sm:$0xff]
  %v1426 = vld [vmem:[%s2 + $0x220] sm:$0xff]
  %v1427 = vld [vmem:[%s2 + $0x228] sm:$0xff]
  %v1428 = vld [vmem:[%s2 + $0x230] sm:$0xff]
  %v1429 = vld [vmem:[%s2 + $0x238] sm:$0xff]
  %v1430 = vld [vmem:[%s2 + $0x240] sm:$0xff]
  %v1431 = vld [vmem:[%s2 + $0x248] sm:$0xff]
  %v1432 = vld [vmem:[%s2 + $0x250] sm:$0xff]
  %v1433 = vld [vmem:[%s2 + $0x258] sm:$0xff]
  %v1434 = vld [vmem:[%s2 + $0x260] sm:$0xff]
  %v1435 = vld [vmem:[%s2 + $0x268] sm:$0xff]
  %v1436 = vld [vmem:[%s2 + $0x270] sm:$0xff]
  %v1437 = vld [vmem:[%s2 + $0x278] sm:$0xff]
  %v1438 = vld [vmem:[%s2 + $0x280] sm:$0xff]
  %v1439 = vld [vmem:[%s2 + $0x288] sm:$0xff]
  %v1440 = vld [vmem:[%s2 + $0x290] sm:$0xff]
  %v1441 = vld [vmem:[%s2 + $0x298] sm:$0xff]
  %v1442 = vld [vmem:[%s2 + $0x2a0] sm:$0xff]
  %v1443 = vld [vmem:[%s2 + $0x2a8] sm:$0xff]
  %v1444 = vld [vmem:[%s2 + $0x2b0] sm:$0xff]
  %v1445 = vld [vmem:[%s2 + $0x2b8] sm:$0xff]
  %v1446 = vld [vmem:[%s2 + $0x2c0] sm:$0xff]
  %v1447 = vld [vmem:[%s2 + $0x2c8] sm:$0xff]
  %v1448 = vld [vmem:[%s2 + $0x2d0] sm:$0xff]
  %v1449 = vld [vmem:[%s2 + $0x2d8] sm:$0xff]
  %v1450 = vld [vmem:[%s2 + $0x2e0] sm:$0xff]
  %v1451 = vld [vmem:[%s2 + $0x2e8] sm:$0xff]
  %v1452 = vld [vmem:[%s2 + $0x2f0] sm:$0xff]
  %v1453 = vld [vmem:[%s2 + $0x2f8] sm:$0xff]
  %v1454 = vld [vmem:[%s2 + $0x300] sm:$0xff]
  %v1455 = vld [vmem:[%s2 + $0x308] sm:$0xff]
  %v1456 = vld [vmem:[%s2 + $0x310] sm:$0xff]
  %v1457 = vld [vmem:[%s2 + $0x318] sm:$0xff]
  %v1458 = vld [vmem:[%s2 + $0x320] sm:$0xff]
  %v1459 = vld [vmem:[%s2 + $0x328] sm:$0xff]
  %v1460 = vld [vmem:[%s2 + $0x330] sm:$0xff]
  %v1461 = vld [vmem:[%s2 + $0x338] sm:$0xff]
  %v1462 = vld [vmem:[%s2 + $0x340] sm:$0xff]
  %v1463 = vld [vmem:[%s2 + $0x348] sm:$0xff]
  %v1464 = vld [vmem:[%s2 + $0x350] sm:$0xff]
  %v1465 = vld [vmem:[%s2 + $0x358] sm:$0xff]
  %v1466 = vld [vmem:[%s2 + $0x360] sm:$0xff]
  %v1467 = vld [vmem:[%s2 + $0x368] sm:$0xff]
  %v1468 = vld [vmem:[%s2 + $0x370] sm:$0xff]
  %v1469 = vld [vmem:[%s2 + $0x378] sm:$0xff]
  %v1470 = vld [vmem:[%s2 + $0x380] sm:$0xff]
  %v1471 = vld [vmem:[%s2 + $0x388] sm:$0xff]
  %v1472 = vld [vmem:[%s2 + $0x390] sm:$0xff]
  %v1473 = vld [vmem:[%s2 + $0x398] sm:$0xff]
  %v1474 = vld [vmem:[%s2 + $0x3a0] sm:$0xff]
  %v1475 = vld [vmem:[%s2 + $0x3a8] sm:$0xff]
  %v1476 = vld [vmem:[%s2 + $0x3b0] sm:$0xff]
  %v1477 = vld [vmem:[%s2 + $0x3b8] sm:$0xff]
  %v1478 = vld [vmem:[%s2 + $0x3c0] sm:$0xff]
  %v1479 = vld [vmem:[%s2 + $0x3c8] sm:$0xff]
  %v1480 = vld [vmem:[%s2 + $0x3d0] sm:$0xff]
  %v1481 = vld [vmem:[%s2 + $0x3d8] sm:$0xff]
  %v1482 = vld [vmem:[%s2 + $0x3e0] sm:$0xff]
  %v1483 = vld [vmem:[%s2 + $0x3e8] sm:$0xff]
  %v1484 = vld [vmem:[%s2 + $0x3f0] sm:$0xff]
  %v1485 = vld [vmem:[%s2 + $0x3f8] sm:$0xff]
  %v1486 = vpack.c.bf16 0.0, 0.0
  %v1615 = vunpack.c.l.b16 %v1358
  %v1616 = vunpack.c.h.b16 %v1358
  %v1617 = vunpack.c.l.b16 %v1359
  %v1618 = vunpack.c.h.b16 %v1359
  %v1619 = vunpack.c.l.b16 %v1360
  %v1620 = vunpack.c.h.b16 %v1360
  %v1621 = vunpack.c.l.b16 %v1361
  %v1622 = vunpack.c.h.b16 %v1361
  %v1623 = vunpack.c.l.b16 %v1362
  %v1624 = vunpack.c.h.b16 %v1362
  %v1625 = vunpack.c.l.b16 %v1363
  %v1626 = vunpack.c.h.b16 %v1363
  %v1627 = vunpack.c.l.b16 %v1364
  %v1628 = vunpack.c.h.b16 %v1364
  %v1629 = vunpack.c.l.b16 %v1365
  %v1630 = vunpack.c.h.b16 %v1365
  %v1631 = vunpack.c.l.b16 %v1366
  %v1632 = vunpack.c.h.b16 %v1366
  %v1633 = vunpack.c.l.b16 %v1367
  %v1634 = vunpack.c.h.b16 %v1367
  %v1635 = vunpack.c.l.b16 %v1368
  %v1636 = vunpack.c.h.b16 %v1368
  %v1637 = vunpack.c.l.b16 %v1369
  %v1638 = vunpack.c.h.b16 %v1369
  %v1639 = vunpack.c.l.b16 %v1370
  %v1640 = vunpack.c.h.b16 %v1370
  %v1641 = vunpack.c.l.b16 %v1371
  %v1642 = vunpack.c.h.b16 %v1371
  %v1643 = vunpack.c.l.b16 %v1372
  %v1644 = vunpack.c.h.b16 %v1372
  %v1645 = vunpack.c.l.b16 %v1373
  %v1646 = vunpack.c.h.b16 %v1373
  %v1647 = vunpack.c.l.b16 %v1374
  %v1648 = vunpack.c.h.b16 %v1374
  %v1649 = vunpack.c.l.b16 %v1375
  %v1650 = vunpack.c.h.b16 %v1375
  %v1651 = vunpack.c.l.b16 %v1376
  %v1652 = vunpack.c.h.b16 %v1376
  %v1653 = vunpack.c.l.b16 %v1377
  %v1654 = vunpack.c.h.b16 %v1377
  %v1655 = vunpack.c.l.b16 %v1378
  %v1656 = vunpack.c.h.b16 %v1378
  %v1657 = vunpack.c.l.b16 %v1379
  %v1658 = vunpack.c.h.b16 %v1379
  %v1659 = vunpack.c.l.b16 %v1380
  %v1660 = vunpack.c.h.b16 %v1380
  %v1661 = vunpack.c.l.b16 %v1381
  %v1662 = vunpack.c.h.b16 %v1381
  %v1663 = vunpack.c.l.b16 %v1382
  %v1664 = vunpack.c.h.b16 %v1382
  %v1665 = vunpack.c.l.b16 %v1383
  %v1666 = vunpack.c.h.b16 %v1383
  %v1667 = vunpack.c.l.b16 %v1384
  %v1668 = vunpack.c.h.b16 %v1384
  %v1669 = vunpack.c.l.b16 %v1385
  %v1670 = vunpack.c.h.b16 %v1385
  %v1671 = vunpack.c.l.b16 %v1386
  %v1672 = vunpack.c.h.b16 %v1386
  %v1673 = vunpack.c.l.b16 %v1387
  %v1674 = vunpack.c.h.b16 %v1387
  %v1675 = vunpack.c.l.b16 %v1388
  %v1676 = vunpack.c.h.b16 %v1388
  %v1677 = vunpack.c.l.b16 %v1389
  %v1678 = vunpack.c.h.b16 %v1389
  %v1679 = vunpack.c.l.b16 %v1390
  %v1680 = vunpack.c.h.b16 %v1390
  %v1681 = vunpack.c.l.b16 %v1391
  %v1682 = vunpack.c.h.b16 %v1391
  %v1683 = vunpack.c.l.b16 %v1392
  %v1684 = vunpack.c.h.b16 %v1392
  %v1685 = vunpack.c.l.b16 %v1393
  %v1686 = vunpack.c.h.b16 %v1393
  %v1687 = vunpack.c.l.b16 %v1394
  %v1688 = vunpack.c.h.b16 %v1394
  %v1689 = vunpack.c.l.b16 %v1395
  %v1690 = vunpack.c.h.b16 %v1395
  %v1691 = vunpack.c.l.b16 %v1396
  %v1692 = vunpack.c.h.b16 %v1396
  %v1693 = vunpack.c.l.b16 %v1397
  %v1694 = vunpack.c.h.b16 %v1397
  %v1695 = vunpack.c.l.b16 %v1398
  %v1696 = vunpack.c.h.b16 %v1398
  %v1697 = vunpack.c.l.b16 %v1399
  %v1698 = vunpack.c.h.b16 %v1399
  %v1699 = vunpack.c.l.b16 %v1400
  %v1700 = vunpack.c.h.b16 %v1400
  %v1701 = vunpack.c.l.b16 %v1401
  %v1702 = vunpack.c.h.b16 %v1401
  %v1703 = vunpack.c.l.b16 %v1402
  %v1704 = vunpack.c.h.b16 %v1402
  %v1705 = vunpack.c.l.b16 %v1403
  %v1706 = vunpack.c.h.b16 %v1403
  %v1707 = vunpack.c.l.b16 %v1404
  %v1708 = vunpack.c.h.b16 %v1404
  %v1709 = vunpack.c.l.b16 %v1405
  %v1710 = vunpack.c.h.b16 %v1405
  %v1711 = vunpack.c.l.b16 %v1406
  %v1712 = vunpack.c.h.b16 %v1406
  %v1713 = vunpack.c.l.b16 %v1407
  %v1714 = vunpack.c.h.b16 %v1407
  %v1715 = vunpack.c.l.b16 %v1408
  %v1716 = vunpack.c.h.b16 %v1408
  %v1717 = vunpack.c.l.b16 %v1409
  %v1718 = vunpack.c.h.b16 %v1409
  %v1719 = vunpack.c.l.b16 %v1410
  %v1720 = vunpack.c.h.b16 %v1410
  %v1721 = vunpack.c.l.b16 %v1411
  %v1722 = vunpack.c.h.b16 %v1411
  %v1723 = vunpack.c.l.b16 %v1412
  %v1724 = vunpack.c.h.b16 %v1412
  %v1725 = vunpack.c.l.b16 %v1413
  %v1726 = vunpack.c.h.b16 %v1413
  %v1727 = vunpack.c.l.b16 %v1414
  %v1728 = vunpack.c.h.b16 %v1414
  %v1729 = vunpack.c.l.b16 %v1415
  %v1730 = vunpack.c.h.b16 %v1415
  %v1731 = vunpack.c.l.b16 %v1416
  %v1732 = vunpack.c.h.b16 %v1416
  %v1733 = vunpack.c.l.b16 %v1417
  %v1734 = vunpack.c.h.b16 %v1417
  %v1735 = vunpack.c.l.b16 %v1418
  %v1736 = vunpack.c.h.b16 %v1418
  %v1737 = vunpack.c.l.b16 %v1419
  %v1738 = vunpack.c.h.b16 %v1419
  %v1739 = vunpack.c.l.b16 %v1420
  %v1740 = vunpack.c.h.b16 %v1420
  %v1741 = vunpack.c.l.b16 %v1421
  %v1742 = vunpack.c.h.b16 %v1421
  %v1743 = vunpack.c.l.b16 %v1422
  %v1744 = vunpack.c.h.b16 %v1422
  %v1745 = vunpack.c.l.b16 %v1423
  %v1746 = vunpack.c.h.b16 %v1423
  %v1747 = vunpack.c.l.b16 %v1424
  %v1748 = vunpack.c.h.b16 %v1424
  %v1749 = vunpack.c.l.b16 %v1425
  %v1750 = vunpack.c.h.b16 %v1425
  %v1751 = vunpack.c.l.b16 %v1426
  %v1752 = vunpack.c.h.b16 %v1426
  %v1753 = vunpack.c.l.b16 %v1427
  %v1754 = vunpack.c.h.b16 %v1427
  %v1755 = vunpack.c.l.b16 %v1428
  %v1756 = vunpack.c.h.b16 %v1428
  %v1757 = vunpack.c.l.b16 %v1429
  %v1758 = vunpack.c.h.b16 %v1429
  %v1759 = vunpack.c.l.b16 %v1430
  %v1760 = vunpack.c.h.b16 %v1430
  %v1761 = vunpack.c.l.b16 %v1431
  %v1762 = vunpack.c.h.b16 %v1431
  %v1763 = vunpack.c.l.b16 %v1432
  %v1764 = vunpack.c.h.b16 %v1432
  %v1765 = vunpack.c.l.b16 %v1433
  %v1766 = vunpack.c.h.b16 %v1433
  %v1767 = vunpack.c.l.b16 %v1434
  %v1768 = vunpack.c.h.b16 %v1434
  %v1769 = vunpack.c.l.b16 %v1435
  %v1770 = vunpack.c.h.b16 %v1435
  %v1771 = vunpack.c.l.b16 %v1436
  %v1772 = vunpack.c.h.b16 %v1436
  %v1773 = vunpack.c.l.b16 %v1437
  %v1774 = vunpack.c.h.b16 %v1437
  %v1775 = vunpack.c.l.b16 %v1438
  %v1776 = vunpack.c.h.b16 %v1438
  %v1777 = vunpack.c.l.b16 %v1439
  %v1778 = vunpack.c.h.b16 %v1439
  %v1779 = vunpack.c.l.b16 %v1440
  %v1780 = vunpack.c.h.b16 %v1440
  %v1781 = vunpack.c.l.b16 %v1441
  %v1782 = vunpack.c.h.b16 %v1441
  %v1783 = vunpack.c.l.b16 %v1442
  %v1784 = vunpack.c.h.b16 %v1442
  %v1785 = vunpack.c.l.b16 %v1443
  %v1786 = vunpack.c.h.b16 %v1443
  %v1787 = vunpack.c.l.b16 %v1444
  %v1788 = vunpack.c.h.b16 %v1444
  %v1789 = vunpack.c.l.b16 %v1445
  %v1790 = vunpack.c.h.b16 %v1445
  %v1791 = vunpack.c.l.b16 %v1446
  %v1792 = vunpack.c.h.b16 %v1446
  %v1793 = vunpack.c.l.b16 %v1447
  %v1794 = vunpack.c.h.b16 %v1447
  %v1795 = vunpack.c.l.b16 %v1448
  %v1796 = vunpack.c.h.b16 %v1448
  %v1797 = vunpack.c.l.b16 %v1449
  %v1798 = vunpack.c.h.b16 %v1449
  %v1799 = vunpack.c.l.b16 %v1450
  %v1800 = vunpack.c.h.b16 %v1450
  %v1801 = vunpack.c.l.b16 %v1451
  %v1802 = vunpack.c.h.b16 %v1451
  %v1803 = vunpack.c.l.b16 %v1452
  %v1804 = vunpack.c.h.b16 %v1452
  %v1805 = vunpack.c.l.b16 %v1453
  %v1806 = vunpack.c.h.b16 %v1453
  %v1807 = vunpack.c.l.b16 %v1454
  %v1808 = vunpack.c.h.b16 %v1454
  %v1809 = vunpack.c.l.b16 %v1455
  %v1810 = vunpack.c.h.b16 %v1455
  %v1811 = vunpack.c.l.b16 %v1456
  %v1812 = vunpack.c.h.b16 %v1456
  %v1813 = vunpack.c.l.b16 %v1457
  %v1814 = vunpack.c.h.b16 %v1457
  %v1815 = vunpack.c.l.b16 %v1458
  %v1816 = vunpack.c.h.b16 %v1458
  %v1817 = vunpack.c.l.b16 %v1459
  %v1818 = vunpack.c.h.b16 %v1459
  %v1819 = vunpack.c.l.b16 %v1460
  %v1820 = vunpack.c.h.b16 %v1460
  %v1821 = vunpack.c.l.b16 %v1461
  %v1822 = vunpack.c.h.b16 %v1461
  %v1823 = vunpack.c.l.b16 %v1462
  %v1824 = vunpack.c.h.b16 %v1462
  %v1825 = vunpack.c.l.b16 %v1463
  %v1826 = vunpack.c.h.b16 %v1463
  %v1827 = vunpack.c.l.b16 %v1464
  %v1828 = vunpack.c.h.b16 %v1464
  %v1829 = vunpack.c.l.b16 %v1465
  %v1830 = vunpack.c.h.b16 %v1465
  %v1831 = vunpack.c.l.b16 %v1466
  %v1832 = vunpack.c.h.b16 %v1466
  %v1833 = vunpack.c.l.b16 %v1467
  %v1834 = vunpack.c.h.b16 %v1467
  %v1835 = vunpack.c.l.b16 %v1468
  %v1836 = vunpack.c.h.b16 %v1468
  %v1837 = vunpack.c.l.b16 %v1469
  %v1838 = vunpack.c.h.b16 %v1469
  %v1839 = vunpack.c.l.b16 %v1470
  %v1840 = vunpack.c.h.b16 %v1470
  %v1841 = vunpack.c.l.b16 %v1471
  %v1842 = vunpack.c.h.b16 %v1471
  %v1843 = vunpack.c.l.b16 %v1472
  %v1844 = vunpack.c.h.b16 %v1472
  %v1845 = vunpack.c.l.b16 %v1473
  %v1846 = vunpack.c.h.b16 %v1473
  %v1847 = vunpack.c.l.b16 %v1474
  %v1848 = vunpack.c.h.b16 %v1474
  %v1849 = vunpack.c.l.b16 %v1475
  %v1850 = vunpack.c.h.b16 %v1475
  %v1851 = vunpack.c.l.b16 %v1476
  %v1852 = vunpack.c.h.b16 %v1476
  %v1853 = vunpack.c.l.b16 %v1477
  %v1854 = vunpack.c.h.b16 %v1477
  %v1855 = vunpack.c.l.b16 %v1478
  %v1856 = vunpack.c.h.b16 %v1478
  %v1857 = vunpack.c.l.b16 %v1479
  %v1858 = vunpack.c.h.b16 %v1479
  %v1859 = vunpack.c.l.b16 %v1480
  %v1860 = vunpack.c.h.b16 %v1480
  %v1861 = vunpack.c.l.b16 %v1481
  %v1862 = vunpack.c.h.b16 %v1481
  %v1863 = vunpack.c.l.b16 %v1482
  %v1864 = vunpack.c.h.b16 %v1482
  %v1865 = vunpack.c.l.b16 %v1483
  %v1866 = vunpack.c.h.b16 %v1483
  %v1867 = vunpack.c.l.b16 %v1484
  %v1868 = vunpack.c.h.b16 %v1484
  %v1869 = vunpack.c.l.b16 %v1485
  %v1870 = vunpack.c.h.b16 %v1485
  %v1871 = vpack.c.b16 %v1623, %v1615
  %v1872 = vpack.c.b16 %v1624, %v1616
  %v1873 = vpack.c.b16 %v1625, %v1617
  %v1874 = vpack.c.b16 %v1626, %v1618
  %v1875 = vpack.c.b16 %v1627, %v1619
  %v1876 = vpack.c.b16 %v1628, %v1620
  %v1877 = vpack.c.b16 %v1629, %v1621
  %v1878 = vpack.c.b16 %v1630, %v1622
  %v1879 = vpack.c.b16 %v1639, %v1631
  %v1880 = vpack.c.b16 %v1640, %v1632
  %v1881 = vpack.c.b16 %v1641, %v1633
  %v1882 = vpack.c.b16 %v1642, %v1634
  %v1883 = vpack.c.b16 %v1643, %v1635
  %v1884 = vpack.c.b16 %v1644, %v1636
  %v1885 = vpack.c.b16 %v1645, %v1637
  %v1886 = vpack.c.b16 %v1646, %v1638
  %v1887 = vpack.c.b16 %v1655, %v1647
  %v1888 = vpack.c.b16 %v1656, %v1648
  %v1889 = vpack.c.b16 %v1657, %v1649
  %v1890 = vpack.c.b16 %v1658, %v1650
  %v1891 = vpack.c.b16 %v1659, %v1651
  %v1892 = vpack.c.b16 %v1660, %v1652
  %v1893 = vpack.c.b16 %v1661, %v1653
  %v1894 = vpack.c.b16 %v1662, %v1654
  %v1895 = vpack.c.b16 %v1671, %v1663
  %v1896 = vpack.c.b16 %v1672, %v1664
  %v1897 = vpack.c.b16 %v1673, %v1665
  %v1898 = vpack.c.b16 %v1674, %v1666
  %v1899 = vpack.c.b16 %v1675, %v1667
  %v1900 = vpack.c.b16 %v1676, %v1668
  %v1901 = vpack.c.b16 %v1677, %v1669
  %v1902 = vpack.c.b16 %v1678, %v1670
  %v1903 = vpack.c.b16 %v1687, %v1679
  %v1904 = vpack.c.b16 %v1688, %v1680
  %v1905 = vpack.c.b16 %v1689, %v1681
  %v1906 = vpack.c.b16 %v1690, %v1682
  %v1907 = vpack.c.b16 %v1691, %v1683
  %v1908 = vpack.c.b16 %v1692, %v1684
  %v1909 = vpack.c.b16 %v1693, %v1685
  %v1910 = vpack.c.b16 %v1694, %v1686
  %v1911 = vpack.c.b16 %v1703, %v1695
  %v1912 = vpack.c.b16 %v1704, %v1696
  %v1913 = vpack.c.b16 %v1705, %v1697
  %v1914 = vpack.c.b16 %v1706, %v1698
  %v1915 = vpack.c.b16 %v1707, %v1699
  %v1916 = vpack.c.b16 %v1708, %v1700
  %v1917 = vpack.c.b16 %v1709, %v1701
  %v1918 = vpack.c.b16 %v1710, %v1702
  %v1919 = vpack.c.b16 %v1719, %v1711
  %v1920 = vpack.c.b16 %v1720, %v1712
  %v1921 = vpack.c.b16 %v1721, %v1713
  %v1922 = vpack.c.b16 %v1722, %v1714
  %v1923 = vpack.c.b16 %v1723, %v1715
  %v1924 = vpack.c.b16 %v1724, %v1716
  %v1925 = vpack.c.b16 %v1725, %v1717
  %v1926 = vpack.c.b16 %v1726, %v1718
  %v1927 = vpack.c.b16 %v1735, %v1727
  %v1928 = vpack.c.b16 %v1736, %v1728
  %v1929 = vpack.c.b16 %v1737, %v1729
  %v1930 = vpack.c.b16 %v1738, %v1730
  %v1931 = vpack.c.b16 %v1739, %v1731
  %v1932 = vpack.c.b16 %v1740, %v1732
  %v1933 = vpack.c.b16 %v1741, %v1733
  %v1934 = vpack.c.b16 %v1742, %v1734
  %v1935 = vpack.c.b16 %v1751, %v1743
  %v1936 = vpack.c.b16 %v1752, %v1744
  %v1937 = vpack.c.b16 %v1753, %v1745
  %v1938 = vpack.c.b16 %v1754, %v1746
  %v1939 = vpack.c.b16 %v1755, %v1747
  %v1940 = vpack.c.b16 %v1756, %v1748
  %v1941 = vpack.c.b16 %v1757, %v1749
  %v1942 = vpack.c.b16 %v1758, %v1750
  %v1943 = vpack.c.b16 %v1767, %v1759
  %v1944 = vpack.c.b16 %v1768, %v1760
  %v1945 = vpack.c.b16 %v1769, %v1761
  %v1946 = vpack.c.b16 %v1770, %v1762
  %v1947 = vpack.c.b16 %v1771, %v1763
  %v1948 = vpack.c.b16 %v1772, %v1764
  %v1949 = vpack.c.b16 %v1773, %v1765
  %v1950 = vpack.c.b16 %v1774, %v1766
  %v1951 = vpack.c.b16 %v1783, %v1775
  %v1952 = vpack.c.b16 %v1784, %v1776
  %v1953 = vpack.c.b16 %v1785, %v1777
  %v1954 = vpack.c.b16 %v1786, %v1778
  %v1955 = vpack.c.b16 %v1787, %v1779
  %v1956 = vpack.c.b16 %v1788, %v1780
  %v1957 = vpack.c.b16 %v1789, %v1781
  %v1958 = vpack.c.b16 %v1790, %v1782
  %v1959 = vpack.c.b16 %v1799, %v1791
  %v1960 = vpack.c.b16 %v1800, %v1792
  %v1961 = vpack.c.b16 %v1801, %v1793
  %v1962 = vpack.c.b16 %v1802, %v1794
  %v1963 = vpack.c.b16 %v1803, %v1795
  %v1964 = vpack.c.b16 %v1804, %v1796
  %v1965 = vpack.c.b16 %v1805, %v1797
  %v1966 = vpack.c.b16 %v1806, %v1798
  %v1967 = vpack.c.b16 %v1815, %v1807
  %v1968 = vpack.c.b16 %v1816, %v1808
  %v1969 = vpack.c.b16 %v1817, %v1809
  %v1970 = vpack.c.b16 %v1818, %v1810
  %v1971 = vpack.c.b16 %v1819, %v1811
  %v1972 = vpack.c.b16 %v1820, %v1812
  %v1973 = vpack.c.b16 %v1821, %v1813
  %v1974 = vpack.c.b16 %v1822, %v1814
  %v1975 = vpack.c.b16 %v1831, %v1823
  %v1976 = vpack.c.b16 %v1832, %v1824
  %v1977 = vpack.c.b16 %v1833, %v1825
  %v1978 = vpack.c.b16 %v1834, %v1826
  %v1979 = vpack.c.b16 %v1835, %v1827
  %v1980 = vpack.c.b16 %v1836, %v1828
  %v1981 = vpack.c.b16 %v1837, %v1829
  %v1982 = vpack.c.b16 %v1838, %v1830
  %v1983 = vpack.c.b16 %v1847, %v1839
  %v1984 = vpack.c.b16 %v1848, %v1840
  %v1985 = vpack.c.b16 %v1849, %v1841
  %v1986 = vpack.c.b16 %v1850, %v1842
  %v1987 = vpack.c.b16 %v1851, %v1843
  %v1988 = vpack.c.b16 %v1852, %v1844
  %v1989 = vpack.c.b16 %v1853, %v1845
  %v1990 = vpack.c.b16 %v1854, %v1846
  %v1991 = vpack.c.b16 %v1863, %v1855
  %v1992 = vpack.c.b16 %v1864, %v1856
  %v1993 = vpack.c.b16 %v1865, %v1857
  %v1994 = vpack.c.b16 %v1866, %v1858
  %v1995 = vpack.c.b16 %v1867, %v1859
  %v1996 = vpack.c.b16 %v1868, %v1860
  %v1997 = vpack.c.b16 %v1869, %v1861
  %v1998 = vpack.c.b16 %v1870, %v1862
  %2127 = vmatpush.bf16.msra.mxu0 %v1927
  %2128 = vmatpush.bf16.msra.mxu0 %v1919
  %2129 = vmatpush.bf16.msra.mxu0 %v1911
  %2130 = vmatpush.bf16.msra.mxu0 %v1903
  %2131 = vmatpush.bf16.msra.mxu0 %v1895
  %2132 = vmatpush.bf16.msra.mxu0 %v1887
  %2133 = vmatpush.bf16.msra.mxu0 %v1879
  %2134 = vmatpush.bf16.msra.mxu0 %v1871
  %2135 = vmatmul.bf16.gmra.mxu0 %v1486
  %v2136 = vpop.f32.mrf.mxu0
  %v2137 = vadd.f32 0.0, %v2136
  %v2138 = vpop.f32.mrf.mxu0
  %2139 = vdwg.mxu0
  %2140 = vmatpush.bf16.msra.mxu0 %v1991
  %2141 = vmatpush.bf16.msra.mxu0 %v1983
  %2142 = vmatpush.bf16.msra.mxu0 %v1975
  %2143 = vmatpush.bf16.msra.mxu0 %v1967
  %2144 = vmatpush.bf16.msra.mxu0 %v1959
  %2145 = vmatpush.bf16.msra.mxu0 %v1951
  %2146 = vmatpush.bf16.msra.mxu0 %v1943
  %2147 = vmatpush.bf16.msra.mxu0 %v1935
  %2148 = vmatmul.bf16.gmra.mxu0 %v1486
  %v2149 = vpop.f32.mrf.mxu0
  %v2150 = vadd.f32 %v2137, %v2149
  %v2151 = vpop.f32.mrf.mxu0
  %2152 = vdwg.mxu0
  %2153 = vmatpush.bf16.msra.mxu0 %v1928
  %2154 = vmatpush.bf16.msra.mxu0 %v1920
  %2155 = vmatpush.bf16.msra.mxu0 %v1912
  %2156 = vmatpush.bf16.msra.mxu0 %v1904
  %2157 = vmatpush.bf16.msra.mxu0 %v1896
  %2158 = vmatpush.bf16.msra.mxu0 %v1888
  %2159 = vmatpush.bf16.msra.mxu0 %v1880
  %2160 = vmatpush.bf16.msra.mxu0 %v1872
  %2161 = vmatmul.bf16.gmra.mxu0 %v1486
  %v2162 = vpop.f32.mrf.mxu0
  %v2163 = vadd.f32 0.0, %v2162
  %v2164 = vpop.f32.mrf.mxu0
  %2165 = vdwg.mxu0
  %2166 = vmatpush.bf16.msra.mxu0 %v1992
  %2167 = vmatpush.bf16.msra.mxu0 %v1984
  %2168 = vmatpush.bf16.msra.mxu0 %v1976
  %2169 = vmatpush.bf16.msra.mxu0 %v1968
  %2170 = vmatpush.bf16.msra.mxu0 %v1960
  %2171 = vmatpush.bf16.msra.mxu0 %v1952
  %2172 = vmatpush.bf16.msra.mxu0 %v1944
  %2173 = vmatpush.bf16.msra.mxu0 %v1936
  %2174 = vmatmul.bf16.gmra.mxu0 %v1486
  %v2175 = vpop.f32.mrf.mxu0
  %v2176 = vadd.f32 %v2163, %v2175
  %v2177 = vpop.f32.mrf.mxu0
  %2178 = vdwg.mxu0
  %2179 = vmatpush.bf16.msra.mxu0 %v1929
  %2180 = vmatpush.bf16.msra.mxu0 %v1921
  %2181 = vmatpush.bf16.msra.mxu0 %v1913
  %2182 = vmatpush.bf16.msra.mxu0 %v1905
  %2183 = vmatpush.bf16.msra.mxu0 %v1897
  %2184 = vmatpush.bf16.msra.mxu0 %v1889
  %2185 = vmatpush.bf16.msra.mxu0 %v1881
  %2186 = vmatpush.bf16.msra.mxu0 %v1873
  %2187 = vmatmul.bf16.gmra.mxu0 %v1486
  %v2188 = vpop.f32.mrf.mxu0
  %v2189 = vadd.f32 0.0, %v2188
  %v2190 = vpop.f32.mrf.mxu0
  %2191 = vdwg.mxu0
  %2192 = vmatpush.bf16.msra.mxu0 %v1993
  %2193 = vmatpush.bf16.msra.mxu0 %v1985
  %2194 = vmatpush.bf16.msra.mxu0 %v1977
  %2195 = vmatpush.bf16.msra.mxu0 %v1969
  %2196 = vmatpush.bf16.msra.mxu0 %v1961
  %2197 = vmatpush.bf16.msra.mxu0 %v1953
  %2198 = vmatpush.bf16.msra.mxu0 %v1945
  %2199 = vmatpush.bf16.msra.mxu0 %v1937
  %2200 = vmatmul.bf16.gmra.mxu0 %v1486
  %v2201 = vpop.f32.mrf.mxu0
  %v2202 = vadd.f32 %v2189, %v2201
  %v2203 = vpop.f32.mrf.mxu0
  %2204 = vdwg.mxu0
  %2205 = vmatpush.bf16.msra.mxu0 %v1930
  %2206 = vmatpush.bf16.msra.mxu0 %v1922
  %2207 = vmatpush.bf16.msra.mxu0 %v1914
  %2208 = vmatpush.bf16.msra.mxu0 %v1906
  %2209 = vmatpush.bf16.msra.mxu0 %v1898
  %2210 = vmatpush.bf16.msra.mxu0 %v1890
  %2211 = vmatpush.bf16.msra.mxu0 %v1882
  %2212 = vmatpush.bf16.msra.mxu0 %v1874
  %2213 = vmatmul.bf16.gmra.mxu0 %v1486
  %v2214 = vpop.f32.mrf.mxu0
  %v2215 = vadd.f32 0.0, %v2214
  %v2216 = vpop.f32.mrf.mxu0
  %2217 = vdwg.mxu0
  %2218 = vmatpush.bf16.msra.mxu0 %v1994
  %2219 = vmatpush.bf16.msra.mxu0 %v1986
  %2220 = vmatpush.bf16.msra.mxu0 %v1978
  %2221 = vmatpush.bf16.msra.mxu0 %v1970
  %2222 = vmatpush.bf16.msra.mxu0 %v1962
  %2223 = vmatpush.bf16.msra.mxu0 %v1954
  %2224 = vmatpush.bf16.msra.mxu0 %v1946
  %2225 = vmatpush.bf16.msra.mxu0 %v1938
  %2226 = vmatmul.bf16.gmra.mxu0 %v1486
  %v2227 = vpop.f32.mrf.mxu0
  %v2228 = vadd.f32 %v2215, %v2227
  %v2229 = vpop.f32.mrf.mxu0
  %2230 = vdwg.mxu0
  %2231 = vmatpush.bf16.msra.mxu0 %v1931
  %2232 = vmatpush.bf16.msra.mxu0 %v1923
  %2233 = vmatpush.bf16.msra.mxu0 %v1915
  %2234 = vmatpush.bf16.msra.mxu0 %v1907
  %2235 = vmatpush.bf16.msra.mxu0 %v1899
  %2236 = vmatpush.bf16.msra.mxu0 %v1891
  %2237 = vmatpush.bf16.msra.mxu0 %v1883
  %2238 = vmatpush.bf16.msra.mxu0 %v1875
  %2239 = vmatmul.bf16.gmra.mxu0 %v1486
  %v2240 = vpop.f32.mrf.mxu0
  %v2241 = vadd.f32 0.0, %v2240
  %v2242 = vpop.f32.mrf.mxu0
  %2243 = vdwg.mxu0
  %2244 = vmatpush.bf16.msra.mxu0 %v1995
  %2245 = vmatpush.bf16.msra.mxu0 %v1987
  %2246 = vmatpush.bf16.msra.mxu0 %v1979
  %2247 = vmatpush.bf16.msra.mxu0 %v1971
  %2248 = vmatpush.bf16.msra.mxu0 %v1963
  %2249 = vmatpush.bf16.msra.mxu0 %v1955
  %2250 = vmatpush.bf16.msra.mxu0 %v1947
  %2251 = vmatpush.bf16.msra.mxu0 %v1939
  %2252 = vmatmul.bf16.gmra.mxu0 %v1486
  %v2253 = vpop.f32.mrf.mxu0
  %v2254 = vadd.f32 %v2241, %v2253
  %v2255 = vpop.f32.mrf.mxu0
  %2256 = vdwg.mxu0
  %2257 = vmatpush.bf16.msra.mxu0 %v1932
  %2258 = vmatpush.bf16.msra.mxu0 %v1924
  %2259 = vmatpush.bf16.msra.mxu0 %v1916
  %2260 = vmatpush.bf16.msra.mxu0 %v1908
  %2261 = vmatpush.bf16.msra.mxu0 %v1900
  %2262 = vmatpush.bf16.msra.mxu0 %v1892
  %2263 = vmatpush.bf16.msra.mxu0 %v1884
  %2264 = vmatpush.bf16.msra.mxu0 %v1876
  %2265 = vmatmul.bf16.gmra.mxu0 %v1486
  %v2266 = vpop.f32.mrf.mxu0
  %v2267 = vadd.f32 0.0, %v2266
  %v2268 = vpop.f32.mrf.mxu0
  %2269 = vdwg.mxu0
  %2270 = vmatpush.bf16.msra.mxu0 %v1996
  %2271 = vmatpush.bf16.msra.mxu0 %v1988
  %2272 = vmatpush.bf16.msra.mxu0 %v1980
  %2273 = vmatpush.bf16.msra.mxu0 %v1972
  %2274 = vmatpush.bf16.msra.mxu0 %v1964
  %2275 = vmatpush.bf16.msra.mxu0 %v1956
  %2276 = vmatpush.bf16.msra.mxu0 %v1948
  %2277 = vmatpush.bf16.msra.mxu0 %v1940
  %2278 = vmatmul.bf16.gmra.mxu0 %v1486
  %v2279 = vpop.f32.mrf.mxu0
  %v2280 = vadd.f32 %v2267, %v2279
  %v2281 = vpop.f32.mrf.mxu0
  %2282 = vdwg.mxu0
  %2283 = vmatpush.bf16.msra.mxu0 %v1933
  %2284 = vmatpush.bf16.msra.mxu0 %v1925
  %2285 = vmatpush.bf16.msra.mxu0 %v1917
  %2286 = vmatpush.bf16.msra.mxu0 %v1909
  %2287 = vmatpush.bf16.msra.mxu0 %v1901
  %2288 = vmatpush.bf16.msra.mxu0 %v1893
  %2289 = vmatpush.bf16.msra.mxu0 %v1885
  %2290 = vmatpush.bf16.msra.mxu0 %v1877
  %2291 = vmatmul.bf16.gmra.mxu0 %v1486
  %v2292 = vpop.f32.mrf.mxu0
  %v2293 = vadd.f32 0.0, %v2292
  %v2294 = vpop.f32.mrf.mxu0
  %2295 = vdwg.mxu0
  %2296 = vmatpush.bf16.msra.mxu0 %v1997
  %2297 = vmatpush.bf16.msra.mxu0 %v1989
  %2298 = vmatpush.bf16.msra.mxu0 %v1981
  %2299 = vmatpush.bf16.msra.mxu0 %v1973
  %2300 = vmatpush.bf16.msra.mxu0 %v1965
  %2301 = vmatpush.bf16.msra.mxu0 %v1957
  %2302 = vmatpush.bf16.msra.mxu0 %v1949
  %2303 = vmatpush.bf16.msra.mxu0 %v1941
  %2304 = vmatmul.bf16.gmra.mxu0 %v1486
  %v2305 = vpop.f32.mrf.mxu0
  %v2306 = vadd.f32 %v2293, %v2305
  %v2307 = vpop.f32.mrf.mxu0
  %2308 = vdwg.mxu0
  %2309 = vmatpush.bf16.msra.mxu0 %v1934
  %2310 = vmatpush.bf16.msra.mxu0 %v1926
  %2311 = vmatpush.bf16.msra.mxu0 %v1918
  %2312 = vmatpush.bf16.msra.mxu0 %v1910
  %2313 = vmatpush.bf16.msra.mxu0 %v1902
  %2314 = vmatpush.bf16.msra.mxu0 %v1894
  %2315 = vmatpush.bf16.msra.mxu0 %v1886
  %2316 = vmatpush.bf16.msra.mxu0 %v1878
  %2317 = vmatmul.bf16.gmra.mxu0 %v1486
  %v2318 = vpop.f32.mrf.mxu0
  %v2319 = vadd.f32 0.0, %v2318
  %v2320 = vpop.f32.mrf.mxu0
  %2321 = vdwg.mxu0
  %2322 = vmatpush.bf16.msra.mxu0 %v1998
  %2323 = vmatpush.bf16.msra.mxu0 %v1990
  %2324 = vmatpush.bf16.msra.mxu0 %v1982
  %2325 = vmatpush.bf16.msra.mxu0 %v1974
  %2326 = vmatpush.bf16.msra.mxu0 %v1966
  %2327 = vmatpush.bf16.msra.mxu0 %v1958
  %2328 = vmatpush.bf16.msra.mxu0 %v1950
  %2329 = vmatpush.bf16.msra.mxu0 %v1942
  %2330 = vmatmul.bf16.gmra.mxu0 %v1486
  %v2331 = vpop.f32.mrf.mxu0
  %v2332 = vadd.f32 %v2319, %v2331
  %v2333 = vpop.f32.mrf.mxu0
  %2334 = vdwg.mxu0
  %s2335 = smul.u32 0, 8
  %s2336 = smul.addr %s2335, 4
  %s2337 = scalar_lea.vmem [#allocation2], %s2336
  %v2338 = vld [vmem:[%s2337] sm:$0xff]
  %v2339 = vld [vmem:[%s2337 + $0x8] sm:$0xff]
  %v2340 = vunpack.c.l.bf16 %v2338
  %v2341 = vunpack.c.h.bf16 %v2338
  %v2342 = vunpack.c.l.bf16 %v2339
  %v2343 = vunpack.c.h.bf16 %v2339
  %s2344 = smul.u32 7, 8
  %s2345 = smul.addr %s2344, 4
  %s2346 = scalar_lea.vmem [#allocation2], %s2345
  %v2347 = vld [vmem:[%s2346 + $0x10] sm:$0xff]
  %v2348 = vld [vmem:[%s2346 + $0x18] sm:$0xff]
  %v2349 = vunpack.c.l.bf16 %v2347
  %v2350 = vunpack.c.h.bf16 %v2347
  %v2351 = vunpack.c.l.bf16 %v2348
  %v2352 = vunpack.c.h.bf16 %v2348
  %v2353 = vadd.f32 %v2150, %v2340
  %v2354 = vadd.f32 %v2176, %v2341
  %v2355 = vadd.f32 %v2202, %v2342
  %v2356 = vadd.f32 %v2228, %v2343
  %v2357 = vxor.u32 %v2353, 2147483648
  %v2358 = vxor.u32 %v2354, 2147483648
  %v2359 = vxor.u32 %v2355, 2147483648
  %v2360 = vmul.f32 %v2357, 1.442695
  %v2361 = vpow.pop %v2360
  %v2362 = vmul.f32 %v2358, 1.442695
  %v2363 = vpow.pop %v2362
  %v2364 = vmul.f32 %v2359, 1.442695
  %v2365 = vpow.pop %v2364
  %v2366 = vadd.f32 %v2361, 1.0
  %v2367 = vadd.f32 %v2363, 1.0
  %v2368 = vadd.f32 %v2365, 1.0
  %v2369 = vrcp.pop %v2366
  %v2370 = vmul.f32 %v2366, %v2369
  %v2371 = vsub.f32 1.0, %v2370
  %v2372 = vmul.f32 %v2369, %v2371
  %v2373 = vadd.f32 %v2369, %v2372
  %vm2374 = vweird.f32 %v2366
  %vm2375 = vweird.f32 %v2369
  %vm2376 = vmor %vm2374, %vm2375
  %v2377 = vsel %vm2376, %v2369, %v2373
  %v2378 = vand.u32 2147483647, %v2366
  %vm2379 = vcmp.eq.f32.partialorder %v2378, 8.507059e+37
  %v2380 = vand.u32 %v2366, 2147483648
  %v2381 = vor.u32 1.1754944e-38, %v2380
  %v2382 = vsel %vm2379, %v2381, %v2377
  %v2383 = vmul.f32 1.0, %v2382
  %v2384 = vrcp.pop %v2367
  %v2385 = vmul.f32 %v2367, %v2384
  %v2386 = vsub.f32 1.0, %v2385
  %v2387 = vmul.f32 %v2384, %v2386
  %v2388 = vadd.f32 %v2384, %v2387
  %vm2389 = vweird.f32 %v2367
  %vm2390 = vweird.f32 %v2384
  %vm2391 = vmor %vm2389, %vm2390
  %v2392 = vsel %vm2391, %v2384, %v2388
  %v2393 = vand.u32 2147483647, %v2367
  %vm2394 = vcmp.eq.f32.partialorder %v2393, 8.507059e+37
  %v2395 = vand.u32 %v2367, 2147483648
  %v2396 = vor.u32 1.1754944e-38, %v2395
  %v2397 = vsel %vm2394, %v2396, %v2392
  %v2398 = vmul.f32 1.0, %v2397
  %v2399 = vrcp.pop %v2368
  %v2400 = vmul.f32 %v2368, %v2399
  %v2401 = vsub.f32 1.0, %v2400
  %v2402 = vmul.f32 %v2399, %v2401
  %v2403 = vadd.f32 %v2399, %v2402
  %vm2404 = vweird.f32 %v2368
  %vm2405 = vweird.f32 %v2399
  %vm2406 = vmor %vm2404, %vm2405
  %v2407 = vsel %vm2406, %v2399, %v2403
  %v2408 = vand.u32 2147483647, %v2368
  %vm2409 = vcmp.eq.f32.partialorder %v2408, 8.507059e+37
  %v2410 = vand.u32 %v2368, 2147483648
  %v2411 = vor.u32 1.1754944e-38, %v2410
  %v2412 = vsel %vm2409, %v2411, %v2407
  %v2413 = vmul.f32 1.0, %v2412
  %v2414 = vtanh.pop %v2356
  %v2415 = vmul.f32 %v2398, 0.0
  %v2416 = vmul.f32 %v2383, %v2414
  %v2417 = vadd.f32 %v2415, %v2416
  %v2418 = vtanh.pop %v2417
  %v2419 = vmul.f32 %v2413, %v2418
  %v2420 = vadd.f32 %v2254, %v2349
  %v2421 = vadd.f32 %v2280, %v2350
  %v2422 = vadd.f32 %v2306, %v2351
  %v2423 = vadd.f32 %v2332, %v2352
  %v2424 = vxor.u32 %v2420, 2147483648
  %v2425 = vxor.u32 %v2421, 2147483648
  %v2426 = vxor.u32 %v2422, 2147483648
  %v2427 = vmul.f32 %v2424, 1.442695
  %v2428 = vpow.pop %v2427
  %v2429 = vmul.f32 %v2425, 1.442695
  %v2430 = vpow.pop %v2429
  %v2431 = vmul.f32 %v2426, 1.442695
  %v2432 = vpow.pop %v2431
  %v2433 = vadd.f32 %v2428, 1.0
  %v2434 = vadd.f32 %v2430, 1.0
  %v2435 = vadd.f32 %v2432, 1.0
  %v2436 = vrcp.pop %v2433
  %v2437 = vmul.f32 %v2433, %v2436
  %v2438 = vsub.f32 1.0, %v2437
  %v2439 = vmul.f32 %v2436, %v2438
  %v2440 = vadd.f32 %v2436, %v2439
  %vm2441 = vweird.f32 %v2433
  %vm2442 = vweird.f32 %v2436
  %vm2443 = vmor %vm2441, %vm2442
  %v2444 = vsel %vm2443, %v2436, %v2440
  %v2445 = vand.u32 2147483647, %v2433
  %vm2446 = vcmp.eq.f32.partialorder %v2445, 8.507059e+37
  %v2447 = vand.u32 %v2433, 2147483648
  %v2448 = vor.u32 1.1754944e-38, %v2447
  %v2449 = vsel %vm2446, %v2448, %v2444
  %v2450 = vmul.f32 1.0, %v2449
  %v2451 = vrcp.pop %v2434
  %v2452 = vmul.f32 %v2434, %v2451
  %v2453 = vsub.f32 1.0, %v2452
  %v2454 = vmul.f32 %v2451, %v2453
  %v2455 = vadd.f32 %v2451, %v2454
  %vm2456 = vweird.f32 %v2434
  %vm2457 = vweird.f32 %v2451
  %vm2458 = vmor %vm2456, %vm2457
  %v2459 = vsel %vm2458, %v2451, %v2455
  %v2460 = vand.u32 2147483647, %v2434
  %vm2461 = vcmp.eq.f32.partialorder %v2460, 8.507059e+37
  %v2462 = vand.u32 %v2434, 2147483648
  %v2463 = vor.u32 1.1754944e-38, %v2462
  %v2464 = vsel %vm2461, %v2463, %v2459
  %v2465 = vmul.f32 1.0, %v2464
  %v2466 = vrcp.pop %v2435
  %v2467 = vmul.f32 %v2435, %v2466
  %v2468 = vsub.f32 1.0, %v2467
  %v2469 = vmul.f32 %v2466, %v2468
  %v2470 = vadd.f32 %v2466, %v2469
  %vm2471 = vweird.f32 %v2435
  %vm2472 = vweird.f32 %v2466
  %vm2473 = vmor %vm2471, %vm2472
  %v2474 = vsel %vm2473, %v2466, %v2470
  %v2475 = vand.u32 2147483647, %v2435
  %vm2476 = vcmp.eq.f32.partialorder %v2475, 8.507059e+37
  %v2477 = vand.u32 %v2435, 2147483648
  %v2478 = vor.u32 1.1754944e-38, %v2477
  %v2479 = vsel %vm2476, %v2478, %v2474
  %v2480 = vmul.f32 1.0, %v2479
  %v2481 = vtanh.pop %v2423
  %v2482 = vmul.f32 %v2465, 0.0
  %v2483 = vmul.f32 %v2450, %v2481
  %v2484 = vadd.f32 %v2482, %v2483
  %v2485 = vtanh.pop %v2484
  %v2486 = vmul.f32 %v2480, %v2485
  %s2487 = smul.u32 0, 2
  %s2488 = smul.addr %s2487, 8
  %s2489 = scalar_lea.vmem %s3, %s2488
  %2490 = vst [vmem:[%s2489] sm:$0xff] %v2419
  %s2491 = smul.u32 7, 2
  %s2492 = smul.addr %s2491, 8
  %s2493 = scalar_lea.vmem %s3, %s2492
  %2494 = vst [vmem:[%s2493 + $0x8] sm:$0xff] %v2486
  %v2495 = vpack.c.bf16 %v2419, %v2419
  %v2496 = vpack.c.bf16 %v2486, %v2486
  %2497 = vmatpush.bf16.msra.mxu0 %v1927
  %2498 = vmatpush.bf16.msra.mxu0 %v1919
  %2499 = vmatpush.bf16.msra.mxu0 %v1911
  %2500 = vmatpush.bf16.msra.mxu0 %v1903
  %2501 = vmatpush.bf16.msra.mxu0 %v1895
  %2502 = vmatpush.bf16.msra.mxu0 %v1887
  %2503 = vmatpush.bf16.msra.mxu0 %v1879
  %2504 = vmatpush.bf16.msra.mxu0 %v1871
  %2505 = vmatmul.bf16.gmra.mxu0 %v2495
  %v2506 = vpop.f32.mrf.mxu0
  %v2507 = vadd.f32 0.0, %v2506
  %v2508 = vpop.f32.mrf.mxu0
  %2509 = vdwg.mxu0
  %2510 = vmatpush.bf16.msra.mxu0 %v1991
  %2511 = vmatpush.bf16.msra.mxu0 %v1983
  %2512 = vmatpush.bf16.msra.mxu0 %v1975
  %2513 = vmatpush.bf16.msra.mxu0 %v1967
  %2514 = vmatpush.bf16.msra.mxu0 %v1959
  %2515 = vmatpush.bf16.msra.mxu0 %v1951
  %2516 = vmatpush.bf16.msra.mxu0 %v1943
  %2517 = vmatpush.bf16.msra.mxu0 %v1935
  %2518 = vmatmul.bf16.gmra.mxu0 %v2496
  %v2519 = vpop.f32.mrf.mxu0
  %v2520 = vadd.f32 %v2507, %v2519
  %v2521 = vpop.f32.mrf.mxu0
  %2522 = vdwg.mxu0
  %2523 = vmatpush.bf16.msra.mxu0 %v1928
  %2524 = vmatpush.bf16.msra.mxu0 %v1920
  %2525 = vmatpush.bf16.msra.mxu0 %v1912
  %2526 = vmatpush.bf16.msra.mxu0 %v1904
  %2527 = vmatpush.bf16.msra.mxu0 %v1896
  %2528 = vmatpush.bf16.msra.mxu0 %v1888
  %2529 = vmatpush.bf16.msra.mxu0 %v1880
  %2530 = vmatpush.bf16.msra.mxu0 %v1872
  %2531 = vmatmul.bf16.gmra.mxu0 %v2495
  %v2532 = vpop.f32.mrf.mxu0
  %v2533 = vadd.f32 0.0, %v2532
  %v2534 = vpop.f32.mrf.mxu0
  %2535 = vdwg.mxu0
  %2536 = vmatpush.bf16.msra.mxu0 %v1992
  %2537 = vmatpush.bf16.msra.mxu0 %v1984
  %2538 = vmatpush.bf16.msra.mxu0 %v1976
  %2539 = vmatpush.bf16.msra.mxu0 %v1968
  %2540 = vmatpush.bf16.msra.mxu0 %v1960
  %2541 = vmatpush.bf16.msra.mxu0 %v1952
  %2542 = vmatpush.bf16.msra.mxu0 %v1944
  %2543 = vmatpush.bf16.msra.mxu0 %v1936
  %2544 = vmatmul.bf16.gmra.mxu0 %v2496
  %v2545 = vpop.f32.mrf.mxu0
  %v2546 = vadd.f32 %v2533, %v2545
  %v2547 = vpop.f32.mrf.mxu0
  %2548 = vdwg.mxu0
  %2549 = vmatpush.bf16.msra.mxu0 %v1929
  %2550 = vmatpush.bf16.msra.mxu0 %v1921
  %2551 = vmatpush.bf16.msra.mxu0 %v1913
  %2552 = vmatpush.bf16.msra.mxu0 %v1905
  %2553 = vmatpush.bf16.msra.mxu0 %v1897
  %2554 = vmatpush.bf16.msra.mxu0 %v1889
  %2555 = vmatpush.bf16.msra.mxu0 %v1881
  %2556 = vmatpush.bf16.msra.mxu0 %v1873
  %2557 = vmatmul.bf16.gmra.mxu0 %v2495
  %v2558 = vpop.f32.mrf.mxu0
  %v2559 = vadd.f32 0.0, %v2558
  %v2560 = vpop.f32.mrf.mxu0
  %2561 = vdwg.mxu0
  %2562 = vmatpush.bf16.msra.mxu0 %v1993
  %2563 = vmatpush.bf16.msra.mxu0 %v1985
  %2564 = vmatpush.bf16.msra.mxu0 %v1977
  %2565 = vmatpush.bf16.msra.mxu0 %v1969
  %2566 = vmatpush.bf16.msra.mxu0 %v1961
  %2567 = vmatpush.bf16.msra.mxu0 %v1953
  %2568 = vmatpush.bf16.msra.mxu0 %v1945
  %2569 = vmatpush.bf16.msra.mxu0 %v1937
  %2570 = vmatmul.bf16.gmra.mxu0 %v2496
  %v2571 = vpop.f32.mrf.mxu0
  %v2572 = vadd.f32 %v2559, %v2571
  %v2573 = vpop.f32.mrf.mxu0
  %2574 = vdwg.mxu0
  %2575 = vmatpush.bf16.msra.mxu0 %v1930
  %2576 = vmatpush.bf16.msra.mxu0 %v1922
  %2577 = vmatpush.bf16.msra.mxu0 %v1914
  %2578 = vmatpush.bf16.msra.mxu0 %v1906
  %2579 = vmatpush.bf16.msra.mxu0 %v1898
  %2580 = vmatpush.bf16.msra.mxu0 %v1890
  %2581 = vmatpush.bf16.msra.mxu0 %v1882
  %2582 = vmatpush.bf16.msra.mxu0 %v1874
  %2583 = vmatmul.bf16.gmra.mxu0 %v2495
  %v2584 = vpop.f32.mrf.mxu0
  %v2585 = vadd.f32 0.0, %v2584
  %v2586 = vpop.f32.mrf.mxu0
  %2587 = vdwg.mxu0
  %2588 = vmatpush.bf16.msra.mxu0 %v1994
  %2589 = vmatpush.bf16.msra.mxu0 %v1986
  %2590 = vmatpush.bf16.msra.mxu0 %v1978
  %2591 = vmatpush.bf16.msra.mxu0 %v1970
  %2592 = vmatpush.bf16.msra.mxu0 %v1962
  %2593 = vmatpush.bf16.msra.mxu0 %v1954
  %2594 = vmatpush.bf16.msra.mxu0 %v1946
  %2595 = vmatpush.bf16.msra.mxu0 %v1938
  %2596 = vmatmul.bf16.gmra.mxu0 %v2496
  %v2597 = vpop.f32.mrf.mxu0
  %v2598 = vadd.f32 %v2585, %v2597
  %v2599 = vpop.f32.mrf.mxu0
  %2600 = vdwg.mxu0
  %2601 = vmatpush.bf16.msra.mxu0 %v1931
  %2602 = vmatpush.bf16.msra.mxu0 %v1923
  %2603 = vmatpush.bf16.msra.mxu0 %v1915
  %2604 = vmatpush.bf16.msra.mxu0 %v1907
  %2605 = vmatpush.bf16.msra.mxu0 %v1899
  %2606 = vmatpush.bf16.msra.mxu0 %v1891
  %2607 = vmatpush.bf16.msra.mxu0 %v1883
  %2608 = vmatpush.bf16.msra.mxu0 %v1875
  %2609 = vmatmul.bf16.gmra.mxu0 %v2495
  %v2610 = vpop.f32.mrf.mxu0
  %v2611 = vadd.f32 0.0, %v2610
  %v2612 = vpop.f32.mrf.mxu0
  %2613 = vdwg.mxu0
  %2614 = vmatpush.bf16.msra.mxu0 %v1995
  %2615 = vmatpush.bf16.msra.mxu0 %v1987
  %2616 = vmatpush.bf16.msra.mxu0 %v1979
  %2617 = vmatpush.bf16.msra.mxu0 %v1971
  %2618 = vmatpush.bf16.msra.mxu0 %v1963
  %2619 = vmatpush.bf16.msra.mxu0 %v1955
  %2620 = vmatpush.bf16.msra.mxu0 %v1947
  %2621 = vmatpush.bf16.msra.mxu0 %v1939
  %2622 = vmatmul.bf16.gmra.mxu0 %v2496
  %v2623 = vpop.f32.mrf.mxu0
  %v2624 = vadd.f32 %v2611, %v2623
  %v2625 = vpop.f32.mrf.mxu0
  %2626 = vdwg.mxu0
  %2627 = vmatpush.bf16.msra.mxu0 %v1932
  %2628 = vmatpush.bf16.msra.mxu0 %v1924
  %2629 = vmatpush.bf16.msra.mxu0 %v1916
  %2630 = vmatpush.bf16.msra.mxu0 %v1908
  %2631 = vmatpush.bf16.msra.mxu0 %v1900
  %2632 = vmatpush.bf16.msra.mxu0 %v1892
  %2633 = vmatpush.bf16.msra.mxu0 %v1884
  %2634 = vmatpush.bf16.msra.mxu0 %v1876
  %2635 = vmatmul.bf16.gmra.mxu0 %v2495
  %v2636 = vpop.f32.mrf.mxu0
  %v2637 = vadd.f32 0.0, %v2636
  %v2638 = vpop.f32.mrf.mxu0
  %2639 = vdwg.mxu0
  %2640 = vmatpush.bf16.msra.mxu0 %v1996
  %2641 = vmatpush.bf16.msra.mxu0 %v1988
  %2642 = vmatpush.bf16.msra.mxu0 %v1980
  %2643 = vmatpush.bf16.msra.mxu0 %v1972
  %2644 = vmatpush.bf16.msra.mxu0 %v1964
  %2645 = vmatpush.bf16.msra.mxu0 %v1956
  %2646 = vmatpush.bf16.msra.mxu0 %v1948
  %2647 = vmatpush.bf16.msra.mxu0 %v1940
  %2648 = vmatmul.bf16.gmra.mxu0 %v2496
  %v2649 = vpop.f32.mrf.mxu0
  %v2650 = vadd.f32 %v2637, %v2649
  %v2651 = vpop.f32.mrf.mxu0
  %2652 = vdwg.mxu0
  %2653 = vmatpush.bf16.msra.mxu0 %v1933
  %2654 = vmatpush.bf16.msra.mxu0 %v1925
  %2655 = vmatpush.bf16.msra.mxu0 %v1917
  %2656 = vmatpush.bf16.msra.mxu0 %v1909
  %2657 = vmatpush.bf16.msra.mxu0 %v1901
  %2658 = vmatpush.bf16.msra.mxu0 %v1893
  %2659 = vmatpush.bf16.msra.mxu0 %v1885
  %2660 = vmatpush.bf16.msra.mxu0 %v1877
  %2661 = vmatmul.bf16.gmra.mxu0 %v2495
  %v2662 = vpop.f32.mrf.mxu0
  %v2663 = vadd.f32 0.0, %v2662
  %v2664 = vpop.f32.mrf.mxu0
  %2665 = vdwg.mxu0
  %2666 = vmatpush.bf16.msra.mxu0 %v1997
  %2667 = vmatpush.bf16.msra.mxu0 %v1989
  %2668 = vmatpush.bf16.msra.mxu0 %v1981
  %2669 = vmatpush.bf16.msra.mxu0 %v1973
  %2670 = vmatpush.bf16.msra.mxu0 %v1965
  %2671 = vmatpush.bf16.msra.mxu0 %v1957
  %2672 = vmatpush.bf16.msra.mxu0 %v1949
  %2673 = vmatpush.bf16.msra.mxu0 %v1941
  %2674 = vmatmul.bf16.gmra.mxu0 %v2496
  %v2675 = vpop.f32.mrf.mxu0
  %v2676 = vadd.f32 %v2663, %v2675
  %v2677 = vpop.f32.mrf.mxu0
  %2678 = vdwg.mxu0
  %2679 = vmatpush.bf16.msra.mxu0 %v1934
  %2680 = vmatpush.bf16.msra.mxu0 %v1926
  %2681 = vmatpush.bf16.msra.mxu0 %v1918
  %2682 = vmatpush.bf16.msra.mxu0 %v1910
  %2683 = vmatpush.bf16.msra.mxu0 %v1902
  %2684 = vmatpush.bf16.msra.mxu0 %v1894
  %2685 = vmatpush.bf16.msra.mxu0 %v1886
  %2686 = vmatpush.bf16.msra.mxu0 %v1878
  %2687 = vmatmul.bf16.gmra.mxu0 %v2495
  %v2688 = vpop.f32.mrf.mxu0
  %v2689 = vadd.f32 0.0, %v2688
  %v2690 = vpop.f32.mrf.mxu0
  %2691 = vdwg.mxu0
  %2692 = vmatpush.bf16.msra.mxu0 %v1998
  %2693 = vmatpush.bf16.msra.mxu0 %v1990
  %2694 = vmatpush.bf16.msra.mxu0 %v1982
  %2695 = vmatpush.bf16.msra.mxu0 %v1974
  %2696 = vmatpush.bf16.msra.mxu0 %v1966
  %2697 = vmatpush.bf16.msra.mxu0 %v1958
  %2698 = vmatpush.bf16.msra.mxu0 %v1950
  %2699 = vmatpush.bf16.msra.mxu0 %v1942
  %2700 = vmatmul.bf16.gmra.mxu0 %v2496
  %v2701 = vpop.f32.mrf.mxu0
  %v2702 = vadd.f32 %v2689, %v2701
  %v2703 = vpop.f32.mrf.mxu0
  %2704 = vdwg.mxu0
  %s2705 = smul.u32 1, 8
  %s2706 = smul.addr %s2705, 4
  %s2707 = scalar_lea.vmem [#allocation2], %s2706
  %v2708 = vld [vmem:[%s2707] sm:$0xff]
  %v2709 = vld [vmem:[%s2707 + $0x8] sm:$0xff]
  %v2710 = vunpack.c.l.bf16 %v2708
  %v2711 = vunpack.c.h.bf16 %v2708
  %v2712 = vunpack.c.l.bf16 %v2709
  %v2713 = vunpack.c.h.bf16 %v2709
  %s2714 = smul.u32 6, 8
  %s2715 = smul.addr %s2714, 4
  %s2716 = scalar_lea.vmem [#allocation2], %s2715
  %v2717 = vld [vmem:[%s2716 + $0x10] sm:$0xff]
  %v2718 = vld [vmem:[%s2716 + $0x18] sm:$0xff]
  %v2719 = vunpack.c.l.bf16 %v2717
  %v2720 = vunpack.c.h.bf16 %v2717
  %v2721 = vunpack.c.l.bf16 %v2718
  %v2722 = vunpack.c.h.bf16 %v2718
  %v2723 = vadd.f32 %v2520, %v2710
  %v2724 = vadd.f32 %v2546, %v2711
  %v2725 = vadd.f32 %v2572, %v2712
  %v2726 = vadd.f32 %v2598, %v2713
  %v2727 = vxor.u32 %v2723, 2147483648
  %v2728 = vxor.u32 %v2724, 2147483648
  %v2729 = vxor.u32 %v2725, 2147483648
  %v2730 = vmul.f32 %v2727, 1.442695
  %v2731 = vpow.pop %v2730
  %v2732 = vmul.f32 %v2728, 1.442695
  %v2733 = vpow.pop %v2732
  %v2734 = vmul.f32 %v2729, 1.442695
  %v2735 = vpow.pop %v2734
  %v2736 = vadd.f32 %v2731, 1.0
  %v2737 = vadd.f32 %v2733, 1.0
  %v2738 = vadd.f32 %v2735, 1.0
  %v2739 = vrcp.pop %v2736
  %v2740 = vmul.f32 %v2736, %v2739
  %v2741 = vsub.f32 1.0, %v2740
  %v2742 = vmul.f32 %v2739, %v2741
  %v2743 = vadd.f32 %v2739, %v2742
  %vm2744 = vweird.f32 %v2736
  %vm2745 = vweird.f32 %v2739
  %vm2746 = vmor %vm2744, %vm2745
  %v2747 = vsel %vm2746, %v2739, %v2743
  %v2748 = vand.u32 2147483647, %v2736
  %vm2749 = vcmp.eq.f32.partialorder %v2748, 8.507059e+37
  %v2750 = vand.u32 %v2736, 2147483648
  %v2751 = vor.u32 1.1754944e-38, %v2750
  %v2752 = vsel %vm2749, %v2751, %v2747
  %v2753 = vmul.f32 1.0, %v2752
  %v2754 = vrcp.pop %v2737
  %v2755 = vmul.f32 %v2737, %v2754
  %v2756 = vsub.f32 1.0, %v2755
  %v2757 = vmul.f32 %v2754, %v2756
  %v2758 = vadd.f32 %v2754, %v2757
  %vm2759 = vweird.f32 %v2737
  %vm2760 = vweird.f32 %v2754
  %vm2761 = vmor %vm2759, %vm2760
  %v2762 = vsel %vm2761, %v2754, %v2758
  %v2763 = vand.u32 2147483647, %v2737
  %vm2764 = vcmp.eq.f32.partialorder %v2763, 8.507059e+37
  %v2765 = vand.u32 %v2737, 2147483648
  %v2766 = vor.u32 1.1754944e-38, %v2765
  %v2767 = vsel %vm2764, %v2766, %v2762
  %v2768 = vmul.f32 1.0, %v2767
  %v2769 = vrcp.pop %v2738
  %v2770 = vmul.f32 %v2738, %v2769
  %v2771 = vsub.f32 1.0, %v2770
  %v2772 = vmul.f32 %v2769, %v2771
  %v2773 = vadd.f32 %v2769, %v2772
  %vm2774 = vweird.f32 %v2738
  %vm2775 = vweird.f32 %v2769
  %vm2776 = vmor %vm2774, %vm2775
  %v2777 = vsel %vm2776, %v2769, %v2773
  %v2778 = vand.u32 2147483647, %v2738
  %vm2779 = vcmp.eq.f32.partialorder %v2778, 8.507059e+37
  %v2780 = vand.u32 %v2738, 2147483648
  %v2781 = vor.u32 1.1754944e-38, %v2780
  %v2782 = vsel %vm2779, %v2781, %v2777
  %v2783 = vmul.f32 1.0, %v2782
  %v2784 = vtanh.pop %v2726
  %v2785 = vmul.f32 %v2768, %v2417
  %v2786 = vmul.f32 %v2753, %v2784
  %v2787 = vadd.f32 %v2785, %v2786
  %v2788 = vtanh.pop %v2787
  %v2789 = vmul.f32 %v2783, %v2788
  %v2790 = vadd.f32 %v2624, %v2719
  %v2791 = vadd.f32 %v2650, %v2720
  %v2792 = vadd.f32 %v2676, %v2721
  %v2793 = vadd.f32 %v2702, %v2722
  %v2794 = vxor.u32 %v2790, 2147483648
  %v2795 = vxor.u32 %v2791, 2147483648
  %v2796 = vxor.u32 %v2792, 2147483648
  %v2797 = vmul.f32 %v2794, 1.442695
  %v2798 = vpow.pop %v2797
  %v2799 = vmul.f32 %v2795, 1.442695
  %v2800 = vpow.pop %v2799
  %v2801 = vmul.f32 %v2796, 1.442695
  %v2802 = vpow.pop %v2801
  %v2803 = vadd.f32 %v2798, 1.0
  %v2804 = vadd.f32 %v2800, 1.0
  %v2805 = vadd.f32 %v2802, 1.0
  %v2806 = vrcp.pop %v2803
  %v2807 = vmul.f32 %v2803, %v2806
  %v2808 = vsub.f32 1.0, %v2807
  %v2809 = vmul.f32 %v2806, %v2808
  %v2810 = vadd.f32 %v2806, %v2809
  %vm2811 = vweird.f32 %v2803
  %vm2812 = vweird.f32 %v2806
  %vm2813 = vmor %vm2811, %vm2812
  %v2814 = vsel %vm2813, %v2806, %v2810
  %v2815 = vand.u32 2147483647, %v2803
  %vm2816 = vcmp.eq.f32.partialorder %v2815, 8.507059e+37
  %v2817 = vand.u32 %v2803, 2147483648
  %v2818 = vor.u32 1.1754944e-38, %v2817
  %v2819 = vsel %vm2816, %v2818, %v2814
  %v2820 = vmul.f32 1.0, %v2819
  %v2821 = vrcp.pop %v2804
  %v2822 = vmul.f32 %v2804, %v2821
  %v2823 = vsub.f32 1.0, %v2822
  %v2824 = vmul.f32 %v2821, %v2823
  %v2825 = vadd.f32 %v2821, %v2824
  %vm2826 = vweird.f32 %v2804
  %vm2827 = vweird.f32 %v2821
  %vm2828 = vmor %vm2826, %vm2827
  %v2829 = vsel %vm2828, %v2821, %v2825
  %v2830 = vand.u32 2147483647, %v2804
  %vm2831 = vcmp.eq.f32.partialorder %v2830, 8.507059e+37
  %v2832 = vand.u32 %v2804, 2147483648
  %v2833 = vor.u32 1.1754944e-38, %v2832
  %v2834 = vsel %vm2831, %v2833, %v2829
  %v2835 = vmul.f32 1.0, %v2834
  %v2836 = vrcp.pop %v2805
  %v2837 = vmul.f32 %v2805, %v2836
  %v2838 = vsub.f32 1.0, %v2837
  %v2839 = vmul.f32 %v2836, %v2838
  %v2840 = vadd.f32 %v2836, %v2839
  %vm2841 = vweird.f32 %v2805
  %vm2842 = vweird.f32 %v2836
  %vm2843 = vmor %vm2841, %vm2842
  %v2844 = vsel %vm2843, %v2836, %v2840
  %v2845 = vand.u32 2147483647, %v2805
  %vm2846 = vcmp.eq.f32.partialorder %v2845, 8.507059e+37
  %v2847 = vand.u32 %v2805, 2147483648
  %v2848 = vor.u32 1.1754944e-38, %v2847
  %v2849 = vsel %vm2846, %v2848, %v2844
  %v2850 = vmul.f32 1.0, %v2849
  %v2851 = vtanh.pop %v2793
  %v2852 = vmul.f32 %v2835, %v2484
  %v2853 = vmul.f32 %v2820, %v2851
  %v2854 = vadd.f32 %v2852, %v2853
  %v2855 = vtanh.pop %v2854
  %v2856 = vmul.f32 %v2850, %v2855
  %s2857 = smul.u32 1, 2
  %s2858 = smul.addr %s2857, 8
  %s2859 = scalar_lea.vmem %s3, %s2858
  %2860 = vst [vmem:[%s2859] sm:$0xff] %v2789
  %s2861 = smul.u32 6, 2
  %s2862 = smul.addr %s2861, 8
  %s2863 = scalar_lea.vmem %s3, %s2862
  %2864 = vst [vmem:[%s2863 + $0x8] sm:$0xff] %v2856
  %v2865 = vpack.c.bf16 %v2789, %v2789
  %v2866 = vpack.c.bf16 %v2856, %v2856
  %2867 = vmatpush.bf16.msra.mxu0 %v1927
  %2868 = vmatpush.bf16.msra.mxu0 %v1919
  %2869 = vmatpush.bf16.msra.mxu0 %v1911
  %2870 = vmatpush.bf16.msra.mxu0 %v1903
  %2871 = vmatpush.bf16.msra.mxu0 %v1895
  %2872 = vmatpush.bf16.msra.mxu0 %v1887
  %2873 = vmatpush.bf16.msra.mxu0 %v1879
  %2874 = vmatpush.bf16.msra.mxu0 %v1871
  %2875 = vmatmul.bf16.gmra.mxu0 %v2865
  %v2876 = vpop.f32.mrf.mxu0
  %v2877 = vadd.f32 0.0, %v2876
  %v2878 = vpop.f32.mrf.mxu0
  %2879 = vdwg.mxu0
  %2880 = vmatpush.bf16.msra.mxu0 %v1991
  %2881 = vmatpush.bf16.msra.mxu0 %v1983
  %2882 = vmatpush.bf16.msra.mxu0 %v1975
  %2883 = vmatpush.bf16.msra.mxu0 %v1967
  %2884 = vmatpush.bf16.msra.mxu0 %v1959
  %2885 = vmatpush.bf16.msra.mxu0 %v1951
  %2886 = vmatpush.bf16.msra.mxu0 %v1943
  %2887 = vmatpush.bf16.msra.mxu0 %v1935
  %2888 = vmatmul.bf16.gmra.mxu0 %v2866
  %v2889 = vpop.f32.mrf.mxu0
  %v2890 = vadd.f32 %v2877, %v2889
  %v2891 = vpop.f32.mrf.mxu0
  %2892 = vdwg.mxu0
  %2893 = vmatpush.bf16.msra.mxu0 %v1928
  %2894 = vmatpush.bf16.msra.mxu0 %v1920
  %2895 = vmatpush.bf16.msra.mxu0 %v1912
  %2896 = vmatpush.bf16.msra.mxu0 %v1904
  %2897 = vmatpush.bf16.msra.mxu0 %v1896
  %2898 = vmatpush.bf16.msra.mxu0 %v1888
  %2899 = vmatpush.bf16.msra.mxu0 %v1880
  %2900 = vmatpush.bf16.msra.mxu0 %v1872
  %2901 = vmatmul.bf16.gmra.mxu0 %v2865
  %v2902 = vpop.f32.mrf.mxu0
  %v2903 = vadd.f32 0.0, %v2902
  %v2904 = vpop.f32.mrf.mxu0
  %2905 = vdwg.mxu0
  %2906 = vmatpush.bf16.msra.mxu0 %v1992
  %2907 = vmatpush.bf16.msra.mxu0 %v1984
  %2908 = vmatpush.bf16.msra.mxu0 %v1976
  %2909 = vmatpush.bf16.msra.mxu0 %v1968
  %2910 = vmatpush.bf16.msra.mxu0 %v1960
  %2911 = vmatpush.bf16.msra.mxu0 %v1952
  %2912 = vmatpush.bf16.msra.mxu0 %v1944
  %2913 = vmatpush.bf16.msra.mxu0 %v1936
  %2914 = vmatmul.bf16.gmra.mxu0 %v2866
  %v2915 = vpop.f32.mrf.mxu0
  %v2916 = vadd.f32 %v2903, %v2915
  %v2917 = vpop.f32.mrf.mxu0
  %2918 = vdwg.mxu0
  %2919 = vmatpush.bf16.msra.mxu0 %v1929
  %2920 = vmatpush.bf16.msra.mxu0 %v1921
  %2921 = vmatpush.bf16.msra.mxu0 %v1913
  %2922 = vmatpush.bf16.msra.mxu0 %v1905
  %2923 = vmatpush.bf16.msra.mxu0 %v1897
  %2924 = vmatpush.bf16.msra.mxu0 %v1889
  %2925 = vmatpush.bf16.msra.mxu0 %v1881
  %2926 = vmatpush.bf16.msra.mxu0 %v1873
  %2927 = vmatmul.bf16.gmra.mxu0 %v2865
  %v2928 = vpop.f32.mrf.mxu0
  %v2929 = vadd.f32 0.0, %v2928
  %v2930 = vpop.f32.mrf.mxu0
  %2931 = vdwg.mxu0
  %2932 = vmatpush.bf16.msra.mxu0 %v1993
  %2933 = vmatpush.bf16.msra.mxu0 %v1985
  %2934 = vmatpush.bf16.msra.mxu0 %v1977
  %2935 = vmatpush.bf16.msra.mxu0 %v1969
  %2936 = vmatpush.bf16.msra.mxu0 %v1961
  %2937 = vmatpush.bf16.msra.mxu0 %v1953
  %2938 = vmatpush.bf16.msra.mxu0 %v1945
  %2939 = vmatpush.bf16.msra.mxu0 %v1937
  %2940 = vmatmul.bf16.gmra.mxu0 %v2866
  %v2941 = vpop.f32.mrf.mxu0
  %v2942 = vadd.f32 %v2929, %v2941
  %v2943 = vpop.f32.mrf.mxu0
  %2944 = vdwg.mxu0
  %2945 = vmatpush.bf16.msra.mxu0 %v1930
  %2946 = vmatpush.bf16.msra.mxu0 %v1922
  %2947 = vmatpush.bf16.msra.mxu0 %v1914
  %2948 = vmatpush.bf16.msra.mxu0 %v1906
  %2949 = vmatpush.bf16.msra.mxu0 %v1898
  %2950 = vmatpush.bf16.msra.mxu0 %v1890
  %2951 = vmatpush.bf16.msra.mxu0 %v1882
  %2952 = vmatpush.bf16.msra.mxu0 %v1874
  %2953 = vmatmul.bf16.gmra.mxu0 %v2865
  %v2954 = vpop.f32.mrf.mxu0
  %v2955 = vadd.f32 0.0, %v2954
  %v2956 = vpop.f32.mrf.mxu0
  %2957 = vdwg.mxu0
  %2958 = vmatpush.bf16.msra.mxu0 %v1994
  %2959 = vmatpush.bf16.msra.mxu0 %v1986
  %2960 = vmatpush.bf16.msra.mxu0 %v1978
  %2961 = vmatpush.bf16.msra.mxu0 %v1970
  %2962 = vmatpush.bf16.msra.mxu0 %v1962
  %2963 = vmatpush.bf16.msra.mxu0 %v1954
  %2964 = vmatpush.bf16.msra.mxu0 %v1946
  %2965 = vmatpush.bf16.msra.mxu0 %v1938
  %2966 = vmatmul.bf16.gmra.mxu0 %v2866
  %v2967 = vpop.f32.mrf.mxu0
  %v2968 = vadd.f32 %v2955, %v2967
  %v2969 = vpop.f32.mrf.mxu0
  %2970 = vdwg.mxu0
  %2971 = vmatpush.bf16.msra.mxu0 %v1931
  %2972 = vmatpush.bf16.msra.mxu0 %v1923
  %2973 = vmatpush.bf16.msra.mxu0 %v1915
  %2974 = vmatpush.bf16.msra.mxu0 %v1907
  %2975 = vmatpush.bf16.msra.mxu0 %v1899
  %2976 = vmatpush.bf16.msra.mxu0 %v1891
  %2977 = vmatpush.bf16.msra.mxu0 %v1883
  %2978 = vmatpush.bf16.msra.mxu0 %v1875
  %2979 = vmatmul.bf16.gmra.mxu0 %v2865
  %v2980 = vpop.f32.mrf.mxu0
  %v2981 = vadd.f32 0.0, %v2980
  %v2982 = vpop.f32.mrf.mxu0
  %2983 = vdwg.mxu0
  %2984 = vmatpush.bf16.msra.mxu0 %v1995
  %2985 = vmatpush.bf16.msra.mxu0 %v1987
  %2986 = vmatpush.bf16.msra.mxu0 %v1979
  %2987 = vmatpush.bf16.msra.mxu0 %v1971
  %2988 = vmatpush.bf16.msra.mxu0 %v1963
  %2989 = vmatpush.bf16.msra.mxu0 %v1955
  %2990 = vmatpush.bf16.msra.mxu0 %v1947
  %2991 = vmatpush.bf16.msra.mxu0 %v1939
  %2992 = vmatmul.bf16.gmra.mxu0 %v2866
  %v2993 = vpop.f32.mrf.mxu0
  %v2994 = vadd.f32 %v2981, %v2993
  %v2995 = vpop.f32.mrf.mxu0
  %2996 = vdwg.mxu0
  %2997 = vmatpush.bf16.msra.mxu0 %v1932
  %2998 = vmatpush.bf16.msra.mxu0 %v1924
  %2999 = vmatpush.bf16.msra.mxu0 %v1916
  %3000 = vmatpush.bf16.msra.mxu0 %v1908
  %3001 = vmatpush.bf16.msra.mxu0 %v1900
  %3002 = vmatpush.bf16.msra.mxu0 %v1892
  %3003 = vmatpush.bf16.msra.mxu0 %v1884
  %3004 = vmatpush.bf16.msra.mxu0 %v1876
  %3005 = vmatmul.bf16.gmra.mxu0 %v2865
  %v3006 = vpop.f32.mrf.mxu0
  %v3007 = vadd.f32 0.0, %v3006
  %v3008 = vpop.f32.mrf.mxu0
  %3009 = vdwg.mxu0
  %3010 = vmatpush.bf16.msra.mxu0 %v1996
  %3011 = vmatpush.bf16.msra.mxu0 %v1988
  %3012 = vmatpush.bf16.msra.mxu0 %v1980
  %3013 = vmatpush.bf16.msra.mxu0 %v1972
  %3014 = vmatpush.bf16.msra.mxu0 %v1964
  %3015 = vmatpush.bf16.msra.mxu0 %v1956
  %3016 = vmatpush.bf16.msra.mxu0 %v1948
  %3017 = vmatpush.bf16.msra.mxu0 %v1940
  %3018 = vmatmul.bf16.gmra.mxu0 %v2866
  %v3019 = vpop.f32.mrf.mxu0
  %v3020 = vadd.f32 %v3007, %v3019
  %v3021 = vpop.f32.mrf.mxu0
  %3022 = vdwg.mxu0
  %3023 = vmatpush.bf16.msra.mxu0 %v1933
  %3024 = vmatpush.bf16.msra.mxu0 %v1925
  %3025 = vmatpush.bf16.msra.mxu0 %v1917
  %3026 = vmatpush.bf16.msra.mxu0 %v1909
  %3027 = vmatpush.bf16.msra.mxu0 %v1901
  %3028 = vmatpush.bf16.msra.mxu0 %v1893
  %3029 = vmatpush.bf16.msra.mxu0 %v1885
  %3030 = vmatpush.bf16.msra.mxu0 %v1877
  %3031 = vmatmul.bf16.gmra.mxu0 %v2865
  %v3032 = vpop.f32.mrf.mxu0
  %v3033 = vadd.f32 0.0, %v3032
  %v3034 = vpop.f32.mrf.mxu0
  %3035 = vdwg.mxu0
  %3036 = vmatpush.bf16.msra.mxu0 %v1997
  %3037 = vmatpush.bf16.msra.mxu0 %v1989
  %3038 = vmatpush.bf16.msra.mxu0 %v1981
  %3039 = vmatpush.bf16.msra.mxu0 %v1973
  %3040 = vmatpush.bf16.msra.mxu0 %v1965
  %3041 = vmatpush.bf16.msra.mxu0 %v1957
  %3042 = vmatpush.bf16.msra.mxu0 %v1949
  %3043 = vmatpush.bf16.msra.mxu0 %v1941
  %3044 = vmatmul.bf16.gmra.mxu0 %v2866
  %v3045 = vpop.f32.mrf.mxu0
  %v3046 = vadd.f32 %v3033, %v3045
  %v3047 = vpop.f32.mrf.mxu0
  %3048 = vdwg.mxu0
  %3049 = vmatpush.bf16.msra.mxu0 %v1934
  %3050 = vmatpush.bf16.msra.mxu0 %v1926
  %3051 = vmatpush.bf16.msra.mxu0 %v1918
  %3052 = vmatpush.bf16.msra.mxu0 %v1910
  %3053 = vmatpush.bf16.msra.mxu0 %v1902
  %3054 = vmatpush.bf16.msra.mxu0 %v1894
  %3055 = vmatpush.bf16.msra.mxu0 %v1886
  %3056 = vmatpush.bf16.msra.mxu0 %v1878
  %3057 = vmatmul.bf16.gmra.mxu0 %v2865
  %v3058 = vpop.f32.mrf.mxu0
  %v3059 = vadd.f32 0.0, %v3058
  %v3060 = vpop.f32.mrf.mxu0
  %3061 = vdwg.mxu0
  %3062 = vmatpush.bf16.msra.mxu0 %v1998
  %3063 = vmatpush.bf16.msra.mxu0 %v1990
  %3064 = vmatpush.bf16.msra.mxu0 %v1982
  %3065 = vmatpush.bf16.msra.mxu0 %v1974
  %3066 = vmatpush.bf16.msra.mxu0 %v1966
  %3067 = vmatpush.bf16.msra.mxu0 %v1958
  %3068 = vmatpush.bf16.msra.mxu0 %v1950
  %3069 = vmatpush.bf16.msra.mxu0 %v1942
  %3070 = vmatmul.bf16.gmra.mxu0 %v2866
  %v3071 = vpop.f32.mrf.mxu0
  %v3072 = vadd.f32 %v3059, %v3071
  %v3073 = vpop.f32.mrf.mxu0
  %3074 = vdwg.mxu0
  %s3075 = smul.u32 2, 8
  %s3076 = smul.addr %s3075, 4
  %s3077 = scalar_lea.vmem [#allocation2], %s3076
  %v3078 = vld [vmem:[%s3077] sm:$0xff]
  %v3079 = vld [vmem:[%s3077 + $0x8] sm:$0xff]
  %v3080 = vunpack.c.l.bf16 %v3078
  %v3081 = vunpack.c.h.bf16 %v3078
  %v3082 = vunpack.c.l.bf16 %v3079
  %v3083 = vunpack.c.h.bf16 %v3079
  %s3084 = smul.u32 5, 8
  %s3085 = smul.addr %s3084, 4
  %s3086 = scalar_lea.vmem [#allocation2], %s3085
  %v3087 = vld [vmem:[%s3086 + $0x10] sm:$0xff]
  %v3088 = vld [vmem:[%s3086 + $0x18] sm:$0xff]
  %v3089 = vunpack.c.l.bf16 %v3087
  %v3090 = vunpack.c.h.bf16 %v3087
  %v3091 = vunpack.c.l.bf16 %v3088
  %v3092 = vunpack.c.h.bf16 %v3088
  %v3093 = vadd.f32 %v2890, %v3080
  %v3094 = vadd.f32 %v2916, %v3081
  %v3095 = vadd.f32 %v2942, %v3082
  %v3096 = vadd.f32 %v2968, %v3083
  %v3097 = vxor.u32 %v3093, 2147483648
  %v3098 = vxor.u32 %v3094, 2147483648
  %v3099 = vxor.u32 %v3095, 2147483648
  %v3100 = vmul.f32 %v3097, 1.442695
  %v3101 = vpow.pop %v3100
  %v3102 = vmul.f32 %v3098, 1.442695
  %v3103 = vpow.pop %v3102
  %v3104 = vmul.f32 %v3099, 1.442695
  %v3105 = vpow.pop %v3104
  %v3106 = vadd.f32 %v3101, 1.0
  %v3107 = vadd.f32 %v3103, 1.0
  %v3108 = vadd.f32 %v3105, 1.0
  %v3109 = vrcp.pop %v3106
  %v3110 = vmul.f32 %v3106, %v3109
  %v3111 = vsub.f32 1.0, %v3110
  %v3112 = vmul.f32 %v3109, %v3111
  %v3113 = vadd.f32 %v3109, %v3112
  %vm3114 = vweird.f32 %v3106
  %vm3115 = vweird.f32 %v3109
  %vm3116 = vmor %vm3114, %vm3115
  %v3117 = vsel %vm3116, %v3109, %v3113
  %v3118 = vand.u32 2147483647, %v3106
  %vm3119 = vcmp.eq.f32.partialorder %v3118, 8.507059e+37
  %v3120 = vand.u32 %v3106, 2147483648
  %v3121 = vor.u32 1.1754944e-38, %v3120
  %v3122 = vsel %vm3119, %v3121, %v3117
  %v3123 = vmul.f32 1.0, %v3122
  %v3124 = vrcp.pop %v3107
  %v3125 = vmul.f32 %v3107, %v3124
  %v3126 = vsub.f32 1.0, %v3125
  %v3127 = vmul.f32 %v3124, %v3126
  %v3128 = vadd.f32 %v3124, %v3127
  %vm3129 = vweird.f32 %v3107
  %vm3130 = vweird.f32 %v3124
  %vm3131 = vmor %vm3129, %vm3130
  %v3132 = vsel %vm3131, %v3124, %v3128
  %v3133 = vand.u32 2147483647, %v3107
  %vm3134 = vcmp.eq.f32.partialorder %v3133, 8.507059e+37
  %v3135 = vand.u32 %v3107, 2147483648
  %v3136 = vor.u32 1.1754944e-38, %v3135
  %v3137 = vsel %vm3134, %v3136, %v3132
  %v3138 = vmul.f32 1.0, %v3137
  %v3139 = vrcp.pop %v3108
  %v3140 = vmul.f32 %v3108, %v3139
  %v3141 = vsub.f32 1.0, %v3140
  %v3142 = vmul.f32 %v3139, %v3141
  %v3143 = vadd.f32 %v3139, %v3142
  %vm3144 = vweird.f32 %v3108
  %vm3145 = vweird.f32 %v3139
  %vm3146 = vmor %vm3144, %vm3145
  %v3147 = vsel %vm3146, %v3139, %v3143
  %v3148 = vand.u32 2147483647, %v3108
  %vm3149 = vcmp.eq.f32.partialorder %v3148, 8.507059e+37
  %v3150 = vand.u32 %v3108, 2147483648
  %v3151 = vor.u32 1.1754944e-38, %v3150
  %v3152 = vsel %vm3149, %v3151, %v3147
  %v3153 = vmul.f32 1.0, %v3152
  %v3154 = vtanh.pop %v3096
  %v3155 = vmul.f32 %v3138, %v2787
  %v3156 = vmul.f32 %v3123, %v3154
  %v3157 = vadd.f32 %v3155, %v3156
  %v3158 = vtanh.pop %v3157
  %v3159 = vmul.f32 %v3153, %v3158
  %v3160 = vadd.f32 %v2994, %v3089
  %v3161 = vadd.f32 %v3020, %v3090
  %v3162 = vadd.f32 %v3046, %v3091
  %v3163 = vadd.f32 %v3072, %v3092
  %v3164 = vxor.u32 %v3160, 2147483648
  %v3165 = vxor.u32 %v3161, 2147483648
  %v3166 = vxor.u32 %v3162, 2147483648
  %v3167 = vmul.f32 %v3164, 1.442695
  %v3168 = vpow.pop %v3167
  %v3169 = vmul.f32 %v3165, 1.442695
  %v3170 = vpow.pop %v3169
  %v3171 = vmul.f32 %v3166, 1.442695
  %v3172 = vpow.pop %v3171
  %v3173 = vadd.f32 %v3168, 1.0
  %v3174 = vadd.f32 %v3170, 1.0
  %v3175 = vadd.f32 %v3172, 1.0
  %v3176 = vrcp.pop %v3173
  %v3177 = vmul.f32 %v3173, %v3176
  %v3178 = vsub.f32 1.0, %v3177
  %v3179 = vmul.f32 %v3176, %v3178
  %v3180 = vadd.f32 %v3176, %v3179
  %vm3181 = vweird.f32 %v3173
  %vm3182 = vweird.f32 %v3176
  %vm3183 = vmor %vm3181, %vm3182
  %v3184 = vsel %vm3183, %v3176, %v3180
  %v3185 = vand.u32 2147483647, %v3173
  %vm3186 = vcmp.eq.f32.partialorder %v3185, 8.507059e+37
  %v3187 = vand.u32 %v3173, 2147483648
  %v3188 = vor.u32 1.1754944e-38, %v3187
  %v3189 = vsel %vm3186, %v3188, %v3184
  %v3190 = vmul.f32 1.0, %v3189
  %v3191 = vrcp.pop %v3174
  %v3192 = vmul.f32 %v3174, %v3191
  %v3193 = vsub.f32 1.0, %v3192
  %v3194 = vmul.f32 %v3191, %v3193
  %v3195 = vadd.f32 %v3191, %v3194
  %vm3196 = vweird.f32 %v3174
  %vm3197 = vweird.f32 %v3191
  %vm3198 = vmor %vm3196, %vm3197
  %v3199 = vsel %vm3198, %v3191, %v3195
  %v3200 = vand.u32 2147483647, %v3174
  %vm3201 = vcmp.eq.f32.partialorder %v3200, 8.507059e+37
  %v3202 = vand.u32 %v3174, 2147483648
  %v3203 = vor.u32 1.1754944e-38, %v3202
  %v3204 = vsel %vm3201, %v3203, %v3199
  %v3205 = vmul.f32 1.0, %v3204
  %v3206 = vrcp.pop %v3175
  %v3207 = vmul.f32 %v3175, %v3206
  %v3208 = vsub.f32 1.0, %v3207
  %v3209 = vmul.f32 %v3206, %v3208
  %v3210 = vadd.f32 %v3206, %v3209
  %vm3211 = vweird.f32 %v3175
  %vm3212 = vweird.f32 %v3206
  %vm3213 = vmor %vm3211, %vm3212
  %v3214 = vsel %vm3213, %v3206, %v3210
  %v3215 = vand.u32 2147483647, %v3175
  %vm3216 = vcmp.eq.f32.partialorder %v3215, 8.507059e+37
  %v3217 = vand.u32 %v3175, 2147483648
  %v3218 = vor.u32 1.1754944e-38, %v3217
  %v3219 = vsel %vm3216, %v3218, %v3214
  %v3220 = vmul.f32 1.0, %v3219
  %v3221 = vtanh.pop %v3163
  %v3222 = vmul.f32 %v3205, %v2854
  %v3223 = vmul.f32 %v3190, %v3221
  %v3224 = vadd.f32 %v3222, %v3223
  %v3225 = vtanh.pop %v3224
  %v3226 = vmul.f32 %v3220, %v3225
  %s3227 = smul.u32 2, 2
  %s3228 = smul.addr %s3227, 8
  %s3229 = scalar_lea.vmem %s3, %s3228
  %3230 = vst [vmem:[%s3229] sm:$0xff] %v3159
  %s3231 = smul.u32 5, 2
  %s3232 = smul.addr %s3231, 8
  %s3233 = scalar_lea.vmem %s3, %s3232
  %3234 = vst [vmem:[%s3233 + $0x8] sm:$0xff] %v3226
  %v3235 = vpack.c.bf16 %v3159, %v3159
  %v3236 = vpack.c.bf16 %v3226, %v3226
  %3237 = vmatpush.bf16.msra.mxu0 %v1927
  %3238 = vmatpush.bf16.msra.mxu0 %v1919
  %3239 = vmatpush.bf16.msra.mxu0 %v1911
  %3240 = vmatpush.bf16.msra.mxu0 %v1903
  %3241 = vmatpush.bf16.msra.mxu0 %v1895
  %3242 = vmatpush.bf16.msra.mxu0 %v1887
  %3243 = vmatpush.bf16.msra.mxu0 %v1879
  %3244 = vmatpush.bf16.msra.mxu0 %v1871
  %3245 = vmatmul.bf16.gmra.mxu0 %v3235
  %v3246 = vpop.f32.mrf.mxu0
  %v3247 = vadd.f32 0.0, %v3246
  %v3248 = vpop.f32.mrf.mxu0
  %3249 = vdwg.mxu0
  %3250 = vmatpush.bf16.msra.mxu0 %v1991
  %3251 = vmatpush.bf16.msra.mxu0 %v1983
  %3252 = vmatpush.bf16.msra.mxu0 %v1975
  %3253 = vmatpush.bf16.msra.mxu0 %v1967
  %3254 = vmatpush.bf16.msra.mxu0 %v1959
  %3255 = vmatpush.bf16.msra.mxu0 %v1951
  %3256 = vmatpush.bf16.msra.mxu0 %v1943
  %3257 = vmatpush.bf16.msra.mxu0 %v1935
  %3258 = vmatmul.bf16.gmra.mxu0 %v3236
  %v3259 = vpop.f32.mrf.mxu0
  %v3260 = vadd.f32 %v3247, %v3259
  %v3261 = vpop.f32.mrf.mxu0
  %3262 = vdwg.mxu0
  %3263 = vmatpush.bf16.msra.mxu0 %v1928
  %3264 = vmatpush.bf16.msra.mxu0 %v1920
  %3265 = vmatpush.bf16.msra.mxu0 %v1912
  %3266 = vmatpush.bf16.msra.mxu0 %v1904
  %3267 = vmatpush.bf16.msra.mxu0 %v1896
  %3268 = vmatpush.bf16.msra.mxu0 %v1888
  %3269 = vmatpush.bf16.msra.mxu0 %v1880
  %3270 = vmatpush.bf16.msra.mxu0 %v1872
  %3271 = vmatmul.bf16.gmra.mxu0 %v3235
  %v3272 = vpop.f32.mrf.mxu0
  %v3273 = vadd.f32 0.0, %v3272
  %v3274 = vpop.f32.mrf.mxu0
  %3275 = vdwg.mxu0
  %3276 = vmatpush.bf16.msra.mxu0 %v1992
  %3277 = vmatpush.bf16.msra.mxu0 %v1984
  %3278 = vmatpush.bf16.msra.mxu0 %v1976
  %3279 = vmatpush.bf16.msra.mxu0 %v1968
  %3280 = vmatpush.bf16.msra.mxu0 %v1960
  %3281 = vmatpush.bf16.msra.mxu0 %v1952
  %3282 = vmatpush.bf16.msra.mxu0 %v1944
  %3283 = vmatpush.bf16.msra.mxu0 %v1936
  %3284 = vmatmul.bf16.gmra.mxu0 %v3236
  %v3285 = vpop.f32.mrf.mxu0
  %v3286 = vadd.f32 %v3273, %v3285
  %v3287 = vpop.f32.mrf.mxu0
  %3288 = vdwg.mxu0
  %3289 = vmatpush.bf16.msra.mxu0 %v1929
  %3290 = vmatpush.bf16.msra.mxu0 %v1921
  %3291 = vmatpush.bf16.msra.mxu0 %v1913
  %3292 = vmatpush.bf16.msra.mxu0 %v1905
  %3293 = vmatpush.bf16.msra.mxu0 %v1897
  %3294 = vmatpush.bf16.msra.mxu0 %v1889
  %3295 = vmatpush.bf16.msra.mxu0 %v1881
  %3296 = vmatpush.bf16.msra.mxu0 %v1873
  %3297 = vmatmul.bf16.gmra.mxu0 %v3235
  %v3298 = vpop.f32.mrf.mxu0
  %v3299 = vadd.f32 0.0, %v3298
  %v3300 = vpop.f32.mrf.mxu0
  %3301 = vdwg.mxu0
  %3302 = vmatpush.bf16.msra.mxu0 %v1993
  %3303 = vmatpush.bf16.msra.mxu0 %v1985
  %3304 = vmatpush.bf16.msra.mxu0 %v1977
  %3305 = vmatpush.bf16.msra.mxu0 %v1969
  %3306 = vmatpush.bf16.msra.mxu0 %v1961
  %3307 = vmatpush.bf16.msra.mxu0 %v1953
  %3308 = vmatpush.bf16.msra.mxu0 %v1945
  %3309 = vmatpush.bf16.msra.mxu0 %v1937
  %3310 = vmatmul.bf16.gmra.mxu0 %v3236
  %v3311 = vpop.f32.mrf.mxu0
  %v3312 = vadd.f32 %v3299, %v3311
  %v3313 = vpop.f32.mrf.mxu0
  %3314 = vdwg.mxu0
  %3315 = vmatpush.bf16.msra.mxu0 %v1930
  %3316 = vmatpush.bf16.msra.mxu0 %v1922
  %3317 = vmatpush.bf16.msra.mxu0 %v1914
  %3318 = vmatpush.bf16.msra.mxu0 %v1906
  %3319 = vmatpush.bf16.msra.mxu0 %v1898
  %3320 = vmatpush.bf16.msra.mxu0 %v1890
  %3321 = vmatpush.bf16.msra.mxu0 %v1882
  %3322 = vmatpush.bf16.msra.mxu0 %v1874
  %3323 = vmatmul.bf16.gmra.mxu0 %v3235
  %v3324 = vpop.f32.mrf.mxu0
  %v3325 = vadd.f32 0.0, %v3324
  %v3326 = vpop.f32.mrf.mxu0
  %3327 = vdwg.mxu0
  %3328 = vmatpush.bf16.msra.mxu0 %v1994
  %3329 = vmatpush.bf16.msra.mxu0 %v1986
  %3330 = vmatpush.bf16.msra.mxu0 %v1978
  %3331 = vmatpush.bf16.msra.mxu0 %v1970
  %3332 = vmatpush.bf16.msra.mxu0 %v1962
  %3333 = vmatpush.bf16.msra.mxu0 %v1954
  %3334 = vmatpush.bf16.msra.mxu0 %v1946
  %3335 = vmatpush.bf16.msra.mxu0 %v1938
  %3336 = vmatmul.bf16.gmra.mxu0 %v3236
  %v3337 = vpop.f32.mrf.mxu0
  %v3338 = vadd.f32 %v3325, %v3337
  %v3339 = vpop.f32.mrf.mxu0
  %3340 = vdwg.mxu0
  %3341 = vmatpush.bf16.msra.mxu0 %v1931
  %3342 = vmatpush.bf16.msra.mxu0 %v1923
  %3343 = vmatpush.bf16.msra.mxu0 %v1915
  %3344 = vmatpush.bf16.msra.mxu0 %v1907
  %3345 = vmatpush.bf16.msra.mxu0 %v1899
  %3346 = vmatpush.bf16.msra.mxu0 %v1891
  %3347 = vmatpush.bf16.msra.mxu0 %v1883
  %3348 = vmatpush.bf16.msra.mxu0 %v1875
  %3349 = vmatmul.bf16.gmra.mxu0 %v3235
  %v3350 = vpop.f32.mrf.mxu0
  %v3351 = vadd.f32 0.0, %v3350
  %v3352 = vpop.f32.mrf.mxu0
  %3353 = vdwg.mxu0
  %3354 = vmatpush.bf16.msra.mxu0 %v1995
  %3355 = vmatpush.bf16.msra.mxu0 %v1987
  %3356 = vmatpush.bf16.msra.mxu0 %v1979
  %3357 = vmatpush.bf16.msra.mxu0 %v1971
  %3358 = vmatpush.bf16.msra.mxu0 %v1963
  %3359 = vmatpush.bf16.msra.mxu0 %v1955
  %3360 = vmatpush.bf16.msra.mxu0 %v1947
  %3361 = vmatpush.bf16.msra.mxu0 %v1939
  %3362 = vmatmul.bf16.gmra.mxu0 %v3236
  %v3363 = vpop.f32.mrf.mxu0
  %v3364 = vadd.f32 %v3351, %v3363
  %v3365 = vpop.f32.mrf.mxu0
  %3366 = vdwg.mxu0
  %3367 = vmatpush.bf16.msra.mxu0 %v1932
  %3368 = vmatpush.bf16.msra.mxu0 %v1924
  %3369 = vmatpush.bf16.msra.mxu0 %v1916
  %3370 = vmatpush.bf16.msra.mxu0 %v1908
  %3371 = vmatpush.bf16.msra.mxu0 %v1900
  %3372 = vmatpush.bf16.msra.mxu0 %v1892
  %3373 = vmatpush.bf16.msra.mxu0 %v1884
  %3374 = vmatpush.bf16.msra.mxu0 %v1876
  %3375 = vmatmul.bf16.gmra.mxu0 %v3235
  %v3376 = vpop.f32.mrf.mxu0
  %v3377 = vadd.f32 0.0, %v3376
  %v3378 = vpop.f32.mrf.mxu0
  %3379 = vdwg.mxu0
  %3380 = vmatpush.bf16.msra.mxu0 %v1996
  %3381 = vmatpush.bf16.msra.mxu0 %v1988
  %3382 = vmatpush.bf16.msra.mxu0 %v1980
  %3383 = vmatpush.bf16.msra.mxu0 %v1972
  %3384 = vmatpush.bf16.msra.mxu0 %v1964
  %3385 = vmatpush.bf16.msra.mxu0 %v1956
  %3386 = vmatpush.bf16.msra.mxu0 %v1948
  %3387 = vmatpush.bf16.msra.mxu0 %v1940
  %3388 = vmatmul.bf16.gmra.mxu0 %v3236
  %v3389 = vpop.f32.mrf.mxu0
  %v3390 = vadd.f32 %v3377, %v3389
  %v3391 = vpop.f32.mrf.mxu0
  %3392 = vdwg.mxu0
  %3393 = vmatpush.bf16.msra.mxu0 %v1933
  %3394 = vmatpush.bf16.msra.mxu0 %v1925
  %3395 = vmatpush.bf16.msra.mxu0 %v1917
  %3396 = vmatpush.bf16.msra.mxu0 %v1909
  %3397 = vmatpush.bf16.msra.mxu0 %v1901
  %3398 = vmatpush.bf16.msra.mxu0 %v1893
  %3399 = vmatpush.bf16.msra.mxu0 %v1885
  %3400 = vmatpush.bf16.msra.mxu0 %v1877
  %3401 = vmatmul.bf16.gmra.mxu0 %v3235
  %v3402 = vpop.f32.mrf.mxu0
  %v3403 = vadd.f32 0.0, %v3402
  %v3404 = vpop.f32.mrf.mxu0
  %3405 = vdwg.mxu0
  %3406 = vmatpush.bf16.msra.mxu0 %v1997
  %3407 = vmatpush.bf16.msra.mxu0 %v1989
  %3408 = vmatpush.bf16.msra.mxu0 %v1981
  %3409 = vmatpush.bf16.msra.mxu0 %v1973
  %3410 = vmatpush.bf16.msra.mxu0 %v1965
  %3411 = vmatpush.bf16.msra.mxu0 %v1957
  %3412 = vmatpush.bf16.msra.mxu0 %v1949
  %3413 = vmatpush.bf16.msra.mxu0 %v1941
  %3414 = vmatmul.bf16.gmra.mxu0 %v3236
  %v3415 = vpop.f32.mrf.mxu0
  %v3416 = vadd.f32 %v3403, %v3415
  %v3417 = vpop.f32.mrf.mxu0
  %3418 = vdwg.mxu0
  %3419 = vmatpush.bf16.msra.mxu0 %v1934
  %3420 = vmatpush.bf16.msra.mxu0 %v1926
  %3421 = vmatpush.bf16.msra.mxu0 %v1918
  %3422 = vmatpush.bf16.msra.mxu0 %v1910
  %3423 = vmatpush.bf16.msra.mxu0 %v1902
  %3424 = vmatpush.bf16.msra.mxu0 %v1894
  %3425 = vmatpush.bf16.msra.mxu0 %v1886
  %3426 = vmatpush.bf16.msra.mxu0 %v1878
  %3427 = vmatmul.bf16.gmra.mxu0 %v3235
  %v3428 = vpop.f32.mrf.mxu0
  %v3429 = vadd.f32 0.0, %v3428
  %v3430 = vpop.f32.mrf.mxu0
  %3431 = vdwg.mxu0
  %3432 = vmatpush.bf16.msra.mxu0 %v1998
  %3433 = vmatpush.bf16.msra.mxu0 %v1990
  %3434 = vmatpush.bf16.msra.mxu0 %v1982
  %3435 = vmatpush.bf16.msra.mxu0 %v1974
  %3436 = vmatpush.bf16.msra.mxu0 %v1966
  %3437 = vmatpush.bf16.msra.mxu0 %v1958
  %3438 = vmatpush.bf16.msra.mxu0 %v1950
  %3439 = vmatpush.bf16.msra.mxu0 %v1942
  %3440 = vmatmul.bf16.gmra.mxu0 %v3236
  %v3441 = vpop.f32.mrf.mxu0
  %v3442 = vadd.f32 %v3429, %v3441
  %v3443 = vpop.f32.mrf.mxu0
  %3444 = vdwg.mxu0
  %s3445 = smul.u32 3, 8
  %s3446 = smul.addr %s3445, 4
  %s3447 = scalar_lea.vmem [#allocation2], %s3446
  %v3448 = vld [vmem:[%s3447] sm:$0xff]
  %v3449 = vld [vmem:[%s3447 + $0x8] sm:$0xff]
  %v3450 = vunpack.c.l.bf16 %v3448
  %v3451 = vunpack.c.h.bf16 %v3448
  %v3452 = vunpack.c.l.bf16 %v3449
  %v3453 = vunpack.c.h.bf16 %v3449
  %s3454 = smul.u32 4, 8
  %s3455 = smul.addr %s3454, 4
  %s3456 = scalar_lea.vmem [#allocation2], %s3455
  %v3457 = vld [vmem:[%s3456 + $0x10] sm:$0xff]
  %v3458 = vld [vmem:[%s3456 + $0x18] sm:$0xff]
  %v3459 = vunpack.c.l.bf16 %v3457
  %v3460 = vunpack.c.h.bf16 %v3457
  %v3461 = vunpack.c.l.bf16 %v3458
  %v3462 = vunpack.c.h.bf16 %v3458
  %v3463 = vadd.f32 %v3260, %v3450
  %v3464 = vadd.f32 %v3286, %v3451
  %v3465 = vadd.f32 %v3312, %v3452
  %v3466 = vadd.f32 %v3338, %v3453
  %v3467 = vxor.u32 %v3463, 2147483648
  %v3468 = vxor.u32 %v3464, 2147483648
  %v3469 = vxor.u32 %v3465, 2147483648
  %v3470 = vmul.f32 %v3467, 1.442695
  %v3471 = vpow.pop %v3470
  %v3472 = vmul.f32 %v3468, 1.442695
  %v3473 = vpow.pop %v3472
  %v3474 = vmul.f32 %v3469, 1.442695
  %v3475 = vpow.pop %v3474
  %v3476 = vadd.f32 %v3471, 1.0
  %v3477 = vadd.f32 %v3473, 1.0
  %v3478 = vadd.f32 %v3475, 1.0
  %v3479 = vrcp.pop %v3476
  %v3480 = vmul.f32 %v3476, %v3479
  %v3481 = vsub.f32 1.0, %v3480
  %v3482 = vmul.f32 %v3479, %v3481
  %v3483 = vadd.f32 %v3479, %v3482
  %vm3484 = vweird.f32 %v3476
  %vm3485 = vweird.f32 %v3479
  %vm3486 = vmor %vm3484, %vm3485
  %v3487 = vsel %vm3486, %v3479, %v3483
  %v3488 = vand.u32 2147483647, %v3476
  %vm3489 = vcmp.eq.f32.partialorder %v3488, 8.507059e+37
  %v3490 = vand.u32 %v3476, 2147483648
  %v3491 = vor.u32 1.1754944e-38, %v3490
  %v3492 = vsel %vm3489, %v3491, %v3487
  %v3493 = vmul.f32 1.0, %v3492
  %v3494 = vrcp.pop %v3477
  %v3495 = vmul.f32 %v3477, %v3494
  %v3496 = vsub.f32 1.0, %v3495
  %v3497 = vmul.f32 %v3494, %v3496
  %v3498 = vadd.f32 %v3494, %v3497
  %vm3499 = vweird.f32 %v3477
  %vm3500 = vweird.f32 %v3494
  %vm3501 = vmor %vm3499, %vm3500
  %v3502 = vsel %vm3501, %v3494, %v3498
  %v3503 = vand.u32 2147483647, %v3477
  %vm3504 = vcmp.eq.f32.partialorder %v3503, 8.507059e+37
  %v3505 = vand.u32 %v3477, 2147483648
  %v3506 = vor.u32 1.1754944e-38, %v3505
  %v3507 = vsel %vm3504, %v3506, %v3502
  %v3508 = vmul.f32 1.0, %v3507
  %v3509 = vrcp.pop %v3478
  %v3510 = vmul.f32 %v3478, %v3509
  %v3511 = vsub.f32 1.0, %v3510
  %v3512 = vmul.f32 %v3509, %v3511
  %v3513 = vadd.f32 %v3509, %v3512
  %vm3514 = vweird.f32 %v3478
  %vm3515 = vweird.f32 %v3509
  %vm3516 = vmor %vm3514, %vm3515
  %v3517 = vsel %vm3516, %v3509, %v3513
  %v3518 = vand.u32 2147483647, %v3478
  %vm3519 = vcmp.eq.f32.partialorder %v3518, 8.507059e+37
  %v3520 = vand.u32 %v3478, 2147483648
  %v3521 = vor.u32 1.1754944e-38, %v3520
  %v3522 = vsel %vm3519, %v3521, %v3517
  %v3523 = vmul.f32 1.0, %v3522
  %v3524 = vtanh.pop %v3466
  %v3525 = vmul.f32 %v3508, %v3157
  %v3526 = vmul.f32 %v3493, %v3524
  %v3527 = vadd.f32 %v3525, %v3526
  %v3528 = vtanh.pop %v3527
  %v3529 = vmul.f32 %v3523, %v3528
  %v3530 = vadd.f32 %v3364, %v3459
  %v3531 = vadd.f32 %v3390, %v3460
  %v3532 = vadd.f32 %v3416, %v3461
  %v3533 = vadd.f32 %v3442, %v3462
  %v3534 = vxor.u32 %v3530, 2147483648
  %v3535 = vxor.u32 %v3531, 2147483648
  %v3536 = vxor.u32 %v3532, 2147483648
  %v3537 = vmul.f32 %v3534, 1.442695
  %v3538 = vpow.pop %v3537
  %v3539 = vmul.f32 %v3535, 1.442695
  %v3540 = vpow.pop %v3539
  %v3541 = vmul.f32 %v3536, 1.442695
  %v3542 = vpow.pop %v3541
  %v3543 = vadd.f32 %v3538, 1.0
  %v3544 = vadd.f32 %v3540, 1.0
  %v3545 = vadd.f32 %v3542, 1.0
  %v3546 = vrcp.pop %v3543
  %v3547 = vmul.f32 %v3543, %v3546
  %v3548 = vsub.f32 1.0, %v3547
  %v3549 = vmul.f32 %v3546, %v3548
  %v3550 = vadd.f32 %v3546, %v3549
  %vm3551 = vweird.f32 %v3543
  %vm3552 = vweird.f32 %v3546
  %vm3553 = vmor %vm3551, %vm3552
  %v3554 = vsel %vm3553, %v3546, %v3550
  %v3555 = vand.u32 2147483647, %v3543
  %vm3556 = vcmp.eq.f32.partialorder %v3555, 8.507059e+37
  %v3557 = vand.u32 %v3543, 2147483648
  %v3558 = vor.u32 1.1754944e-38, %v3557
  %v3559 = vsel %vm3556, %v3558, %v3554
  %v3560 = vmul.f32 1.0, %v3559
  %v3561 = vrcp.pop %v3544
  %v3562 = vmul.f32 %v3544, %v3561
  %v3563 = vsub.f32 1.0, %v3562
  %v3564 = vmul.f32 %v3561, %v3563
  %v3565 = vadd.f32 %v3561, %v3564
  %vm3566 = vweird.f32 %v3544
  %vm3567 = vweird.f32 %v3561
  %vm3568 = vmor %vm3566, %vm3567
  %v3569 = vsel %vm3568, %v3561, %v3565
  %v3570 = vand.u32 2147483647, %v3544
  %vm3571 = vcmp.eq.f32.partialorder %v3570, 8.507059e+37
  %v3572 = vand.u32 %v3544, 2147483648
  %v3573 = vor.u32 1.1754944e-38, %v3572
  %v3574 = vsel %vm3571, %v3573, %v3569
  %v3575 = vmul.f32 1.0, %v3574
  %v3576 = vrcp.pop %v3545
  %v3577 = vmul.f32 %v3545, %v3576
  %v3578 = vsub.f32 1.0, %v3577
  %v3579 = vmul.f32 %v3576, %v3578
  %v3580 = vadd.f32 %v3576, %v3579
  %vm3581 = vweird.f32 %v3545
  %vm3582 = vweird.f32 %v3576
  %vm3583 = vmor %vm3581, %vm3582
  %v3584 = vsel %vm3583, %v3576, %v3580
  %v3585 = vand.u32 2147483647, %v3545
  %vm3586 = vcmp.eq.f32.partialorder %v3585, 8.507059e+37
  %v3587 = vand.u32 %v3545, 2147483648
  %v3588 = vor.u32 1.1754944e-38, %v3587
  %v3589 = vsel %vm3586, %v3588, %v3584
  %v3590 = vmul.f32 1.0, %v3589
  %v3591 = vtanh.pop %v3533
  %v3592 = vmul.f32 %v3575, %v3224
  %v3593 = vmul.f32 %v3560, %v3591
  %v3594 = vadd.f32 %v3592, %v3593
  %v3595 = vtanh.pop %v3594
  %v3596 = vmul.f32 %v3590, %v3595
  %s3597 = smul.u32 3, 2
  %s3598 = smul.addr %s3597, 8
  %s3599 = scalar_lea.vmem %s3, %s3598
  %3600 = vst [vmem:[%s3599] sm:$0xff] %v3529
  %s3601 = smul.u32 4, 2
  %s3602 = smul.addr %s3601, 8
  %s3603 = scalar_lea.vmem %s3, %s3602
  %3604 = vst [vmem:[%s3603 + $0x8] sm:$0xff] %v3596
  %v3605 = vpack.c.bf16 %v3529, %v3529
  %v3606 = vpack.c.bf16 %v3596, %v3596
  %3607 = vmatpush.bf16.msra.mxu0 %v1927
  %3608 = vmatpush.bf16.msra.mxu0 %v1919
  %3609 = vmatpush.bf16.msra.mxu0 %v1911
  %3610 = vmatpush.bf16.msra.mxu0 %v1903
  %3611 = vmatpush.bf16.msra.mxu0 %v1895
  %3612 = vmatpush.bf16.msra.mxu0 %v1887
  %3613 = vmatpush.bf16.msra.mxu0 %v1879
  %3614 = vmatpush.bf16.msra.mxu0 %v1871
  %3615 = vmatmul.bf16.gmra.mxu0 %v3605
  %v3616 = vpop.f32.mrf.mxu0
  %v3617 = vadd.f32 0.0, %v3616
  %v3618 = vpop.f32.mrf.mxu0
  %3619 = vdwg.mxu0
  %3620 = vmatpush.bf16.msra.mxu0 %v1991
  %3621 = vmatpush.bf16.msra.mxu0 %v1983
  %3622 = vmatpush.bf16.msra.mxu0 %v1975
  %3623 = vmatpush.bf16.msra.mxu0 %v1967
  %3624 = vmatpush.bf16.msra.mxu0 %v1959
  %3625 = vmatpush.bf16.msra.mxu0 %v1951
  %3626 = vmatpush.bf16.msra.mxu0 %v1943
  %3627 = vmatpush.bf16.msra.mxu0 %v1935
  %3628 = vmatmul.bf16.gmra.mxu0 %v3606
  %v3629 = vpop.f32.mrf.mxu0
  %v3630 = vadd.f32 %v3617, %v3629
  %v3631 = vpop.f32.mrf.mxu0
  %3632 = vdwg.mxu0
  %3633 = vmatpush.bf16.msra.mxu0 %v1928
  %3634 = vmatpush.bf16.msra.mxu0 %v1920
  %3635 = vmatpush.bf16.msra.mxu0 %v1912
  %3636 = vmatpush.bf16.msra.mxu0 %v1904
  %3637 = vmatpush.bf16.msra.mxu0 %v1896
  %3638 = vmatpush.bf16.msra.mxu0 %v1888
  %3639 = vmatpush.bf16.msra.mxu0 %v1880
  %3640 = vmatpush.bf16.msra.mxu0 %v1872
  %3641 = vmatmul.bf16.gmra.mxu0 %v3605
  %v3642 = vpop.f32.mrf.mxu0
  %v3643 = vadd.f32 0.0, %v3642
  %v3644 = vpop.f32.mrf.mxu0
  %3645 = vdwg.mxu0
  %3646 = vmatpush.bf16.msra.mxu0 %v1992
  %3647 = vmatpush.bf16.msra.mxu0 %v1984
  %3648 = vmatpush.bf16.msra.mxu0 %v1976
  %3649 = vmatpush.bf16.msra.mxu0 %v1968
  %3650 = vmatpush.bf16.msra.mxu0 %v1960
  %3651 = vmatpush.bf16.msra.mxu0 %v1952
  %3652 = vmatpush.bf16.msra.mxu0 %v1944
  %3653 = vmatpush.bf16.msra.mxu0 %v1936
  %3654 = vmatmul.bf16.gmra.mxu0 %v3606
  %v3655 = vpop.f32.mrf.mxu0
  %v3656 = vadd.f32 %v3643, %v3655
  %v3657 = vpop.f32.mrf.mxu0
  %3658 = vdwg.mxu0
  %3659 = vmatpush.bf16.msra.mxu0 %v1929
  %3660 = vmatpush.bf16.msra.mxu0 %v1921
  %3661 = vmatpush.bf16.msra.mxu0 %v1913
  %3662 = vmatpush.bf16.msra.mxu0 %v1905
  %3663 = vmatpush.bf16.msra.mxu0 %v1897
  %3664 = vmatpush.bf16.msra.mxu0 %v1889
  %3665 = vmatpush.bf16.msra.mxu0 %v1881
  %3666 = vmatpush.bf16.msra.mxu0 %v1873
  %3667 = vmatmul.bf16.gmra.mxu0 %v3605
  %v3668 = vpop.f32.mrf.mxu0
  %v3669 = vadd.f32 0.0, %v3668
  %v3670 = vpop.f32.mrf.mxu0
  %3671 = vdwg.mxu0
  %3672 = vmatpush.bf16.msra.mxu0 %v1993
  %3673 = vmatpush.bf16.msra.mxu0 %v1985
  %3674 = vmatpush.bf16.msra.mxu0 %v1977
  %3675 = vmatpush.bf16.msra.mxu0 %v1969
  %3676 = vmatpush.bf16.msra.mxu0 %v1961
  %3677 = vmatpush.bf16.msra.mxu0 %v1953
  %3678 = vmatpush.bf16.msra.mxu0 %v1945
  %3679 = vmatpush.bf16.msra.mxu0 %v1937
  %3680 = vmatmul.bf16.gmra.mxu0 %v3606
  %v3681 = vpop.f32.mrf.mxu0
  %v3682 = vadd.f32 %v3669, %v3681
  %v3683 = vpop.f32.mrf.mxu0
  %3684 = vdwg.mxu0
  %3685 = vmatpush.bf16.msra.mxu0 %v1930
  %3686 = vmatpush.bf16.msra.mxu0 %v1922
  %3687 = vmatpush.bf16.msra.mxu0 %v1914
  %3688 = vmatpush.bf16.msra.mxu0 %v1906
  %3689 = vmatpush.bf16.msra.mxu0 %v1898
  %3690 = vmatpush.bf16.msra.mxu0 %v1890
  %3691 = vmatpush.bf16.msra.mxu0 %v1882
  %3692 = vmatpush.bf16.msra.mxu0 %v1874
  %3693 = vmatmul.bf16.gmra.mxu0 %v3605
  %v3694 = vpop.f32.mrf.mxu0
  %v3695 = vadd.f32 0.0, %v3694
  %v3696 = vpop.f32.mrf.mxu0
  %3697 = vdwg.mxu0
  %3698 = vmatpush.bf16.msra.mxu0 %v1994
  %3699 = vmatpush.bf16.msra.mxu0 %v1986
  %3700 = vmatpush.bf16.msra.mxu0 %v1978
  %3701 = vmatpush.bf16.msra.mxu0 %v1970
  %3702 = vmatpush.bf16.msra.mxu0 %v1962
  %3703 = vmatpush.bf16.msra.mxu0 %v1954
  %3704 = vmatpush.bf16.msra.mxu0 %v1946
  %3705 = vmatpush.bf16.msra.mxu0 %v1938
  %3706 = vmatmul.bf16.gmra.mxu0 %v3606
  %v3707 = vpop.f32.mrf.mxu0
  %v3708 = vadd.f32 %v3695, %v3707
  %v3709 = vpop.f32.mrf.mxu0
  %3710 = vdwg.mxu0
  %3711 = vmatpush.bf16.msra.mxu0 %v1931
  %3712 = vmatpush.bf16.msra.mxu0 %v1923
  %3713 = vmatpush.bf16.msra.mxu0 %v1915
  %3714 = vmatpush.bf16.msra.mxu0 %v1907
  %3715 = vmatpush.bf16.msra.mxu0 %v1899
  %3716 = vmatpush.bf16.msra.mxu0 %v1891
  %3717 = vmatpush.bf16.msra.mxu0 %v1883
  %3718 = vmatpush.bf16.msra.mxu0 %v1875
  %3719 = vmatmul.bf16.gmra.mxu0 %v3605
  %v3720 = vpop.f32.mrf.mxu0
  %v3721 = vadd.f32 0.0, %v3720
  %v3722 = vpop.f32.mrf.mxu0
  %3723 = vdwg.mxu0
  %3724 = vmatpush.bf16.msra.mxu0 %v1995
  %3725 = vmatpush.bf16.msra.mxu0 %v1987
  %3726 = vmatpush.bf16.msra.mxu0 %v1979
  %3727 = vmatpush.bf16.msra.mxu0 %v1971
  %3728 = vmatpush.bf16.msra.mxu0 %v1963
  %3729 = vmatpush.bf16.msra.mxu0 %v1955
  %3730 = vmatpush.bf16.msra.mxu0 %v1947
  %3731 = vmatpush.bf16.msra.mxu0 %v1939
  %3732 = vmatmul.bf16.gmra.mxu0 %v3606
  %v3733 = vpop.f32.mrf.mxu0
  %v3734 = vadd.f32 %v3721, %v3733
  %v3735 = vpop.f32.mrf.mxu0
  %3736 = vdwg.mxu0
  %3737 = vmatpush.bf16.msra.mxu0 %v1932
  %3738 = vmatpush.bf16.msra.mxu0 %v1924
  %3739 = vmatpush.bf16.msra.mxu0 %v1916
  %3740 = vmatpush.bf16.msra.mxu0 %v1908
  %3741 = vmatpush.bf16.msra.mxu0 %v1900
  %3742 = vmatpush.bf16.msra.mxu0 %v1892
  %3743 = vmatpush.bf16.msra.mxu0 %v1884
  %3744 = vmatpush.bf16.msra.mxu0 %v1876
  %3745 = vmatmul.bf16.gmra.mxu0 %v3605
  %v3746 = vpop.f32.mrf.mxu0
  %v3747 = vadd.f32 0.0, %v3746
  %v3748 = vpop.f32.mrf.mxu0
  %3749 = vdwg.mxu0
  %3750 = vmatpush.bf16.msra.mxu0 %v1996
  %3751 = vmatpush.bf16.msra.mxu0 %v1988
  %3752 = vmatpush.bf16.msra.mxu0 %v1980
  %3753 = vmatpush.bf16.msra.mxu0 %v1972
  %3754 = vmatpush.bf16.msra.mxu0 %v1964
  %3755 = vmatpush.bf16.msra.mxu0 %v1956
  %3756 = vmatpush.bf16.msra.mxu0 %v1948
  %3757 = vmatpush.bf16.msra.mxu0 %v1940
  %3758 = vmatmul.bf16.gmra.mxu0 %v3606
  %v3759 = vpop.f32.mrf.mxu0
  %v3760 = vadd.f32 %v3747, %v3759
  %v3761 = vpop.f32.mrf.mxu0
  %3762 = vdwg.mxu0
  %3763 = vmatpush.bf16.msra.mxu0 %v1933
  %3764 = vmatpush.bf16.msra.mxu0 %v1925
  %3765 = vmatpush.bf16.msra.mxu0 %v1917
  %3766 = vmatpush.bf16.msra.mxu0 %v1909
  %3767 = vmatpush.bf16.msra.mxu0 %v1901
  %3768 = vmatpush.bf16.msra.mxu0 %v1893
  %3769 = vmatpush.bf16.msra.mxu0 %v1885
  %3770 = vmatpush.bf16.msra.mxu0 %v1877
  %3771 = vmatmul.bf16.gmra.mxu0 %v3605
  %v3772 = vpop.f32.mrf.mxu0
  %v3773 = vadd.f32 0.0, %v3772
  %v3774 = vpop.f32.mrf.mxu0
  %3775 = vdwg.mxu0
  %3776 = vmatpush.bf16.msra.mxu0 %v1997
  %3777 = vmatpush.bf16.msra.mxu0 %v1989
  %3778 = vmatpush.bf16.msra.mxu0 %v1981
  %3779 = vmatpush.bf16.msra.mxu0 %v1973
  %3780 = vmatpush.bf16.msra.mxu0 %v1965
  %3781 = vmatpush.bf16.msra.mxu0 %v1957
  %3782 = vmatpush.bf16.msra.mxu0 %v1949
  %3783 = vmatpush.bf16.msra.mxu0 %v1941
  %3784 = vmatmul.bf16.gmra.mxu0 %v3606
  %v3785 = vpop.f32.mrf.mxu0
  %v3786 = vadd.f32 %v3773, %v3785
  %v3787 = vpop.f32.mrf.mxu0
  %3788 = vdwg.mxu0
  %3789 = vmatpush.bf16.msra.mxu0 %v1934
  %3790 = vmatpush.bf16.msra.mxu0 %v1926
  %3791 = vmatpush.bf16.msra.mxu0 %v1918
  %3792 = vmatpush.bf16.msra.mxu0 %v1910
  %3793 = vmatpush.bf16.msra.mxu0 %v1902
  %3794 = vmatpush.bf16.msra.mxu0 %v1894
  %3795 = vmatpush.bf16.msra.mxu0 %v1886
  %3796 = vmatpush.bf16.msra.mxu0 %v1878
  %3797 = vmatmul.bf16.gmra.mxu0 %v3605
  %v3798 = vpop.f32.mrf.mxu0
  %v3799 = vadd.f32 0.0, %v3798
  %v3800 = vpop.f32.mrf.mxu0
  %3801 = vdwg.mxu0
  %3802 = vmatpush.bf16.msra.mxu0 %v1998
  %3803 = vmatpush.bf16.msra.mxu0 %v1990
  %3804 = vmatpush.bf16.msra.mxu0 %v1982
  %3805 = vmatpush.bf16.msra.mxu0 %v1974
  %3806 = vmatpush.bf16.msra.mxu0 %v1966
  %3807 = vmatpush.bf16.msra.mxu0 %v1958
  %3808 = vmatpush.bf16.msra.mxu0 %v1950
  %3809 = vmatpush.bf16.msra.mxu0 %v1942
  %3810 = vmatmul.bf16.gmra.mxu0 %v3606
  %v3811 = vpop.f32.mrf.mxu0
  %v3812 = vadd.f32 %v3799, %v3811
  %v3813 = vpop.f32.mrf.mxu0
  %3814 = vdwg.mxu0
  %v3815 = vld [vmem:[%s3456] sm:$0xff]
  %v3816 = vld [vmem:[%s3456 + $0x8] sm:$0xff]
  %v3817 = vunpack.c.l.bf16 %v3815
  %v3818 = vunpack.c.h.bf16 %v3815
  %v3819 = vunpack.c.l.bf16 %v3816
  %v3820 = vunpack.c.h.bf16 %v3816
  %v3821 = vld [vmem:[%s3447 + $0x10] sm:$0xff]
  %v3822 = vld [vmem:[%s3447 + $0x18] sm:$0xff]
  %v3823 = vunpack.c.l.bf16 %v3821
  %v3824 = vunpack.c.h.bf16 %v3821
  %v3825 = vunpack.c.l.bf16 %v3822
  %v3826 = vunpack.c.h.bf16 %v3822
  %v3827 = vadd.f32 %v3630, %v3817
  %v3828 = vadd.f32 %v3656, %v3818
  %v3829 = vadd.f32 %v3682, %v3819
  %v3830 = vadd.f32 %v3708, %v3820
  %v3831 = vxor.u32 %v3827, 2147483648
  %v3832 = vxor.u32 %v3828, 2147483648
  %v3833 = vxor.u32 %v3829, 2147483648
  %v3834 = vmul.f32 %v3831, 1.442695
  %v3835 = vpow.pop %v3834
  %v3836 = vmul.f32 %v3832, 1.442695
  %v3837 = vpow.pop %v3836
  %v3838 = vmul.f32 %v3833, 1.442695
  %v3839 = vpow.pop %v3838
  %v3840 = vadd.f32 %v3835, 1.0
  %v3841 = vadd.f32 %v3837, 1.0
  %v3842 = vadd.f32 %v3839, 1.0
  %v3843 = vrcp.pop %v3840
  %v3844 = vmul.f32 %v3840, %v3843
  %v3845 = vsub.f32 1.0, %v3844
  %v3846 = vmul.f32 %v3843, %v3845
  %v3847 = vadd.f32 %v3843, %v3846
  %vm3848 = vweird.f32 %v3840
  %vm3849 = vweird.f32 %v3843
  %vm3850 = vmor %vm3848, %vm3849
  %v3851 = vsel %vm3850, %v3843, %v3847
  %v3852 = vand.u32 2147483647, %v3840
  %vm3853 = vcmp.eq.f32.partialorder %v3852, 8.507059e+37
  %v3854 = vand.u32 %v3840, 2147483648
  %v3855 = vor.u32 1.1754944e-38, %v3854
  %v3856 = vsel %vm3853, %v3855, %v3851
  %v3857 = vmul.f32 1.0, %v3856
  %v3858 = vrcp.pop %v3841
  %v3859 = vmul.f32 %v3841, %v3858
  %v3860 = vsub.f32 1.0, %v3859
  %v3861 = vmul.f32 %v3858, %v3860
  %v3862 = vadd.f32 %v3858, %v3861
  %vm3863 = vweird.f32 %v3841
  %vm3864 = vweird.f32 %v3858
  %vm3865 = vmor %vm3863, %vm3864
  %v3866 = vsel %vm3865, %v3858, %v3862
  %v3867 = vand.u32 2147483647, %v3841
  %vm3868 = vcmp.eq.f32.partialorder %v3867, 8.507059e+37
  %v3869 = vand.u32 %v3841, 2147483648
  %v3870 = vor.u32 1.1754944e-38, %v3869
  %v3871 = vsel %vm3868, %v3870, %v3866
  %v3872 = vmul.f32 1.0, %v3871
  %v3873 = vrcp.pop %v3842
  %v3874 = vmul.f32 %v3842, %v3873
  %v3875 = vsub.f32 1.0, %v3874
  %v3876 = vmul.f32 %v3873, %v3875
  %v3877 = vadd.f32 %v3873, %v3876
  %vm3878 = vweird.f32 %v3842
  %vm3879 = vweird.f32 %v3873
  %vm3880 = vmor %vm3878, %vm3879
  %v3881 = vsel %vm3880, %v3873, %v3877
  %v3882 = vand.u32 2147483647, %v3842
  %vm3883 = vcmp.eq.f32.partialorder %v3882, 8.507059e+37
  %v3884 = vand.u32 %v3842, 2147483648
  %v3885 = vor.u32 1.1754944e-38, %v3884
  %v3886 = vsel %vm3883, %v3885, %v3881
  %v3887 = vmul.f32 1.0, %v3886
  %v3888 = vtanh.pop %v3830
  %v3889 = vmul.f32 %v3872, %v3527
  %v3890 = vmul.f32 %v3857, %v3888
  %v3891 = vadd.f32 %v3889, %v3890
  %v3892 = vtanh.pop %v3891
  %v3893 = vmul.f32 %v3887, %v3892
  %v3894 = vadd.f32 %v3734, %v3823
  %v3895 = vadd.f32 %v3760, %v3824
  %v3896 = vadd.f32 %v3786, %v3825
  %v3897 = vadd.f32 %v3812, %v3826
  %v3898 = vxor.u32 %v3894, 2147483648
  %v3899 = vxor.u32 %v3895, 2147483648
  %v3900 = vxor.u32 %v3896, 2147483648
  %v3901 = vmul.f32 %v3898, 1.442695
  %v3902 = vpow.pop %v3901
  %v3903 = vmul.f32 %v3899, 1.442695
  %v3904 = vpow.pop %v3903
  %v3905 = vmul.f32 %v3900, 1.442695
  %v3906 = vpow.pop %v3905
  %v3907 = vadd.f32 %v3902, 1.0
  %v3908 = vadd.f32 %v3904, 1.0
  %v3909 = vadd.f32 %v3906, 1.0
  %v3910 = vrcp.pop %v3907
  %v3911 = vmul.f32 %v3907, %v3910
  %v3912 = vsub.f32 1.0, %v3911
  %v3913 = vmul.f32 %v3910, %v3912
  %v3914 = vadd.f32 %v3910, %v3913
  %vm3915 = vweird.f32 %v3907
  %vm3916 = vweird.f32 %v3910
  %vm3917 = vmor %vm3915, %vm3916
  %v3918 = vsel %vm3917, %v3910, %v3914
  %v3919 = vand.u32 2147483647, %v3907
  %vm3920 = vcmp.eq.f32.partialorder %v3919, 8.507059e+37
  %v3921 = vand.u32 %v3907, 2147483648
  %v3922 = vor.u32 1.1754944e-38, %v3921
  %v3923 = vsel %vm3920, %v3922, %v3918
  %v3924 = vmul.f32 1.0, %v3923
  %v3925 = vrcp.pop %v3908
  %v3926 = vmul.f32 %v3908, %v3925
  %v3927 = vsub.f32 1.0, %v3926
  %v3928 = vmul.f32 %v3925, %v3927
  %v3929 = vadd.f32 %v3925, %v3928
  %vm3930 = vweird.f32 %v3908
  %vm3931 = vweird.f32 %v3925
  %vm3932 = vmor %vm3930, %vm3931
  %v3933 = vsel %vm3932, %v3925, %v3929
  %v3934 = vand.u32 2147483647, %v3908
  %vm3935 = vcmp.eq.f32.partialorder %v3934, 8.507059e+37
  %v3936 = vand.u32 %v3908, 2147483648
  %v3937 = vor.u32 1.1754944e-38, %v3936
  %v3938 = vsel %vm3935, %v3937, %v3933
  %v3939 = vmul.f32 1.0, %v3938
  %v3940 = vrcp.pop %v3909
  %v3941 = vmul.f32 %v3909, %v3940
  %v3942 = vsub.f32 1.0, %v3941
  %v3943 = vmul.f32 %v3940, %v3942
  %v3944 = vadd.f32 %v3940, %v3943
  %vm3945 = vweird.f32 %v3909
  %vm3946 = vweird.f32 %v3940
  %vm3947 = vmor %vm3945, %vm3946
  %v3948 = vsel %vm3947, %v3940, %v3944
  %v3949 = vand.u32 2147483647, %v3909
  %vm3950 = vcmp.eq.f32.partialorder %v3949, 8.507059e+37
  %v3951 = vand.u32 %v3909, 2147483648
  %v3952 = vor.u32 1.1754944e-38, %v3951
  %v3953 = vsel %vm3950, %v3952, %v3948
  %v3954 = vmul.f32 1.0, %v3953
  %v3955 = vtanh.pop %v3897
  %v3956 = vmul.f32 %v3939, %v3594
  %v3957 = vmul.f32 %v3924, %v3955
  %v3958 = vadd.f32 %v3956, %v3957
  %v3959 = vtanh.pop %v3958
  %v3960 = vmul.f32 %v3954, %v3959
  %3961 = vst [vmem:[%s3603] sm:$0xff] %v3893
  %3962 = vst [vmem:[%s3599 + $0x8] sm:$0xff] %v3960
  %v3963 = vpack.c.bf16 %v3893, %v3893
  %v3964 = vpack.c.bf16 %v3960, %v3960
  %3965 = vmatpush.bf16.msra.mxu0 %v1927
  %3966 = vmatpush.bf16.msra.mxu0 %v1919
  %3967 = vmatpush.bf16.msra.mxu0 %v1911
  %3968 = vmatpush.bf16.msra.mxu0 %v1903
  %3969 = vmatpush.bf16.msra.mxu0 %v1895
  %3970 = vmatpush.bf16.msra.mxu0 %v1887
  %3971 = vmatpush.bf16.msra.mxu0 %v1879
  %3972 = vmatpush.bf16.msra.mxu0 %v1871
  %3973 = vmatmul.bf16.gmra.mxu0 %v3963
  %v3974 = vpop.f32.mrf.mxu0
  %v3975 = vadd.f32 0.0, %v3974
  %v3976 = vpop.f32.mrf.mxu0
  %3977 = vdwg.mxu0
  %3978 = vmatpush.bf16.msra.mxu0 %v1991
  %3979 = vmatpush.bf16.msra.mxu0 %v1983
  %3980 = vmatpush.bf16.msra.mxu0 %v1975
  %3981 = vmatpush.bf16.msra.mxu0 %v1967
  %3982 = vmatpush.bf16.msra.mxu0 %v1959
  %3983 = vmatpush.bf16.msra.mxu0 %v1951
  %3984 = vmatpush.bf16.msra.mxu0 %v1943
  %3985 = vmatpush.bf16.msra.mxu0 %v1935
  %3986 = vmatmul.bf16.gmra.mxu0 %v3964
  %v3987 = vpop.f32.mrf.mxu0
  %v3988 = vadd.f32 %v3975, %v3987
  %v3989 = vpop.f32.mrf.mxu0
  %3990 = vdwg.mxu0
  %3991 = vmatpush.bf16.msra.mxu0 %v1928
  %3992 = vmatpush.bf16.msra.mxu0 %v1920
  %3993 = vmatpush.bf16.msra.mxu0 %v1912
  %3994 = vmatpush.bf16.msra.mxu0 %v1904
  %3995 = vmatpush.bf16.msra.mxu0 %v1896
  %3996 = vmatpush.bf16.msra.mxu0 %v1888
  %3997 = vmatpush.bf16.msra.mxu0 %v1880
  %3998 = vmatpush.bf16.msra.mxu0 %v1872
  %3999 = vmatmul.bf16.gmra.mxu0 %v3963
  %v4000 = vpop.f32.mrf.mxu0
  %v4001 = vadd.f32 0.0, %v4000
  %v4002 = vpop.f32.mrf.mxu0
  %4003 = vdwg.mxu0
  %4004 = vmatpush.bf16.msra.mxu0 %v1992
  %4005 = vmatpush.bf16.msra.mxu0 %v1984
  %4006 = vmatpush.bf16.msra.mxu0 %v1976
  %4007 = vmatpush.bf16.msra.mxu0 %v1968
  %4008 = vmatpush.bf16.msra.mxu0 %v1960
  %4009 = vmatpush.bf16.msra.mxu0 %v1952
  %4010 = vmatpush.bf16.msra.mxu0 %v1944
  %4011 = vmatpush.bf16.msra.mxu0 %v1936
  %4012 = vmatmul.bf16.gmra.mxu0 %v3964
  %v4013 = vpop.f32.mrf.mxu0
  %v4014 = vadd.f32 %v4001, %v4013
  %v4015 = vpop.f32.mrf.mxu0
  %4016 = vdwg.mxu0
  %4017 = vmatpush.bf16.msra.mxu0 %v1929
  %4018 = vmatpush.bf16.msra.mxu0 %v1921
  %4019 = vmatpush.bf16.msra.mxu0 %v1913
  %4020 = vmatpush.bf16.msra.mxu0 %v1905
  %4021 = vmatpush.bf16.msra.mxu0 %v1897
  %4022 = vmatpush.bf16.msra.mxu0 %v1889
  %4023 = vmatpush.bf16.msra.mxu0 %v1881
  %4024 = vmatpush.bf16.msra.mxu0 %v1873
  %4025 = vmatmul.bf16.gmra.mxu0 %v3963
  %v4026 = vpop.f32.mrf.mxu0
  %v4027 = vadd.f32 0.0, %v4026
  %v4028 = vpop.f32.mrf.mxu0
  %4029 = vdwg.mxu0
  %4030 = vmatpush.bf16.msra.mxu0 %v1993
  %4031 = vmatpush.bf16.msra.mxu0 %v1985
  %4032 = vmatpush.bf16.msra.mxu0 %v1977
  %4033 = vmatpush.bf16.msra.mxu0 %v1969
  %4034 = vmatpush.bf16.msra.mxu0 %v1961
  %4035 = vmatpush.bf16.msra.mxu0 %v1953
  %4036 = vmatpush.bf16.msra.mxu0 %v1945
  %4037 = vmatpush.bf16.msra.mxu0 %v1937
  %4038 = vmatmul.bf16.gmra.mxu0 %v3964
  %v4039 = vpop.f32.mrf.mxu0
  %v4040 = vadd.f32 %v4027, %v4039
  %v4041 = vpop.f32.mrf.mxu0
  %4042 = vdwg.mxu0
  %4043 = vmatpush.bf16.msra.mxu0 %v1930
  %4044 = vmatpush.bf16.msra.mxu0 %v1922
  %4045 = vmatpush.bf16.msra.mxu0 %v1914
  %4046 = vmatpush.bf16.msra.mxu0 %v1906
  %4047 = vmatpush.bf16.msra.mxu0 %v1898
  %4048 = vmatpush.bf16.msra.mxu0 %v1890
  %4049 = vmatpush.bf16.msra.mxu0 %v1882
  %4050 = vmatpush.bf16.msra.mxu0 %v1874
  %4051 = vmatmul.bf16.gmra.mxu0 %v3963
  %v4052 = vpop.f32.mrf.mxu0
  %v4053 = vadd.f32 0.0, %v4052
  %v4054 = vpop.f32.mrf.mxu0
  %4055 = vdwg.mxu0
  %4056 = vmatpush.bf16.msra.mxu0 %v1994
  %4057 = vmatpush.bf16.msra.mxu0 %v1986
  %4058 = vmatpush.bf16.msra.mxu0 %v1978
  %4059 = vmatpush.bf16.msra.mxu0 %v1970
  %4060 = vmatpush.bf16.msra.mxu0 %v1962
  %4061 = vmatpush.bf16.msra.mxu0 %v1954
  %4062 = vmatpush.bf16.msra.mxu0 %v1946
  %4063 = vmatpush.bf16.msra.mxu0 %v1938
  %4064 = vmatmul.bf16.gmra.mxu0 %v3964
  %v4065 = vpop.f32.mrf.mxu0
  %v4066 = vadd.f32 %v4053, %v4065
  %v4067 = vpop.f32.mrf.mxu0
  %4068 = vdwg.mxu0
  %4069 = vmatpush.bf16.msra.mxu0 %v1931
  %4070 = vmatpush.bf16.msra.mxu0 %v1923
  %4071 = vmatpush.bf16.msra.mxu0 %v1915
  %4072 = vmatpush.bf16.msra.mxu0 %v1907
  %4073 = vmatpush.bf16.msra.mxu0 %v1899
  %4074 = vmatpush.bf16.msra.mxu0 %v1891
  %4075 = vmatpush.bf16.msra.mxu0 %v1883
  %4076 = vmatpush.bf16.msra.mxu0 %v1875
  %4077 = vmatmul.bf16.gmra.mxu0 %v3963
  %v4078 = vpop.f32.mrf.mxu0
  %v4079 = vadd.f32 0.0, %v4078
  %v4080 = vpop.f32.mrf.mxu0
  %4081 = vdwg.mxu0
  %4082 = vmatpush.bf16.msra.mxu0 %v1995
  %4083 = vmatpush.bf16.msra.mxu0 %v1987
  %4084 = vmatpush.bf16.msra.mxu0 %v1979
  %4085 = vmatpush.bf16.msra.mxu0 %v1971
  %4086 = vmatpush.bf16.msra.mxu0 %v1963
  %4087 = vmatpush.bf16.msra.mxu0 %v1955
  %4088 = vmatpush.bf16.msra.mxu0 %v1947
  %4089 = vmatpush.bf16.msra.mxu0 %v1939
  %4090 = vmatmul.bf16.gmra.mxu0 %v3964
  %v4091 = vpop.f32.mrf.mxu0
  %v4092 = vadd.f32 %v4079, %v4091
  %v4093 = vpop.f32.mrf.mxu0
  %4094 = vdwg.mxu0
  %4095 = vmatpush.bf16.msra.mxu0 %v1932
  %4096 = vmatpush.bf16.msra.mxu0 %v1924
  %4097 = vmatpush.bf16.msra.mxu0 %v1916
  %4098 = vmatpush.bf16.msra.mxu0 %v1908
  %4099 = vmatpush.bf16.msra.mxu0 %v1900
  %4100 = vmatpush.bf16.msra.mxu0 %v1892
  %4101 = vmatpush.bf16.msra.mxu0 %v1884
  %4102 = vmatpush.bf16.msra.mxu0 %v1876
  %4103 = vmatmul.bf16.gmra.mxu0 %v3963
  %v4104 = vpop.f32.mrf.mxu0
  %v4105 = vadd.f32 0.0, %v4104
  %v4106 = vpop.f32.mrf.mxu0
  %4107 = vdwg.mxu0
  %4108 = vmatpush.bf16.msra.mxu0 %v1996
  %4109 = vmatpush.bf16.msra.mxu0 %v1988
  %4110 = vmatpush.bf16.msra.mxu0 %v1980
  %4111 = vmatpush.bf16.msra.mxu0 %v1972
  %4112 = vmatpush.bf16.msra.mxu0 %v1964
  %4113 = vmatpush.bf16.msra.mxu0 %v1956
  %4114 = vmatpush.bf16.msra.mxu0 %v1948
  %4115 = vmatpush.bf16.msra.mxu0 %v1940
  %4116 = vmatmul.bf16.gmra.mxu0 %v3964
  %v4117 = vpop.f32.mrf.mxu0
  %v4118 = vadd.f32 %v4105, %v4117
  %v4119 = vpop.f32.mrf.mxu0
  %4120 = vdwg.mxu0
  %4121 = vmatpush.bf16.msra.mxu0 %v1933
  %4122 = vmatpush.bf16.msra.mxu0 %v1925
  %4123 = vmatpush.bf16.msra.mxu0 %v1917
  %4124 = vmatpush.bf16.msra.mxu0 %v1909
  %4125 = vmatpush.bf16.msra.mxu0 %v1901
  %4126 = vmatpush.bf16.msra.mxu0 %v1893
  %4127 = vmatpush.bf16.msra.mxu0 %v1885
  %4128 = vmatpush.bf16.msra.mxu0 %v1877
  %4129 = vmatmul.bf16.gmra.mxu0 %v3963
  %v4130 = vpop.f32.mrf.mxu0
  %v4131 = vadd.f32 0.0, %v4130
  %v4132 = vpop.f32.mrf.mxu0
  %4133 = vdwg.mxu0
  %4134 = vmatpush.bf16.msra.mxu0 %v1997
  %4135 = vmatpush.bf16.msra.mxu0 %v1989
  %4136 = vmatpush.bf16.msra.mxu0 %v1981
  %4137 = vmatpush.bf16.msra.mxu0 %v1973
  %4138 = vmatpush.bf16.msra.mxu0 %v1965
  %4139 = vmatpush.bf16.msra.mxu0 %v1957
  %4140 = vmatpush.bf16.msra.mxu0 %v1949
  %4141 = vmatpush.bf16.msra.mxu0 %v1941
  %4142 = vmatmul.bf16.gmra.mxu0 %v3964
  %v4143 = vpop.f32.mrf.mxu0
  %v4144 = vadd.f32 %v4131, %v4143
  %v4145 = vpop.f32.mrf.mxu0
  %4146 = vdwg.mxu0
  %4147 = vmatpush.bf16.msra.mxu0 %v1934
  %4148 = vmatpush.bf16.msra.mxu0 %v1926
  %4149 = vmatpush.bf16.msra.mxu0 %v1918
  %4150 = vmatpush.bf16.msra.mxu0 %v1910
  %4151 = vmatpush.bf16.msra.mxu0 %v1902
  %4152 = vmatpush.bf16.msra.mxu0 %v1894
  %4153 = vmatpush.bf16.msra.mxu0 %v1886
  %4154 = vmatpush.bf16.msra.mxu0 %v1878
  %4155 = vmatmul.bf16.gmra.mxu0 %v3963
  %v4156 = vpop.f32.mrf.mxu0
  %v4157 = vadd.f32 0.0, %v4156
  %v4158 = vpop.f32.mrf.mxu0
  %4159 = vdwg.mxu0
  %4160 = vmatpush.bf16.msra.mxu0 %v1998
  %4161 = vmatpush.bf16.msra.mxu0 %v1990
  %4162 = vmatpush.bf16.msra.mxu0 %v1982
  %4163 = vmatpush.bf16.msra.mxu0 %v1974
  %4164 = vmatpush.bf16.msra.mxu0 %v1966
  %4165 = vmatpush.bf16.msra.mxu0 %v1958
  %4166 = vmatpush.bf16.msra.mxu0 %v1950
  %4167 = vmatpush.bf16.msra.mxu0 %v1942
  %4168 = vmatmul.bf16.gmra.mxu0 %v3964
  %v4169 = vpop.f32.mrf.mxu0
  %v4170 = vadd.f32 %v4157, %v4169
  %v4171 = vpop.f32.mrf.mxu0
  %4172 = vdwg.mxu0
  %v4173 = vld [vmem:[%s3086] sm:$0xff]
  %v4174 = vld [vmem:[%s3086 + $0x8] sm:$0xff]
  %v4175 = vunpack.c.l.bf16 %v4173
  %v4176 = vunpack.c.h.bf16 %v4173
  %v4177 = vunpack.c.l.bf16 %v4174
  %v4178 = vunpack.c.h.bf16 %v4174
  %v4179 = vld [vmem:[%s3077 + $0x10] sm:$0xff]
  %v4180 = vld [vmem:[%s3077 + $0x18] sm:$0xff]
  %v4181 = vunpack.c.l.bf16 %v4179
  %v4182 = vunpack.c.h.bf16 %v4179
  %v4183 = vunpack.c.l.bf16 %v4180
  %v4184 = vunpack.c.h.bf16 %v4180
  %v4185 = vadd.f32 %v3988, %v4175
  %v4186 = vadd.f32 %v4014, %v4176
  %v4187 = vadd.f32 %v4040, %v4177
  %v4188 = vadd.f32 %v4066, %v4178
  %v4189 = vxor.u32 %v4185, 2147483648
  %v4190 = vxor.u32 %v4186, 2147483648
  %v4191 = vxor.u32 %v4187, 2147483648
  %v4192 = vmul.f32 %v4189, 1.442695
  %v4193 = vpow.pop %v4192
  %v4194 = vmul.f32 %v4190, 1.442695
  %v4195 = vpow.pop %v4194
  %v4196 = vmul.f32 %v4191, 1.442695
  %v4197 = vpow.pop %v4196
  %v4198 = vadd.f32 %v4193, 1.0
  %v4199 = vadd.f32 %v4195, 1.0
  %v4200 = vadd.f32 %v4197, 1.0
  %v4201 = vrcp.pop %v4198
  %v4202 = vmul.f32 %v4198, %v4201
  %v4203 = vsub.f32 1.0, %v4202
  %v4204 = vmul.f32 %v4201, %v4203
  %v4205 = vadd.f32 %v4201, %v4204
  %vm4206 = vweird.f32 %v4198
  %vm4207 = vweird.f32 %v4201
  %vm4208 = vmor %vm4206, %vm4207
  %v4209 = vsel %vm4208, %v4201, %v4205
  %v4210 = vand.u32 2147483647, %v4198
  %vm4211 = vcmp.eq.f32.partialorder %v4210, 8.507059e+37
  %v4212 = vand.u32 %v4198, 2147483648
  %v4213 = vor.u32 1.1754944e-38, %v4212
  %v4214 = vsel %vm4211, %v4213, %v4209
  %v4215 = vmul.f32 1.0, %v4214
  %v4216 = vrcp.pop %v4199
  %v4217 = vmul.f32 %v4199, %v4216
  %v4218 = vsub.f32 1.0, %v4217
  %v4219 = vmul.f32 %v4216, %v4218
  %v4220 = vadd.f32 %v4216, %v4219
  %vm4221 = vweird.f32 %v4199
  %vm4222 = vweird.f32 %v4216
  %vm4223 = vmor %vm4221, %vm4222
  %v4224 = vsel %vm4223, %v4216, %v4220
  %v4225 = vand.u32 2147483647, %v4199
  %vm4226 = vcmp.eq.f32.partialorder %v4225, 8.507059e+37
  %v4227 = vand.u32 %v4199, 2147483648
  %v4228 = vor.u32 1.1754944e-38, %v4227
  %v4229 = vsel %vm4226, %v4228, %v4224
  %v4230 = vmul.f32 1.0, %v4229
  %v4231 = vrcp.pop %v4200
  %v4232 = vmul.f32 %v4200, %v4231
  %v4233 = vsub.f32 1.0, %v4232
  %v4234 = vmul.f32 %v4231, %v4233
  %v4235 = vadd.f32 %v4231, %v4234
  %vm4236 = vweird.f32 %v4200
  %vm4237 = vweird.f32 %v4231
  %vm4238 = vmor %vm4236, %vm4237
  %v4239 = vsel %vm4238, %v4231, %v4235
  %v4240 = vand.u32 2147483647, %v4200
  %vm4241 = vcmp.eq.f32.partialorder %v4240, 8.507059e+37
  %v4242 = vand.u32 %v4200, 2147483648
  %v4243 = vor.u32 1.1754944e-38, %v4242
  %v4244 = vsel %vm4241, %v4243, %v4239
  %v4245 = vmul.f32 1.0, %v4244
  %v4246 = vtanh.pop %v4188
  %v4247 = vmul.f32 %v4230, %v3891
  %v4248 = vmul.f32 %v4215, %v4246
  %v4249 = vadd.f32 %v4247, %v4248
  %v4250 = vtanh.pop %v4249
  %v4251 = vmul.f32 %v4245, %v4250
  %v4252 = vadd.f32 %v4092, %v4181
  %v4253 = vadd.f32 %v4118, %v4182
  %v4254 = vadd.f32 %v4144, %v4183
  %v4255 = vadd.f32 %v4170, %v4184
  %v4256 = vxor.u32 %v4252, 2147483648
  %v4257 = vxor.u32 %v4253, 2147483648
  %v4258 = vxor.u32 %v4254, 2147483648
  %v4259 = vmul.f32 %v4256, 1.442695
  %v4260 = vpow.pop %v4259
  %v4261 = vmul.f32 %v4257, 1.442695
  %v4262 = vpow.pop %v4261
  %v4263 = vmul.f32 %v4258, 1.442695
  %v4264 = vpow.pop %v4263
  %v4265 = vadd.f32 %v4260, 1.0
  %v4266 = vadd.f32 %v4262, 1.0
  %v4267 = vadd.f32 %v4264, 1.0
  %v4268 = vrcp.pop %v4265
  %v4269 = vmul.f32 %v4265, %v4268
  %v4270 = vsub.f32 1.0, %v4269
  %v4271 = vmul.f32 %v4268, %v4270
  %v4272 = vadd.f32 %v4268, %v4271
  %vm4273 = vweird.f32 %v4265
  %vm4274 = vweird.f32 %v4268
  %vm4275 = vmor %vm4273, %vm4274
  %v4276 = vsel %vm4275, %v4268, %v4272
  %v4277 = vand.u32 2147483647, %v4265
  %vm4278 = vcmp.eq.f32.partialorder %v4277, 8.507059e+37
  %v4279 = vand.u32 %v4265, 2147483648
  %v4280 = vor.u32 1.1754944e-38, %v4279
  %v4281 = vsel %vm4278, %v4280, %v4276
  %v4282 = vmul.f32 1.0, %v4281
  %v4283 = vrcp.pop %v4266
  %v4284 = vmul.f32 %v4266, %v4283
  %v4285 = vsub.f32 1.0, %v4284
  %v4286 = vmul.f32 %v4283, %v4285
  %v4287 = vadd.f32 %v4283, %v4286
  %vm4288 = vweird.f32 %v4266
  %vm4289 = vweird.f32 %v4283
  %vm4290 = vmor %vm4288, %vm4289
  %v4291 = vsel %vm4290, %v4283, %v4287
  %v4292 = vand.u32 2147483647, %v4266
  %vm4293 = vcmp.eq.f32.partialorder %v4292, 8.507059e+37
  %v4294 = vand.u32 %v4266, 2147483648
  %v4295 = vor.u32 1.1754944e-38, %v4294
  %v4296 = vsel %vm4293, %v4295, %v4291
  %v4297 = vmul.f32 1.0, %v4296
  %v4298 = vrcp.pop %v4267
  %v4299 = vmul.f32 %v4267, %v4298
  %v4300 = vsub.f32 1.0, %v4299
  %v4301 = vmul.f32 %v4298, %v4300
  %v4302 = vadd.f32 %v4298, %v4301
  %vm4303 = vweird.f32 %v4267
  %vm4304 = vweird.f32 %v4298
  %vm4305 = vmor %vm4303, %vm4304
  %v4306 = vsel %vm4305, %v4298, %v4302
  %v4307 = vand.u32 2147483647, %v4267
  %vm4308 = vcmp.eq.f32.partialorder %v4307, 8.507059e+37
  %v4309 = vand.u32 %v4267, 2147483648
  %v4310 = vor.u32 1.1754944e-38, %v4309
  %v4311 = vsel %vm4308, %v4310, %v4306
  %v4312 = vmul.f32 1.0, %v4311
  %v4313 = vtanh.pop %v4255
  %v4314 = vmul.f32 %v4297, %v3958
  %v4315 = vmul.f32 %v4282, %v4313
  %v4316 = vadd.f32 %v4314, %v4315
  %v4317 = vtanh.pop %v4316
  %v4318 = vmul.f32 %v4312, %v4317
  %4319 = vst [vmem:[%s3233] sm:$0xff] %v4251
  %4320 = vst [vmem:[%s3229 + $0x8] sm:$0xff] %v4318
  %v4321 = vpack.c.bf16 %v4251, %v4251
  %v4322 = vpack.c.bf16 %v4318, %v4318
  %4323 = vmatpush.bf16.msra.mxu0 %v1927
  %4324 = vmatpush.bf16.msra.mxu0 %v1919
  %4325 = vmatpush.bf16.msra.mxu0 %v1911
  %4326 = vmatpush.bf16.msra.mxu0 %v1903
  %4327 = vmatpush.bf16.msra.mxu0 %v1895
  %4328 = vmatpush.bf16.msra.mxu0 %v1887
  %4329 = vmatpush.bf16.msra.mxu0 %v1879
  %4330 = vmatpush.bf16.msra.mxu0 %v1871
  %4331 = vmatmul.bf16.gmra.mxu0 %v4321
  %v4332 = vpop.f32.mrf.mxu0
  %v4333 = vadd.f32 0.0, %v4332
  %v4334 = vpop.f32.mrf.mxu0
  %4335 = vdwg.mxu0
  %4336 = vmatpush.bf16.msra.mxu0 %v1991
  %4337 = vmatpush.bf16.msra.mxu0 %v1983
  %4338 = vmatpush.bf16.msra.mxu0 %v1975
  %4339 = vmatpush.bf16.msra.mxu0 %v1967
  %4340 = vmatpush.bf16.msra.mxu0 %v1959
  %4341 = vmatpush.bf16.msra.mxu0 %v1951
  %4342 = vmatpush.bf16.msra.mxu0 %v1943
  %4343 = vmatpush.bf16.msra.mxu0 %v1935
  %4344 = vmatmul.bf16.gmra.mxu0 %v4322
  %v4345 = vpop.f32.mrf.mxu0
  %v4346 = vadd.f32 %v4333, %v4345
  %v4347 = vpop.f32.mrf.mxu0
  %4348 = vdwg.mxu0
  %4349 = vmatpush.bf16.msra.mxu0 %v1928
  %4350 = vmatpush.bf16.msra.mxu0 %v1920
  %4351 = vmatpush.bf16.msra.mxu0 %v1912
  %4352 = vmatpush.bf16.msra.mxu0 %v1904
  %4353 = vmatpush.bf16.msra.mxu0 %v1896
  %4354 = vmatpush.bf16.msra.mxu0 %v1888
  %4355 = vmatpush.bf16.msra.mxu0 %v1880
  %4356 = vmatpush.bf16.msra.mxu0 %v1872
  %4357 = vmatmul.bf16.gmra.mxu0 %v4321
  %v4358 = vpop.f32.mrf.mxu0
  %v4359 = vadd.f32 0.0, %v4358
  %v4360 = vpop.f32.mrf.mxu0
  %4361 = vdwg.mxu0
  %4362 = vmatpush.bf16.msra.mxu0 %v1992
  %4363 = vmatpush.bf16.msra.mxu0 %v1984
  %4364 = vmatpush.bf16.msra.mxu0 %v1976
  %4365 = vmatpush.bf16.msra.mxu0 %v1968
  %4366 = vmatpush.bf16.msra.mxu0 %v1960
  %4367 = vmatpush.bf16.msra.mxu0 %v1952
  %4368 = vmatpush.bf16.msra.mxu0 %v1944
  %4369 = vmatpush.bf16.msra.mxu0 %v1936
  %4370 = vmatmul.bf16.gmra.mxu0 %v4322
  %v4371 = vpop.f32.mrf.mxu0
  %v4372 = vadd.f32 %v4359, %v4371
  %v4373 = vpop.f32.mrf.mxu0
  %4374 = vdwg.mxu0
  %4375 = vmatpush.bf16.msra.mxu0 %v1929
  %4376 = vmatpush.bf16.msra.mxu0 %v1921
  %4377 = vmatpush.bf16.msra.mxu0 %v1913
  %4378 = vmatpush.bf16.msra.mxu0 %v1905
  %4379 = vmatpush.bf16.msra.mxu0 %v1897
  %4380 = vmatpush.bf16.msra.mxu0 %v1889
  %4381 = vmatpush.bf16.msra.mxu0 %v1881
  %4382 = vmatpush.bf16.msra.mxu0 %v1873
  %4383 = vmatmul.bf16.gmra.mxu0 %v4321
  %v4384 = vpop.f32.mrf.mxu0
  %v4385 = vadd.f32 0.0, %v4384
  %v4386 = vpop.f32.mrf.mxu0
  %4387 = vdwg.mxu0
  %4388 = vmatpush.bf16.msra.mxu0 %v1993
  %4389 = vmatpush.bf16.msra.mxu0 %v1985
  %4390 = vmatpush.bf16.msra.mxu0 %v1977
  %4391 = vmatpush.bf16.msra.mxu0 %v1969
  %4392 = vmatpush.bf16.msra.mxu0 %v1961
  %4393 = vmatpush.bf16.msra.mxu0 %v1953
  %4394 = vmatpush.bf16.msra.mxu0 %v1945
  %4395 = vmatpush.bf16.msra.mxu0 %v1937
  %4396 = vmatmul.bf16.gmra.mxu0 %v4322
  %v4397 = vpop.f32.mrf.mxu0
  %v4398 = vadd.f32 %v4385, %v4397
  %v4399 = vpop.f32.mrf.mxu0
  %4400 = vdwg.mxu0
  %4401 = vmatpush.bf16.msra.mxu0 %v1930
  %4402 = vmatpush.bf16.msra.mxu0 %v1922
  %4403 = vmatpush.bf16.msra.mxu0 %v1914
  %4404 = vmatpush.bf16.msra.mxu0 %v1906
  %4405 = vmatpush.bf16.msra.mxu0 %v1898
  %4406 = vmatpush.bf16.msra.mxu0 %v1890
  %4407 = vmatpush.bf16.msra.mxu0 %v1882
  %4408 = vmatpush.bf16.msra.mxu0 %v1874
  %4409 = vmatmul.bf16.gmra.mxu0 %v4321
  %v4410 = vpop.f32.mrf.mxu0
  %v4411 = vadd.f32 0.0, %v4410
  %v4412 = vpop.f32.mrf.mxu0
  %4413 = vdwg.mxu0
  %4414 = vmatpush.bf16.msra.mxu0 %v1994
  %4415 = vmatpush.bf16.msra.mxu0 %v1986
  %4416 = vmatpush.bf16.msra.mxu0 %v1978
  %4417 = vmatpush.bf16.msra.mxu0 %v1970
  %4418 = vmatpush.bf16.msra.mxu0 %v1962
  %4419 = vmatpush.bf16.msra.mxu0 %v1954
  %4420 = vmatpush.bf16.msra.mxu0 %v1946
  %4421 = vmatpush.bf16.msra.mxu0 %v1938
  %4422 = vmatmul.bf16.gmra.mxu0 %v4322
  %v4423 = vpop.f32.mrf.mxu0
  %v4424 = vadd.f32 %v4411, %v4423
  %v4425 = vpop.f32.mrf.mxu0
  %4426 = vdwg.mxu0
  %4427 = vmatpush.bf16.msra.mxu0 %v1931
  %4428 = vmatpush.bf16.msra.mxu0 %v1923
  %4429 = vmatpush.bf16.msra.mxu0 %v1915
  %4430 = vmatpush.bf16.msra.mxu0 %v1907
  %4431 = vmatpush.bf16.msra.mxu0 %v1899
  %4432 = vmatpush.bf16.msra.mxu0 %v1891
  %4433 = vmatpush.bf16.msra.mxu0 %v1883
  %4434 = vmatpush.bf16.msra.mxu0 %v1875
  %4435 = vmatmul.bf16.gmra.mxu0 %v4321
  %v4436 = vpop.f32.mrf.mxu0
  %v4437 = vadd.f32 0.0, %v4436
  %v4438 = vpop.f32.mrf.mxu0
  %4439 = vdwg.mxu0
  %4440 = vmatpush.bf16.msra.mxu0 %v1995
  %4441 = vmatpush.bf16.msra.mxu0 %v1987
  %4442 = vmatpush.bf16.msra.mxu0 %v1979
  %4443 = vmatpush.bf16.msra.mxu0 %v1971
  %4444 = vmatpush.bf16.msra.mxu0 %v1963
  %4445 = vmatpush.bf16.msra.mxu0 %v1955
  %4446 = vmatpush.bf16.msra.mxu0 %v1947
  %4447 = vmatpush.bf16.msra.mxu0 %v1939
  %4448 = vmatmul.bf16.gmra.mxu0 %v4322
  %v4449 = vpop.f32.mrf.mxu0
  %v4450 = vadd.f32 %v4437, %v4449
  %v4451 = vpop.f32.mrf.mxu0
  %4452 = vdwg.mxu0
  %4453 = vmatpush.bf16.msra.mxu0 %v1932
  %4454 = vmatpush.bf16.msra.mxu0 %v1924
  %4455 = vmatpush.bf16.msra.mxu0 %v1916
  %4456 = vmatpush.bf16.msra.mxu0 %v1908
  %4457 = vmatpush.bf16.msra.mxu0 %v1900
  %4458 = vmatpush.bf16.msra.mxu0 %v1892
  %4459 = vmatpush.bf16.msra.mxu0 %v1884
  %4460 = vmatpush.bf16.msra.mxu0 %v1876
  %4461 = vmatmul.bf16.gmra.mxu0 %v4321
  %v4462 = vpop.f32.mrf.mxu0
  %v4463 = vadd.f32 0.0, %v4462
  %v4464 = vpop.f32.mrf.mxu0
  %4465 = vdwg.mxu0
  %4466 = vmatpush.bf16.msra.mxu0 %v1996
  %4467 = vmatpush.bf16.msra.mxu0 %v1988
  %4468 = vmatpush.bf16.msra.mxu0 %v1980
  %4469 = vmatpush.bf16.msra.mxu0 %v1972
  %4470 = vmatpush.bf16.msra.mxu0 %v1964
  %4471 = vmatpush.bf16.msra.mxu0 %v1956
  %4472 = vmatpush.bf16.msra.mxu0 %v1948
  %4473 = vmatpush.bf16.msra.mxu0 %v1940
  %4474 = vmatmul.bf16.gmra.mxu0 %v4322
  %v4475 = vpop.f32.mrf.mxu0
  %v4476 = vadd.f32 %v4463, %v4475
  %v4477 = vpop.f32.mrf.mxu0
  %4478 = vdwg.mxu0
  %4479 = vmatpush.bf16.msra.mxu0 %v1933
  %4480 = vmatpush.bf16.msra.mxu0 %v1925
  %4481 = vmatpush.bf16.msra.mxu0 %v1917
  %4482 = vmatpush.bf16.msra.mxu0 %v1909
  %4483 = vmatpush.bf16.msra.mxu0 %v1901
  %4484 = vmatpush.bf16.msra.mxu0 %v1893
  %4485 = vmatpush.bf16.msra.mxu0 %v1885
  %4486 = vmatpush.bf16.msra.mxu0 %v1877
  %4487 = vmatmul.bf16.gmra.mxu0 %v4321
  %v4488 = vpop.f32.mrf.mxu0
  %v4489 = vadd.f32 0.0, %v4488
  %v4490 = vpop.f32.mrf.mxu0
  %4491 = vdwg.mxu0
  %4492 = vmatpush.bf16.msra.mxu0 %v1997
  %4493 = vmatpush.bf16.msra.mxu0 %v1989
  %4494 = vmatpush.bf16.msra.mxu0 %v1981
  %4495 = vmatpush.bf16.msra.mxu0 %v1973
  %4496 = vmatpush.bf16.msra.mxu0 %v1965
  %4497 = vmatpush.bf16.msra.mxu0 %v1957
  %4498 = vmatpush.bf16.msra.mxu0 %v1949
  %4499 = vmatpush.bf16.msra.mxu0 %v1941
  %4500 = vmatmul.bf16.gmra.mxu0 %v4322
  %v4501 = vpop.f32.mrf.mxu0
  %v4502 = vadd.f32 %v4489, %v4501
  %v4503 = vpop.f32.mrf.mxu0
  %4504 = vdwg.mxu0
  %4505 = vmatpush.bf16.msra.mxu0 %v1934
  %4506 = vmatpush.bf16.msra.mxu0 %v1926
  %4507 = vmatpush.bf16.msra.mxu0 %v1918
  %4508 = vmatpush.bf16.msra.mxu0 %v1910
  %4509 = vmatpush.bf16.msra.mxu0 %v1902
  %4510 = vmatpush.bf16.msra.mxu0 %v1894
  %4511 = vmatpush.bf16.msra.mxu0 %v1886
  %4512 = vmatpush.bf16.msra.mxu0 %v1878
  %4513 = vmatmul.bf16.gmra.mxu0 %v4321
  %v4514 = vpop.f32.mrf.mxu0
  %v4515 = vadd.f32 0.0, %v4514
  %v4516 = vpop.f32.mrf.mxu0
  %4517 = vdwg.mxu0
  %4518 = vmatpush.bf16.msra.mxu0 %v1998
  %4519 = vmatpush.bf16.msra.mxu0 %v1990
  %4520 = vmatpush.bf16.msra.mxu0 %v1982
  %4521 = vmatpush.bf16.msra.mxu0 %v1974
  %4522 = vmatpush.bf16.msra.mxu0 %v1966
  %4523 = vmatpush.bf16.msra.mxu0 %v1958
  %4524 = vmatpush.bf16.msra.mxu0 %v1950
  %4525 = vmatpush.bf16.msra.mxu0 %v1942
  %4526 = vmatmul.bf16.gmra.mxu0 %v4322
  %v4527 = vpop.f32.mrf.mxu0
  %v4528 = vadd.f32 %v4515, %v4527
  %v4529 = vpop.f32.mrf.mxu0
  %4530 = vdwg.mxu0
  %v4531 = vld [vmem:[%s2716] sm:$0xff]
  %v4532 = vld [vmem:[%s2716 + $0x8] sm:$0xff]
  %v4533 = vunpack.c.l.bf16 %v4531
  %v4534 = vunpack.c.h.bf16 %v4531
  %v4535 = vunpack.c.l.bf16 %v4532
  %v4536 = vunpack.c.h.bf16 %v4532
  %v4537 = vld [vmem:[%s2707 + $0x10] sm:$0xff]
  %v4538 = vld [vmem:[%s2707 + $0x18] sm:$0xff]
  %v4539 = vunpack.c.l.bf16 %v4537
  %v4540 = vunpack.c.h.bf16 %v4537
  %v4541 = vunpack.c.l.bf16 %v4538
  %v4542 = vunpack.c.h.bf16 %v4538
  %v4543 = vadd.f32 %v4346, %v4533
  %v4544 = vadd.f32 %v4372, %v4534
  %v4545 = vadd.f32 %v4398, %v4535
  %v4546 = vadd.f32 %v4424, %v4536
  %v4547 = vxor.u32 %v4543, 2147483648
  %v4548 = vxor.u32 %v4544, 2147483648
  %v4549 = vxor.u32 %v4545, 2147483648
  %v4550 = vmul.f32 %v4547, 1.442695
  %v4551 = vpow.pop %v4550
  %v4552 = vmul.f32 %v4548, 1.442695
  %v4553 = vpow.pop %v4552
  %v4554 = vmul.f32 %v4549, 1.442695
  %v4555 = vpow.pop %v4554
  %v4556 = vadd.f32 %v4551, 1.0
  %v4557 = vadd.f32 %v4553, 1.0
  %v4558 = vadd.f32 %v4555, 1.0
  %v4559 = vrcp.pop %v4556
  %v4560 = vmul.f32 %v4556, %v4559
  %v4561 = vsub.f32 1.0, %v4560
  %v4562 = vmul.f32 %v4559, %v4561
  %v4563 = vadd.f32 %v4559, %v4562
  %vm4564 = vweird.f32 %v4556
  %vm4565 = vweird.f32 %v4559
  %vm4566 = vmor %vm4564, %vm4565
  %v4567 = vsel %vm4566, %v4559, %v4563
  %v4568 = vand.u32 2147483647, %v4556
  %vm4569 = vcmp.eq.f32.partialorder %v4568, 8.507059e+37
  %v4570 = vand.u32 %v4556, 2147483648
  %v4571 = vor.u32 1.1754944e-38, %v4570
  %v4572 = vsel %vm4569, %v4571, %v4567
  %v4573 = vmul.f32 1.0, %v4572
  %v4574 = vrcp.pop %v4557
  %v4575 = vmul.f32 %v4557, %v4574
  %v4576 = vsub.f32 1.0, %v4575
  %v4577 = vmul.f32 %v4574, %v4576
  %v4578 = vadd.f32 %v4574, %v4577
  %vm4579 = vweird.f32 %v4557
  %vm4580 = vweird.f32 %v4574
  %vm4581 = vmor %vm4579, %vm4580
  %v4582 = vsel %vm4581, %v4574, %v4578
  %v4583 = vand.u32 2147483647, %v4557
  %vm4584 = vcmp.eq.f32.partialorder %v4583, 8.507059e+37
  %v4585 = vand.u32 %v4557, 2147483648
  %v4586 = vor.u32 1.1754944e-38, %v4585
  %v4587 = vsel %vm4584, %v4586, %v4582
  %v4588 = vmul.f32 1.0, %v4587
  %v4589 = vrcp.pop %v4558
  %v4590 = vmul.f32 %v4558, %v4589
  %v4591 = vsub.f32 1.0, %v4590
  %v4592 = vmul.f32 %v4589, %v4591
  %v4593 = vadd.f32 %v4589, %v4592
  %vm4594 = vweird.f32 %v4558
  %vm4595 = vweird.f32 %v4589
  %vm4596 = vmor %vm4594, %vm4595
  %v4597 = vsel %vm4596, %v4589, %v4593
  %v4598 = vand.u32 2147483647, %v4558
  %vm4599 = vcmp.eq.f32.partialorder %v4598, 8.507059e+37
  %v4600 = vand.u32 %v4558, 2147483648
  %v4601 = vor.u32 1.1754944e-38, %v4600
  %v4602 = vsel %vm4599, %v4601, %v4597
  %v4603 = vmul.f32 1.0, %v4602
  %v4604 = vtanh.pop %v4546
  %v4605 = vmul.f32 %v4588, %v4249
  %v4606 = vmul.f32 %v4573, %v4604
  %v4607 = vadd.f32 %v4605, %v4606
  %v4608 = vtanh.pop %v4607
  %v4609 = vmul.f32 %v4603, %v4608
  %v4610 = vadd.f32 %v4450, %v4539
  %v4611 = vadd.f32 %v4476, %v4540
  %v4612 = vadd.f32 %v4502, %v4541
  %v4613 = vadd.f32 %v4528, %v4542
  %v4614 = vxor.u32 %v4610, 2147483648
  %v4615 = vxor.u32 %v4611, 2147483648
  %v4616 = vxor.u32 %v4612, 2147483648
  %v4617 = vmul.f32 %v4614, 1.442695
  %v4618 = vpow.pop %v4617
  %v4619 = vmul.f32 %v4615, 1.442695
  %v4620 = vpow.pop %v4619
  %v4621 = vmul.f32 %v4616, 1.442695
  %v4622 = vpow.pop %v4621
  %v4623 = vadd.f32 %v4618, 1.0
  %v4624 = vadd.f32 %v4620, 1.0
  %v4625 = vadd.f32 %v4622, 1.0
  %v4626 = vrcp.pop %v4623
  %v4627 = vmul.f32 %v4623, %v4626
  %v4628 = vsub.f32 1.0, %v4627
  %v4629 = vmul.f32 %v4626, %v4628
  %v4630 = vadd.f32 %v4626, %v4629
  %vm4631 = vweird.f32 %v4623
  %vm4632 = vweird.f32 %v4626
  %vm4633 = vmor %vm4631, %vm4632
  %v4634 = vsel %vm4633, %v4626, %v4630
  %v4635 = vand.u32 2147483647, %v4623
  %vm4636 = vcmp.eq.f32.partialorder %v4635, 8.507059e+37
  %v4637 = vand.u32 %v4623, 2147483648
  %v4638 = vor.u32 1.1754944e-38, %v4637
  %v4639 = vsel %vm4636, %v4638, %v4634
  %v4640 = vmul.f32 1.0, %v4639
  %v4641 = vrcp.pop %v4624
  %v4642 = vmul.f32 %v4624, %v4641
  %v4643 = vsub.f32 1.0, %v4642
  %v4644 = vmul.f32 %v4641, %v4643
  %v4645 = vadd.f32 %v4641, %v4644
  %vm4646 = vweird.f32 %v4624
  %vm4647 = vweird.f32 %v4641
  %vm4648 = vmor %vm4646, %vm4647
  %v4649 = vsel %vm4648, %v4641, %v4645
  %v4650 = vand.u32 2147483647, %v4624
  %vm4651 = vcmp.eq.f32.partialorder %v4650, 8.507059e+37
  %v4652 = vand.u32 %v4624, 2147483648
  %v4653 = vor.u32 1.1754944e-38, %v4652
  %v4654 = vsel %vm4651, %v4653, %v4649
  %v4655 = vmul.f32 1.0, %v4654
  %v4656 = vrcp.pop %v4625
  %v4657 = vmul.f32 %v4625, %v4656
  %v4658 = vsub.f32 1.0, %v4657
  %v4659 = vmul.f32 %v4656, %v4658
  %v4660 = vadd.f32 %v4656, %v4659
  %vm4661 = vweird.f32 %v4625
  %vm4662 = vweird.f32 %v4656
  %vm4663 = vmor %vm4661, %vm4662
  %v4664 = vsel %vm4663, %v4656, %v4660
  %v4665 = vand.u32 2147483647, %v4625
  %vm4666 = vcmp.eq.f32.partialorder %v4665, 8.507059e+37
  %v4667 = vand.u32 %v4625, 2147483648
  %v4668 = vor.u32 1.1754944e-38, %v4667
  %v4669 = vsel %vm4666, %v4668, %v4664
  %v4670 = vmul.f32 1.0, %v4669
  %v4671 = vtanh.pop %v4613
  %v4672 = vmul.f32 %v4655, %v4316
  %v4673 = vmul.f32 %v4640, %v4671
  %v4674 = vadd.f32 %v4672, %v4673
  %v4675 = vtanh.pop %v4674
  %v4676 = vmul.f32 %v4670, %v4675
  %4677 = vst [vmem:[%s2863] sm:$0xff] %v4609
  %4678 = vst [vmem:[%s2859 + $0x8] sm:$0xff] %v4676
  %v4679 = vpack.c.bf16 %v4609, %v4609
  %v4680 = vpack.c.bf16 %v4676, %v4676
  %4681 = vmatpush.bf16.msra.mxu0 %v1927
  %4682 = vmatpush.bf16.msra.mxu0 %v1919
  %4683 = vmatpush.bf16.msra.mxu0 %v1911
  %4684 = vmatpush.bf16.msra.mxu0 %v1903
  %4685 = vmatpush.bf16.msra.mxu0 %v1895
  %4686 = vmatpush.bf16.msra.mxu0 %v1887
  %4687 = vmatpush.bf16.msra.mxu0 %v1879
  %4688 = vmatpush.bf16.msra.mxu0 %v1871
  %4689 = vmatmul.bf16.gmra.mxu0 %v4679
  %v4690 = vpop.f32.mrf.mxu0
  %v4691 = vadd.f32 0.0, %v4690
  %v4692 = vpop.f32.mrf.mxu0
  %4693 = vdwg.mxu0
  %4694 = vmatpush.bf16.msra.mxu0 %v1991
  %4695 = vmatpush.bf16.msra.mxu0 %v1983
  %4696 = vmatpush.bf16.msra.mxu0 %v1975
  %4697 = vmatpush.bf16.msra.mxu0 %v1967
  %4698 = vmatpush.bf16.msra.mxu0 %v1959
  %4699 = vmatpush.bf16.msra.mxu0 %v1951
  %4700 = vmatpush.bf16.msra.mxu0 %v1943
  %4701 = vmatpush.bf16.msra.mxu0 %v1935
  %4702 = vmatmul.bf16.gmra.mxu0 %v4680
  %v4703 = vpop.f32.mrf.mxu0
  %v4704 = vadd.f32 %v4691, %v4703
  %v4705 = vpop.f32.mrf.mxu0
  %4706 = vdwg.mxu0
  %4707 = vmatpush.bf16.msra.mxu0 %v1928
  %4708 = vmatpush.bf16.msra.mxu0 %v1920
  %4709 = vmatpush.bf16.msra.mxu0 %v1912
  %4710 = vmatpush.bf16.msra.mxu0 %v1904
  %4711 = vmatpush.bf16.msra.mxu0 %v1896
  %4712 = vmatpush.bf16.msra.mxu0 %v1888
  %4713 = vmatpush.bf16.msra.mxu0 %v1880
  %4714 = vmatpush.bf16.msra.mxu0 %v1872
  %4715 = vmatmul.bf16.gmra.mxu0 %v4679
  %v4716 = vpop.f32.mrf.mxu0
  %v4717 = vadd.f32 0.0, %v4716
  %v4718 = vpop.f32.mrf.mxu0
  %4719 = vdwg.mxu0
  %4720 = vmatpush.bf16.msra.mxu0 %v1992
  %4721 = vmatpush.bf16.msra.mxu0 %v1984
  %4722 = vmatpush.bf16.msra.mxu0 %v1976
  %4723 = vmatpush.bf16.msra.mxu0 %v1968
  %4724 = vmatpush.bf16.msra.mxu0 %v1960
  %4725 = vmatpush.bf16.msra.mxu0 %v1952
  %4726 = vmatpush.bf16.msra.mxu0 %v1944
  %4727 = vmatpush.bf16.msra.mxu0 %v1936
  %4728 = vmatmul.bf16.gmra.mxu0 %v4680
  %v4729 = vpop.f32.mrf.mxu0
  %v4730 = vadd.f32 %v4717, %v4729
  %v4731 = vpop.f32.mrf.mxu0
  %4732 = vdwg.mxu0
  %4733 = vmatpush.bf16.msra.mxu0 %v1929
  %4734 = vmatpush.bf16.msra.mxu0 %v1921
  %4735 = vmatpush.bf16.msra.mxu0 %v1913
  %4736 = vmatpush.bf16.msra.mxu0 %v1905
  %4737 = vmatpush.bf16.msra.mxu0 %v1897
  %4738 = vmatpush.bf16.msra.mxu0 %v1889
  %4739 = vmatpush.bf16.msra.mxu0 %v1881
  %4740 = vmatpush.bf16.msra.mxu0 %v1873
  %4741 = vmatmul.bf16.gmra.mxu0 %v4679
  %v4742 = vpop.f32.mrf.mxu0
  %v4743 = vadd.f32 0.0, %v4742
  %v4744 = vpop.f32.mrf.mxu0
  %4745 = vdwg.mxu0
  %4746 = vmatpush.bf16.msra.mxu0 %v1993
  %4747 = vmatpush.bf16.msra.mxu0 %v1985
  %4748 = vmatpush.bf16.msra.mxu0 %v1977
  %4749 = vmatpush.bf16.msra.mxu0 %v1969
  %4750 = vmatpush.bf16.msra.mxu0 %v1961
  %4751 = vmatpush.bf16.msra.mxu0 %v1953
  %4752 = vmatpush.bf16.msra.mxu0 %v1945
  %4753 = vmatpush.bf16.msra.mxu0 %v1937
  %4754 = vmatmul.bf16.gmra.mxu0 %v4680
  %v4755 = vpop.f32.mrf.mxu0
  %v4756 = vadd.f32 %v4743, %v4755
  %v4757 = vpop.f32.mrf.mxu0
  %4758 = vdwg.mxu0
  %4759 = vmatpush.bf16.msra.mxu0 %v1930
  %4760 = vmatpush.bf16.msra.mxu0 %v1922
  %4761 = vmatpush.bf16.msra.mxu0 %v1914
  %4762 = vmatpush.bf16.msra.mxu0 %v1906
  %4763 = vmatpush.bf16.msra.mxu0 %v1898
  %4764 = vmatpush.bf16.msra.mxu0 %v1890
  %4765 = vmatpush.bf16.msra.mxu0 %v1882
  %4766 = vmatpush.bf16.msra.mxu0 %v1874
  %4767 = vmatmul.bf16.gmra.mxu0 %v4679
  %v4768 = vpop.f32.mrf.mxu0
  %v4769 = vadd.f32 0.0, %v4768
  %v4770 = vpop.f32.mrf.mxu0
  %4771 = vdwg.mxu0
  %4772 = vmatpush.bf16.msra.mxu0 %v1994
  %4773 = vmatpush.bf16.msra.mxu0 %v1986
  %4774 = vmatpush.bf16.msra.mxu0 %v1978
  %4775 = vmatpush.bf16.msra.mxu0 %v1970
  %4776 = vmatpush.bf16.msra.mxu0 %v1962
  %4777 = vmatpush.bf16.msra.mxu0 %v1954
  %4778 = vmatpush.bf16.msra.mxu0 %v1946
  %4779 = vmatpush.bf16.msra.mxu0 %v1938
  %4780 = vmatmul.bf16.gmra.mxu0 %v4680
  %v4781 = vpop.f32.mrf.mxu0
  %v4782 = vadd.f32 %v4769, %v4781
  %v4783 = vpop.f32.mrf.mxu0
  %4784 = vdwg.mxu0
  %4785 = vmatpush.bf16.msra.mxu0 %v1931
  %4786 = vmatpush.bf16.msra.mxu0 %v1923
  %4787 = vmatpush.bf16.msra.mxu0 %v1915
  %4788 = vmatpush.bf16.msra.mxu0 %v1907
  %4789 = vmatpush.bf16.msra.mxu0 %v1899
  %4790 = vmatpush.bf16.msra.mxu0 %v1891
  %4791 = vmatpush.bf16.msra.mxu0 %v1883
  %4792 = vmatpush.bf16.msra.mxu0 %v1875
  %4793 = vmatmul.bf16.gmra.mxu0 %v4679
  %v4794 = vpop.f32.mrf.mxu0
  %v4795 = vadd.f32 0.0, %v4794
  %v4796 = vpop.f32.mrf.mxu0
  %4797 = vdwg.mxu0
  %4798 = vmatpush.bf16.msra.mxu0 %v1995
  %4799 = vmatpush.bf16.msra.mxu0 %v1987
  %4800 = vmatpush.bf16.msra.mxu0 %v1979
  %4801 = vmatpush.bf16.msra.mxu0 %v1971
  %4802 = vmatpush.bf16.msra.mxu0 %v1963
  %4803 = vmatpush.bf16.msra.mxu0 %v1955
  %4804 = vmatpush.bf16.msra.mxu0 %v1947
  %4805 = vmatpush.bf16.msra.mxu0 %v1939
  %4806 = vmatmul.bf16.gmra.mxu0 %v4680
  %v4807 = vpop.f32.mrf.mxu0
  %v4808 = vadd.f32 %v4795, %v4807
  %v4809 = vpop.f32.mrf.mxu0
  %4810 = vdwg.mxu0
  %4811 = vmatpush.bf16.msra.mxu0 %v1932
  %4812 = vmatpush.bf16.msra.mxu0 %v1924
  %4813 = vmatpush.bf16.msra.mxu0 %v1916
  %4814 = vmatpush.bf16.msra.mxu0 %v1908
  %4815 = vmatpush.bf16.msra.mxu0 %v1900
  %4816 = vmatpush.bf16.msra.mxu0 %v1892
  %4817 = vmatpush.bf16.msra.mxu0 %v1884
  %4818 = vmatpush.bf16.msra.mxu0 %v1876
  %4819 = vmatmul.bf16.gmra.mxu0 %v4679
  %v4820 = vpop.f32.mrf.mxu0
  %v4821 = vadd.f32 0.0, %v4820
  %v4822 = vpop.f32.mrf.mxu0
  %4823 = vdwg.mxu0
  %4824 = vmatpush.bf16.msra.mxu0 %v1996
  %4825 = vmatpush.bf16.msra.mxu0 %v1988
  %4826 = vmatpush.bf16.msra.mxu0 %v1980
  %4827 = vmatpush.bf16.msra.mxu0 %v1972
  %4828 = vmatpush.bf16.msra.mxu0 %v1964
  %4829 = vmatpush.bf16.msra.mxu0 %v1956
  %4830 = vmatpush.bf16.msra.mxu0 %v1948
  %4831 = vmatpush.bf16.msra.mxu0 %v1940
  %4832 = vmatmul.bf16.gmra.mxu0 %v4680
  %v4833 = vpop.f32.mrf.mxu0
  %v4834 = vadd.f32 %v4821, %v4833
  %v4835 = vpop.f32.mrf.mxu0
  %4836 = vdwg.mxu0
  %4837 = vmatpush.bf16.msra.mxu0 %v1933
  %4838 = vmatpush.bf16.msra.mxu0 %v1925
  %4839 = vmatpush.bf16.msra.mxu0 %v1917
  %4840 = vmatpush.bf16.msra.mxu0 %v1909
  %4841 = vmatpush.bf16.msra.mxu0 %v1901
  %4842 = vmatpush.bf16.msra.mxu0 %v1893
  %4843 = vmatpush.bf16.msra.mxu0 %v1885
  %4844 = vmatpush.bf16.msra.mxu0 %v1877
  %4845 = vmatmul.bf16.gmra.mxu0 %v4679
  %v4846 = vpop.f32.mrf.mxu0
  %v4847 = vadd.f32 0.0, %v4846
  %v4848 = vpop.f32.mrf.mxu0
  %4849 = vdwg.mxu0
  %4850 = vmatpush.bf16.msra.mxu0 %v1997
  %4851 = vmatpush.bf16.msra.mxu0 %v1989
  %4852 = vmatpush.bf16.msra.mxu0 %v1981
  %4853 = vmatpush.bf16.msra.mxu0 %v1973
  %4854 = vmatpush.bf16.msra.mxu0 %v1965
  %4855 = vmatpush.bf16.msra.mxu0 %v1957
  %4856 = vmatpush.bf16.msra.mxu0 %v1949
  %4857 = vmatpush.bf16.msra.mxu0 %v1941
  %4858 = vmatmul.bf16.gmra.mxu0 %v4680
  %v4859 = vpop.f32.mrf.mxu0
  %v4860 = vadd.f32 %v4847, %v4859
  %v4861 = vpop.f32.mrf.mxu0
  %4862 = vdwg.mxu0
  %4863 = vmatpush.bf16.msra.mxu0 %v1934
  %4864 = vmatpush.bf16.msra.mxu0 %v1926
  %4865 = vmatpush.bf16.msra.mxu0 %v1918
  %4866 = vmatpush.bf16.msra.mxu0 %v1910
  %4867 = vmatpush.bf16.msra.mxu0 %v1902
  %4868 = vmatpush.bf16.msra.mxu0 %v1894
  %4869 = vmatpush.bf16.msra.mxu0 %v1886
  %4870 = vmatpush.bf16.msra.mxu0 %v1878
  %4871 = vmatmul.bf16.gmra.mxu0 %v4679
  %v4872 = vpop.f32.mrf.mxu0
  %v4873 = vadd.f32 0.0, %v4872
  %v4874 = vpop.f32.mrf.mxu0
  %4875 = vdwg.mxu0
  %4876 = vmatpush.bf16.msra.mxu0 %v1998
  %4877 = vmatpush.bf16.msra.mxu0 %v1990
  %4878 = vmatpush.bf16.msra.mxu0 %v1982
  %4879 = vmatpush.bf16.msra.mxu0 %v1974
  %4880 = vmatpush.bf16.msra.mxu0 %v1966
  %4881 = vmatpush.bf16.msra.mxu0 %v1958
  %4882 = vmatpush.bf16.msra.mxu0 %v1950
  %4883 = vmatpush.bf16.msra.mxu0 %v1942
  %4884 = vmatmul.bf16.gmra.mxu0 %v4680
  %v4885 = vpop.f32.mrf.mxu0
  %v4886 = vadd.f32 %v4873, %v4885
  %v4887 = vpop.f32.mrf.mxu0
  %4888 = vdwg.mxu0
  %v4889 = vld [vmem:[%s2346] sm:$0xff]
  %v4890 = vld [vmem:[%s2346 + $0x8] sm:$0xff]
  %v4891 = vunpack.c.l.bf16 %v4889
  %v4892 = vunpack.c.h.bf16 %v4889
  %v4893 = vunpack.c.l.bf16 %v4890
  %v4894 = vunpack.c.h.bf16 %v4890
  %v4895 = vld [vmem:[%s2337 + $0x10] sm:$0xff]
  %v4896 = vld [vmem:[%s2337 + $0x18] sm:$0xff]
  %v4897 = vunpack.c.l.bf16 %v4895
  %v4898 = vunpack.c.h.bf16 %v4895
  %v4899 = vunpack.c.l.bf16 %v4896
  %v4900 = vunpack.c.h.bf16 %v4896
  %v4901 = vadd.f32 %v4704, %v4891
  %v4902 = vadd.f32 %v4730, %v4892
  %v4903 = vadd.f32 %v4756, %v4893
  %v4904 = vadd.f32 %v4782, %v4894
  %v4905 = vxor.u32 %v4901, 2147483648
  %v4906 = vxor.u32 %v4902, 2147483648
  %v4907 = vxor.u32 %v4903, 2147483648
  %v4908 = vmul.f32 %v4905, 1.442695
  %v4909 = vpow.pop %v4908
  %v4910 = vmul.f32 %v4906, 1.442695
  %v4911 = vpow.pop %v4910
  %v4912 = vmul.f32 %v4907, 1.442695
  %v4913 = vpow.pop %v4912
  %v4914 = vadd.f32 %v4909, 1.0
  %v4915 = vadd.f32 %v4911, 1.0
  %v4916 = vadd.f32 %v4913, 1.0
  %v4917 = vrcp.pop %v4914
  %v4918 = vmul.f32 %v4914, %v4917
  %v4919 = vsub.f32 1.0, %v4918
  %v4920 = vmul.f32 %v4917, %v4919
  %v4921 = vadd.f32 %v4917, %v4920
  %vm4922 = vweird.f32 %v4914
  %vm4923 = vweird.f32 %v4917
  %vm4924 = vmor %vm4922, %vm4923
  %v4925 = vsel %vm4924, %v4917, %v4921
  %v4926 = vand.u32 2147483647, %v4914
  %vm4927 = vcmp.eq.f32.partialorder %v4926, 8.507059e+37
  %v4928 = vand.u32 %v4914, 2147483648
  %v4929 = vor.u32 1.1754944e-38, %v4928
  %v4930 = vsel %vm4927, %v4929, %v4925
  %v4931 = vmul.f32 1.0, %v4930
  %v4932 = vrcp.pop %v4915
  %v4933 = vmul.f32 %v4915, %v4932
  %v4934 = vsub.f32 1.0, %v4933
  %v4935 = vmul.f32 %v4932, %v4934
  %v4936 = vadd.f32 %v4932, %v4935
  %vm4937 = vweird.f32 %v4915
  %vm4938 = vweird.f32 %v4932
  %vm4939 = vmor %vm4937, %vm4938
  %v4940 = vsel %vm4939, %v4932, %v4936
  %v4941 = vand.u32 2147483647, %v4915
  %vm4942 = vcmp.eq.f32.partialorder %v4941, 8.507059e+37
  %v4943 = vand.u32 %v4915, 2147483648
  %v4944 = vor.u32 1.1754944e-38, %v4943
  %v4945 = vsel %vm4942, %v4944, %v4940
  %v4946 = vmul.f32 1.0, %v4945
  %v4947 = vrcp.pop %v4916
  %v4948 = vmul.f32 %v4916, %v4947
  %v4949 = vsub.f32 1.0, %v4948
  %v4950 = vmul.f32 %v4947, %v4949
  %v4951 = vadd.f32 %v4947, %v4950
  %vm4952 = vweird.f32 %v4916
  %vm4953 = vweird.f32 %v4947
  %vm4954 = vmor %vm4952, %vm4953
  %v4955 = vsel %vm4954, %v4947, %v4951
  %v4956 = vand.u32 2147483647, %v4916
  %vm4957 = vcmp.eq.f32.partialorder %v4956, 8.507059e+37
  %v4958 = vand.u32 %v4916, 2147483648
  %v4959 = vor.u32 1.1754944e-38, %v4958
  %v4960 = vsel %vm4957, %v4959, %v4955
  %v4961 = vmul.f32 1.0, %v4960
  %v4962 = vtanh.pop %v4904
  %v4963 = vmul.f32 %v4946, %v4607
  %v4964 = vmul.f32 %v4931, %v4962
  %v4965 = vadd.f32 %v4963, %v4964
  %v4966 = vtanh.pop %v4965
  %v4967 = vmul.f32 %v4961, %v4966
  %v4968 = vadd.f32 %v4808, %v4897
  %v4969 = vadd.f32 %v4834, %v4898
  %v4970 = vadd.f32 %v4860, %v4899
  %v4971 = vadd.f32 %v4886, %v4900
  %v4972 = vxor.u32 %v4968, 2147483648
  %v4973 = vxor.u32 %v4969, 2147483648
  %v4974 = vxor.u32 %v4970, 2147483648
  %v4975 = vmul.f32 %v4972, 1.442695
  %v4976 = vpow.pop %v4975
  %v4977 = vmul.f32 %v4973, 1.442695
  %v4978 = vpow.pop %v4977
  %v4979 = vmul.f32 %v4974, 1.442695
  %v4980 = vpow.pop %v4979
  %v4981 = vadd.f32 %v4976, 1.0
  %v4982 = vadd.f32 %v4978, 1.0
  %v4983 = vadd.f32 %v4980, 1.0
  %v4984 = vrcp.pop %v4981
  %v4985 = vmul.f32 %v4981, %v4984
  %v4986 = vsub.f32 1.0, %v4985
  %v4987 = vmul.f32 %v4984, %v4986
  %v4988 = vadd.f32 %v4984, %v4987
  %vm4989 = vweird.f32 %v4981
  %vm4990 = vweird.f32 %v4984
  %vm4991 = vmor %vm4989, %vm4990
  %v4992 = vsel %vm4991, %v4984, %v4988
  %v4993 = vand.u32 2147483647, %v4981
  %vm4994 = vcmp.eq.f32.partialorder %v4993, 8.507059e+37
  %v4995 = vand.u32 %v4981, 2147483648
  %v4996 = vor.u32 1.1754944e-38, %v4995
  %v4997 = vsel %vm4994, %v4996, %v4992
  %v4998 = vmul.f32 1.0, %v4997
  %v4999 = vrcp.pop %v4982
  %v5000 = vmul.f32 %v4982, %v4999
  %v5001 = vsub.f32 1.0, %v5000
  %v5002 = vmul.f32 %v4999, %v5001
  %v5003 = vadd.f32 %v4999, %v5002
  %vm5004 = vweird.f32 %v4982
  %vm5005 = vweird.f32 %v4999
  %vm5006 = vmor %vm5004, %vm5005
  %v5007 = vsel %vm5006, %v4999, %v5003
  %v5008 = vand.u32 2147483647, %v4982
  %vm5009 = vcmp.eq.f32.partialorder %v5008, 8.507059e+37
  %v5010 = vand.u32 %v4982, 2147483648
  %v5011 = vor.u32 1.1754944e-38, %v5010
  %v5012 = vsel %vm5009, %v5011, %v5007
  %v5013 = vmul.f32 1.0, %v5012
  %v5014 = vrcp.pop %v4983
  %v5015 = vmul.f32 %v4983, %v5014
  %v5016 = vsub.f32 1.0, %v5015
  %v5017 = vmul.f32 %v5014, %v5016
  %v5018 = vadd.f32 %v5014, %v5017
  %vm5019 = vweird.f32 %v4983
  %vm5020 = vweird.f32 %v5014
  %vm5021 = vmor %vm5019, %vm5020
  %v5022 = vsel %vm5021, %v5014, %v5018
  %v5023 = vand.u32 2147483647, %v4983
  %vm5024 = vcmp.eq.f32.partialorder %v5023, 8.507059e+37
  %v5025 = vand.u32 %v4983, 2147483648
  %v5026 = vor.u32 1.1754944e-38, %v5025
  %v5027 = vsel %vm5024, %v5026, %v5022
  %v5028 = vmul.f32 1.0, %v5027
  %v5029 = vtanh.pop %v4971
  %v5030 = vmul.f32 %v5013, %v4674
  %v5031 = vmul.f32 %v4998, %v5029
  %v5032 = vadd.f32 %v5030, %v5031
  %v5033 = vtanh.pop %v5032
  %v5034 = vmul.f32 %v5028, %v5033
  %5035 = vst [vmem:[%s2493] sm:$0xff] %v4967
  %5036 = vst [vmem:[%s2489 + $0x8] sm:$0xff] %v5034
  // Predicated region
  $region14: #{contextual_embedding.1} parent=0 // pred_check
    _
  $region15: #{contextual_embedding.1} parent=0 // pred_check_branch
    %5038 = sbr.rel (0) target = $region17
  $region16: #{contextual_embedding.1} parent=0 // pred_region
    _
  $region17: #{contextual_embedding.1} parent=0 // pred_fallthru
    _
  // Predicated region
  $region18: #{contextual_embedding.1} parent=0 // pred_check
    _
  $region19: #{contextual_embedding.1} parent=0 // pred_check_branch
    %5040 = sbr.rel (0) target = $region21
  $region20: #{contextual_embedding.1} parent=0 // pred_region
    _
  $region21: #{contextual_embedding.1} parent=0 // pred_fallthru
    _

</llo_original>
